<compile_context>
chip_gen: v6e
topology: v6e:2x2x1
jax: 0.10.0
libtpu: 0.0.40
codegen_flags: <defaults>
</compile_context>

<pallas_src>
import functools
import math

import jax
import jax.numpy as jnp
from jax import lax
from jax.experimental import pallas as pl
from jax.experimental.pallas import tpu as pltpu

EPS = 1e-6
NEG_INF = -1e18
_VMEM_LIMIT = 48 * 1024 * 1024   # leaves headroom on v7x's 64 MiB VMEM


def _pick_tile(n, cap=256):
    """Largest row tile <= cap that evenly divides n (multiple of 8, or n itself)."""
    if n <= cap:
        return n
    t = cap
    while t >= 8:
        if n % t == 0:
            return t
        t -= 8
    return n


# ----------------------------- Pallas kernels -----------------------------

def _ln_qkv_kernel(x_ref, g_ref, b_ref, w_ref, bias_ref, norm_ref, qkv_ref, *, eps):
    # LayerNorm(x) then fused (D, 3D) QKV projection. Row tile (tm, D).
    x = x_ref[...].astype(jnp.float32)
    mu = jnp.mean(x, axis=-1, keepdims=True)
    var = jnp.mean(jnp.square(x - mu), axis=-1, keepdims=True)
    xn = (x - mu) * lax.rsqrt(var + eps) * g_ref[...] + b_ref[...]
    norm_ref[...] = xn.astype(norm_ref.dtype)
    y = jnp.dot(xn.astype(w_ref.dtype), w_ref[...], preferred_element_type=jnp.float32)
    qkv_ref[...] = (y + bias_ref[...]).astype(qkv_ref.dtype)


def _mha_kernel(q_ref, k_ref, v_ref, pad_ref, o_ref, *, scale):
    # One batch element, all heads: q/k/v (H, L, dh), pad (1, L) int32.
    q = q_ref[...]
    k = k_ref[...]
    v = v_ref[...]
    s = jnp.einsum('hqd,hkd->hqk', q, k, preferred_element_type=jnp.float32) * scale
    _, lq, lk = s.shape
    row = lax.broadcasted_iota(jnp.int32, (lq, lk), 0)
    col = lax.broadcasted_iota(jnp.int32, (lq, lk), 1)
    masked = jnp.logical_or(col > row, pad_ref[...] > 0)      # causal | key padding
    s = jnp.where(masked[None, :, :], NEG_INF, s)
    s = s - jnp.max(s, axis=-1, keepdims=True)
    p = jnp.exp(s)
    p = p / jnp.sum(p, axis=-1, keepdims=True)
    o_ref[...] = jnp.einsum('hqk,hkd->hqd', p.astype(v.dtype), v,
                            preferred_element_type=jnp.float32).astype(o_ref.dtype)


def _proj_res_ln_kernel(ctx_ref, res_ref, wo_ref, bo_ref, g_ref, b_ref,
                        wr_ref, wc_ref, q_ref, qn_ref, qwr_ref, qwc_ref, *, eps):
    # self-attn output proj + residual + LN2, plus hoisted GlobalAttention
    # linear_in for both the row attention and the record/context attention.
    y = jnp.dot(ctx_ref[...], wo_ref[...], preferred_element_type=jnp.float32)
    q = y + bo_ref[...] + res_ref[...].astype(jnp.float32)
    q_ref[...] = q.astype(q_ref.dtype)
    mu = jnp.mean(q, axis=-1, keepdims=True)
    var = jnp.mean(jnp.square(q - mu), axis=-1, keepdims=True)
    qn = (q - mu) * lax.rsqrt(var + eps) * g_ref[...] + b_ref[...]
    qn_ref[...] = qn.astype(qn_ref.dtype)
    qnb = qn.astype(wr_ref.dtype)
    qwr_ref[...] = jnp.dot(qnb, wr_ref[...], preferred_element_type=jnp.float32).astype(qwr_ref.dtype)
    qwc_ref[...] = jnp.dot(qnb, wc_ref[...], preferred_element_type=jnp.float32).astype(qwc_ref.dtype)


def _attn_scores_kernel(qw_ref, mem_ref, a_ref):
    # Scores-only GlobalAttention ('general', linear_in already applied):
    # softmax((q W_in) mem^T).  qw (L, D), mem (Sk, D) -> attn (L, Sk).
    s = lax.dot_general(qw_ref[...], mem_ref[...], (((1,), (1,)), ((), ())),
                        preferred_element_type=jnp.float32)
    s = s - jnp.max(s, axis=-1, keepdims=True)
    p = jnp.exp(s)
    a_ref[...] = (p / jnp.sum(p, axis=-1, keepdims=True)).astype(a_ref.dtype)


def _glob_attn_align_kernel(q_ref, mem_ref, a_ref, woc_ref, woq_ref, h_ref):
    # GlobalAttention with externally supplied alignment probabilities:
    # c = p @ mem ; h = tanh(c Wc + q Wq)      (linear_out split in halves, no bias)
    p = a_ref[...].astype(mem_ref.dtype)
    c = jnp.dot(p, mem_ref[...], preferred_element_type=jnp.float32)
    h = jnp.tanh(jnp.dot(c.astype(woc_ref.dtype), woc_ref[...],
                         preferred_element_type=jnp.float32)
                 + jnp.dot(q_ref[...].astype(woq_ref.dtype), woq_ref[...],
                           preferred_element_type=jnp.float32))
    h_ref[...] = h.astype(h_ref.dtype)


def _ffn_kernel(mid_ref, res_ref, g_ref, b_ref, w1_ref, b1_ref, w2_ref, b2_ref,
                o_ref, *, eps):
    # x = mid + query ; out = x + W2(relu(W1(LN(x))))    (row tile (tm, D))
    x = mid_ref[...].astype(jnp.float32) + res_ref[...].astype(jnp.float32)
    mu = jnp.mean(x, axis=-1, keepdims=True)
    var = jnp.mean(jnp.square(x - mu), axis=-1, keepdims=True)
    xn = (x - mu) * lax.rsqrt(var + eps) * g_ref[...] + b_ref[...]
    h = jnp.maximum(
        jnp.dot(xn.astype(w1_ref.dtype), w1_ref[...],
                preferred_element_type=jnp.float32) + b1_ref[...], 0.0)
    y = jnp.dot(h.astype(w2_ref.dtype), w2_ref[...],
                preferred_element_type=jnp.float32) + b2_ref[...]
    o_ref[...] = (y + x).astype(o_ref.dtype)


# ----------------------------- kernel wrappers -----------------------------

def ln_qkv(x2, g, b, w, bias, eps=EPS):
    n, d = x2.shape
    d3 = w.shape[1]
    tm = _pick_tile(n)
    return pl.pallas_call(
        functools.partial(_ln_qkv_kernel, eps=eps),
        out_shape=(jax.ShapeDtypeStruct((n, d), jnp.float32),
                   jax.ShapeDtypeStruct((n, d3), jnp.bfloat16)),
        grid=(n // tm,),
        in_specs=[pl.BlockSpec((tm, d), lambda i: (i, 0)),
                  pl.BlockSpec((1, d), lambda i: (0, 0)),
                  pl.BlockSpec((1, d), lambda i: (0, 0)),
                  pl.BlockSpec((d, d3), lambda i: (0, 0)),
                  pl.BlockSpec((1, d3), lambda i: (0, 0))],
        out_specs=(pl.BlockSpec((tm, d), lambda i: (i, 0)),
                   pl.BlockSpec((tm, d3), lambda i: (i, 0))),
        compiler_params=pltpu.CompilerParams(
            dimension_semantics=("parallel",), vmem_limit_bytes=_VMEM_LIMIT),
    )(x2, g, b, w, bias)


def multi_head_attention(qh, kh, vh, pad, scale):
    B, H, L, dh = qh.shape
    return pl.pallas_call(
        functools.partial(_mha_kernel, scale=scale),
        out_shape=jax.ShapeDtypeStruct((B, H, L, dh), jnp.bfloat16),
        grid=(B,),
        in_specs=[pl.BlockSpec((None, H, L, dh), lambda b: (b, 0, 0, 0)),
                  pl.BlockSpec((None, H, L, dh), lambda b: (b, 0, 0, 0)),
                  pl.BlockSpec((None, H, L, dh), lambda b: (b, 0, 0, 0)),
                  pl.BlockSpec((None, 1, L), lambda b: (b, 0, 0))],
        out_specs=pl.BlockSpec((None, H, L, dh), lambda b: (b, 0, 0, 0)),
        compiler_params=pltpu.CompilerParams(dimension_semantics=("parallel",)),
    )(qh, kh, vh, pad)


def proj_res_ln(ctx2, x2, wo, bo, g, b, w_row_in, w_ctx_in, eps=EPS):
    n, d = x2.shape
    tm = _pick_tile(n)
    return pl.pallas_call(
        functools.partial(_proj_res_ln_kernel, eps=eps),
        out_shape=(jax.ShapeDtypeStruct((n, d), jnp.float32),    # query (resid)
                   jax.ShapeDtypeStruct((n, d), jnp.float32),    # query_norm
                   jax.ShapeDtypeStruct((n, d), jnp.bfloat16),   # qn @ row_w_in
                   jax.ShapeDtypeStruct((n, d), jnp.bfloat16)),  # qn @ ctx_w_in
        grid=(n // tm,),
        in_specs=[pl.BlockSpec((tm, d), lambda i: (i, 0)),
                  pl.BlockSpec((tm, d), lambda i: (i, 0)),
                  pl.BlockSpec((d, d), lambda i: (0, 0)),
                  pl.BlockSpec((1, d), lambda i: (0, 0)),
                  pl.BlockSpec((1, d), lambda i: (0, 0)),
                  pl.BlockSpec((1, d), lambda i: (0, 0)),
                  pl.BlockSpec((d, d), lambda i: (0, 0)),
                  pl.BlockSpec((d, d), lambda i: (0, 0))],
        out_specs=(pl.BlockSpec((tm, d), lambda i: (i, 0)),
                   pl.BlockSpec((tm, d), lambda i: (i, 0)),
                   pl.BlockSpec((tm, d), lambda i: (i, 0)),
                   pl.BlockSpec((tm, d), lambda i: (i, 0))),
        compiler_params=pltpu.CompilerParams(
            dimension_semantics=("parallel",), vmem_limit_bytes=_VMEM_LIMIT),
    )(ctx2, x2, wo, bo, g, b, w_row_in, w_ctx_in)


def attn_scores(qw, mem):
    # qw (B, L, D), mem (B, S, D) -> softmax probs (B, L, S)
    B, L, D = qw.shape
    S = mem.shape[1]
    return pl.pallas_call(
        _attn_scores_kernel,
        out_shape=jax.ShapeDtypeStruct((B, L, S), jnp.float32),
        grid=(B,),
        in_specs=[pl.BlockSpec((None, L, D), lambda b: (b, 0, 0)),
                  pl.BlockSpec((None, S, D), lambda b: (b, 0, 0))],
        out_specs=pl.BlockSpec((None, L, S), lambda b: (b, 0, 0)),
        compiler_params=pltpu.CompilerParams(dimension_semantics=("parallel",)),
    )(qw, mem)


def attn_scores_grouped(qw, mem):
    # qw (B, L, D) reused (via index_map) for every row; mem (B, R, T, D)
    # -> probs (B, R, L, T).  No materialized broadcast of the query.
    B, L, D = qw.shape
    R, T = mem.shape[1], mem.shape[2]
    return pl.pallas_call(
        _attn_scores_kernel,
        out_shape=jax.ShapeDtypeStruct((B, R, L, T), jnp.float32),
        grid=(B, R),
        in_specs=[pl.BlockSpec((None, L, D), lambda b, r: (b, 0, 0)),
                  pl.BlockSpec((None, None, T, D), lambda b, r: (b, r, 0, 0))],
        out_specs=pl.BlockSpec((None, None, L, T), lambda b, r: (b, r, 0, 0)),
        compiler_params=pltpu.CompilerParams(
            dimension_semantics=("parallel", "parallel")),
    )(qw, mem)


def global_attention_with_align(qn, mem, align, w_out_c, w_out_q):
    B, L, D = qn.shape
    S = mem.shape[1]
    return pl.pallas_call(
        _glob_attn_align_kernel,
        out_shape=jax.ShapeDtypeStruct((B, L, D), jnp.float32),
        grid=(B,),
        in_specs=[pl.BlockSpec((None, L, D), lambda b: (b, 0, 0)),
                  pl.BlockSpec((None, S, D), lambda b: (b, 0, 0)),
                  pl.BlockSpec((None, L, S), lambda b: (b, 0, 0)),
                  pl.BlockSpec((D, D), lambda b: (0, 0)),
                  pl.BlockSpec((D, D), lambda b: (0, 0))],
        out_specs=pl.BlockSpec((None, L, D), lambda b: (b, 0, 0)),
        compiler_params=pltpu.CompilerParams(dimension_semantics=("parallel",)),
    )(qn, mem, align, w_out_c, w_out_q)


def feed_forward(mid2, res2, g, b, w1, b1, w2, b2, eps=EPS):
    n, d = mid2.shape
    hff = w1.shape[1]
    tm = _pick_tile(n)
    return pl.pallas_call(
        functools.partial(_ffn_kernel, eps=eps),
        out_shape=jax.ShapeDtypeStruct((n, d), jnp.float32),
        grid=(n // tm,),
        in_specs=[pl.BlockSpec((tm, d), lambda i: (i, 0)),
                  pl.BlockSpec((tm, d), lambda i: (i, 0)),
                  pl.BlockSpec((1, d), lambda i: (0, 0)),
                  pl.BlockSpec((1, d), lambda i: (0, 0)),
                  pl.BlockSpec((d, hff), lambda i: (0, 0)),
                  pl.BlockSpec((1, hff), lambda i: (0, 0)),
                  pl.BlockSpec((hff, d), lambda i: (0, 0)),
                  pl.BlockSpec((1, d), lambda i: (0, 0))],
        out_specs=pl.BlockSpec((tm, d), lambda i: (i, 0)),
        compiler_params=pltpu.CompilerParams(
            dimension_semantics=("parallel",), vmem_limit_bytes=_VMEM_LIMIT),
    )(mid2, res2, g, b, w1, b1, w2, b2)


# ------------------------- model (forward semantics) -------------------------

def hier_rep_and_attn(p, qn, qw_row, qw_ctx, record_bank, row_bank, orig_mem):
    """TransformerDecoderLayer.get_hier_rep_and_attn, batch-first internally."""
    B, L, D = qn.shape
    row_mem = jnp.transpose(jnp.concatenate(row_bank, axis=0), (1, 0, 2)).astype(jnp.bfloat16)
    row_attn = attn_scores(qw_row, row_mem)                        # (B, L, R)
    r = [rb.shape[0] for rb in row_bank]
    offs = [0, r[0], r[0] + r[1], r[0] + r[1] + r[2]]
    parts = [row_attn[:, :, :r[0]]]                                # special rows
    for idx in (1, 2, 3):
        rows_i = r[idx]
        rec = record_bank[idx]                                     # (T, B*rows_i, D)
        T = rec.shape[0]
        mem = jnp.transpose(rec, (1, 0, 2)).reshape(B, rows_i, T, D).astype(jnp.bfloat16)
        a = attn_scores_grouped(qw_ctx, mem)                       # (B, rows_i, L, T)
        row_a = row_attn[:, :, offs[idx]:offs[idx] + rows_i]       # (B, L, rows_i)
        comb = jnp.transpose(a, (0, 2, 1, 3)) * row_a[..., None]   # (B, L, rows_i, T)
        parts.append(comb.reshape(B, L, rows_i * T))
    p_attn = jnp.concatenate(parts, axis=2)                        # (B, L, S)
    orig_bf = jnp.transpose(orig_mem, (1, 0, 2)).astype(jnp.bfloat16)   # (B, S, D)
    attn_h = global_attention_with_align(qn, orig_bf, p_attn,
                                         p['ctx_w_out_c'], p['ctx_w_out_q'])
    return attn_h, p_attn


def transformer_decoder_layer(p, x, tgt_pad, record_bank, row_bank, orig_mem, *, heads):
    B, L, D = x.shape
    dh = D // heads
    N = B * L
    x2 = x.reshape(N, D)

    # (1) LN1 + fused QKV projection
    input_norm2, qkv = ln_qkv(x2, p['ln1_g'], p['ln1_b'], p['sa_wqkv'], p['sa_bqkv'])
    all_input = input_norm2.reshape(B, L, D)

    # head split (plain-JAX glue); key = value = query = input_norm (previous_input=None)
    qkv4 = qkv.reshape(B, L, 3, heads, dh)
    qh = jnp.transpose(qkv4[:, :, 0], (0, 2, 1, 3))
    kh = jnp.transpose(qkv4[:, :, 1], (0, 2, 1, 3))
    vh = jnp.transpose(qkv4[:, :, 2], (0, 2, 1, 3))

    pad3 = tgt_pad.reshape(B, 1, L).astype(jnp.int32)
    ctx = multi_head_attention(qh, kh, vh, pad3, 1.0 / math.sqrt(dh))
    ctx2 = jnp.transpose(ctx, (0, 2, 1, 3)).reshape(N, D)

    # (2) output proj + residual + LN2 + hoisted linear_in of row/ctx attention
    query2, qn2, qwr2, qwc2 = proj_res_ln(
        ctx2, x2, p['sa_wo'], p['sa_bo'], p['ln2_g'], p['ln2_b'],
        p['row_w_in'], p['ctx_w_in'])
    qn = qn2.reshape(B, L, D)
    qw_row = qwr2.reshape(B, L, D)
    qw_ctx = qwc2.reshape(B, L, D)

    mid, attn = hier_rep_and_attn(p, qn, qw_row, qw_ctx, record_bank, row_bank, orig_mem)

    # (3) FFN with fused (mid + query) residual, LN, W1/relu/W2, final residual
    out2 = feed_forward(mid.reshape(N, D), query2,
                        p['ffn_ln_g'], p['ffn_ln_b'],
                        p['ffn_w1'], p['ffn_b1'], p['ffn_w2'], p['ffn_b2'])
    return out2.reshape(B, L, D), attn, all_input


# ------------------------------ parameter init ------------------------------

def init_layer_params(key, *, D, Hff):
    keys = iter(jax.random.split(key, 16))

    def w(shape, scale=0.1, dtype=jnp.bfloat16):
        return (jax.random.normal(next(keys), shape, jnp.float32) * scale).astype(dtype)

    return dict(
        ln1_g=jnp.ones((1, D), jnp.float32), ln1_b=jnp.zeros((1, D), jnp.float32),
        ln2_g=jnp.ones((1, D), jnp.float32), ln2_b=jnp.zeros((1, D), jnp.float32),
        # self-attention: fused (D, 3D) QKV weight + output proj (stored (in, out))
        sa_wqkv=w((D, 3 * D)), sa_bqkv=w((1, 3 * D), 0.01, jnp.float32),
        sa_wo=w((D, D)), sa_bo=w((1, D), 0.01, jnp.float32),
        # GlobalAttention 'general': linear_in for row / context attention,
        # context linear_out (2D->D, no bias) split into the c-half and q-half.
        # (row-attn linear_out is never used by this forward — its h is discarded.)
        row_w_in=w((D, D)),
        ctx_w_in=w((D, D)), ctx_w_out_c=w((D, D)), ctx_w_out_q=w((D, D)),
        # position-wise FFN
        ffn_ln_g=jnp.ones((1, D), jnp.float32), ffn_ln_b=jnp.zeros((1, D), jnp.float32),
        ffn_w1=w((D, Hff)), ffn_b1=w((1, Hff), 0.01, jnp.float32),
        ffn_w2=w((Hff, D)), ffn_b2=w((1, D), 0.01, jnp.float32),
    )


# ----------------------------------- main -----------------------------------

if __name__ == "__main__":
    key = jax.random.PRNGKey(0)
    B, L, D = 2, 8, 32
    HEADS, HFF = 8, 64            # FFN hidden kept small (module default is 2048)
    rows = (3, 4, 4, 2)           # special rows, home players, vis players, teams
    rec_lens = (1, 5, 5, 3)       # record_bank[0] is unused by the forward pass

    k_param, k_x, *k_mem = jax.random.split(key, 12)
    params = init_layer_params(k_param, D=D, Hff=HFF)

    x = jax.random.normal(k_x, (B, L, D), jnp.float32)
    tgt_pad = jnp.zeros((B, L), jnp.int32).at[1, L - 1].set(1)   # one padded target position

    row_bank = tuple(
        jax.random.normal(k_mem[i], (rows[i], B, D), jnp.float32) * 0.1
        for i in range(4))
    record_bank = tuple(
        jax.random.normal(k_mem[4 + i], (rec_lens[i], B * rows[i], D), jnp.float32) * 0.1
        for i in range(4))
    S = rows[0] + sum(rows[i] * rec_lens[i] for i in (1, 2, 3))
    orig_memory_bank = jax.random.normal(k_mem[8], (S, B, D), jnp.float32) * 0.1

    layer = jax.jit(functools.partial(transformer_decoder_layer, heads=HEADS))
    out, attn, all_input = layer(params, x, tgt_pad, record_bank, row_bank,
                                 orig_memory_bank)
    jax.block_until_ready((out, attn, all_input))

    assert out.shape == (B, L, D)
    assert attn.shape == (B, L, S)
    assert all_input.shape == (B, L, D)
    assert bool(jnp.all(jnp.isfinite(out)))
    assert bool(jnp.all(jnp.isfinite(attn)))
    print("KERNEL_OK")
</pallas_src>

<mosaic_0001>
module attributes {stable_mosaic.version = 11 : i64} {
  func.func @_ln_qkv_kernel(%arg0: i32, %arg1: memref<16x32xf32, #tpu.memory_space<vmem>>, %arg2: memref<1x32xf32, #tpu.memory_space<vmem>>, %arg3: memref<1x32xf32, #tpu.memory_space<vmem>>, %arg4: memref<32x96xbf16, #tpu.memory_space<vmem>>, %arg5: memref<1x96xf32, #tpu.memory_space<vmem>>, %arg6: memref<16x32xf32, #tpu.memory_space<vmem>>, %arg7: memref<16x96xbf16, #tpu.memory_space<vmem>>) attributes {dimension_semantics = [#tpu.dimension_semantics<parallel>], iteration_bounds = array<i64: 1>, scalar_prefetch = 0 : i64, scratch_operands = 0 : i64, tpu.core_type = #tpu.core_type<tc>, window_params = [{transform_indices = @transform_0, window_bounds = array<i64: 16, 32>}, {pipeline_mode = #tpu.pipeline_mode<synchronous>, transform_indices = @transform_1, window_bounds = array<i64: 1, 32>}, {pipeline_mode = #tpu.pipeline_mode<synchronous>, transform_indices = @transform_2, window_bounds = array<i64: 1, 32>}, {pipeline_mode = #tpu.pipeline_mode<synchronous>, transform_indices = @transform_3, window_bounds = array<i64: 32, 96>}, {pipeline_mode = #tpu.pipeline_mode<synchronous>, transform_indices = @transform_4, window_bounds = array<i64: 1, 96>}, {transform_indices = @transform_5, window_bounds = array<i64: 16, 32>}, {transform_indices = @transform_6, window_bounds = array<i64: 16, 96>}]} {
    %c0 = arith.constant 0 : index
    %c0_0 = arith.constant 0 : index
    %0 = vector.load %arg1[%c0, %c0_0] : memref<16x32xf32, #tpu.memory_space<vmem>>, vector<16x32xf32>
    %cst = arith.constant dense<0.000000e+00> : vector<16xf32>
    %1 = vector.multi_reduction <add>, %0, %cst [1] : vector<16x32xf32> to vector<16xf32>
    %2 = vector.shape_cast %1 : vector<16xf32> to vector<16x1xf32>
    %cst_1 = arith.constant 3.200000e+01 : f32
    %3 = vector.broadcast %cst_1 : f32 to vector<16x1xf32>
    %4 = arith.divf %2, %3 : vector<16x1xf32>
    %5 = vector.broadcast %4 : vector<16x1xf32> to vector<16x32xf32>
    %6 = arith.subf %0, %5 : vector<16x32xf32>
    %7 = arith.mulf %6, %6 : vector<16x32xf32>
    %cst_2 = arith.constant dense<0.000000e+00> : vector<16xf32>
    %8 = vector.multi_reduction <add>, %7, %cst_2 [1] : vector<16x32xf32> to vector<16xf32>
    %9 = vector.shape_cast %8 : vector<16xf32> to vector<16x1xf32>
    %cst_3 = arith.constant 3.200000e+01 : f32
    %10 = vector.broadcast %cst_3 : f32 to vector<16x1xf32>
    %11 = arith.divf %9, %10 : vector<16x1xf32>
    %12 = vector.broadcast %4 : vector<16x1xf32> to vector<16x32xf32>
    %13 = arith.subf %0, %12 : vector<16x32xf32>
    %cst_4 = arith.constant 9.99999997E-7 : f32
    %14 = vector.broadcast %cst_4 : f32 to vector<16x1xf32>
    %15 = arith.addf %11, %14 : vector<16x1xf32>
    %16 = math.rsqrt %15 : vector<16x1xf32>
    %17 = vector.broadcast %16 : vector<16x1xf32> to vector<16x32xf32>
    %18 = arith.mulf %13, %17 : vector<16x32xf32>
    %c0_5 = arith.constant 0 : index
    %c0_6 = arith.constant 0 : index
    %19 = vector.load %arg2[%c0_5, %c0_6] : memref<1x32xf32, #tpu.memory_space<vmem>>, vector<1x32xf32>
    %20 = vector.broadcast %19 : vector<1x32xf32> to vector<16x32xf32>
    %21 = arith.mulf %18, %20 : vector<16x32xf32>
    %c0_7 = arith.constant 0 : index
    %c0_8 = arith.constant 0 : index
    %22 = vector.load %arg3[%c0_7, %c0_8] : memref<1x32xf32, #tpu.memory_space<vmem>>, vector<1x32xf32>
    %23 = vector.broadcast %22 : vector<1x32xf32> to vector<16x32xf32>
    %24 = arith.addf %21, %23 : vector<16x32xf32>
    %c0_9 = arith.constant 0 : index
    %c0_10 = arith.constant 0 : index
    %25 = vector.load %arg6[%c0_9, %c0_10] : memref<16x32xf32, #tpu.memory_space<vmem>>, vector<16x32xf32>
    tpu.vector_store %arg6[%c0_9, %c0_10], %24 {strides = array<i32>} : memref<16x32xf32, #tpu.memory_space<vmem>>, vector<16x32xf32>,
    %26 = arith.truncf %24 : vector<16x32xf32> to vector<16x32xbf16>
    %c0_11 = arith.constant 0 : index
    %c0_12 = arith.constant 0 : index
    %27 = vector.load %arg4[%c0_11, %c0_12] : memref<32x96xbf16, #tpu.memory_space<vmem>>, vector<32x96xbf16>
    %cst_13 = arith.constant dense<0.000000e+00> : vector<16x96xf32>
    %28 = tpu.matmul %26, %27, %cst_13 {dimension_numbers = #tpu.dot_dimension_numbers<[1], [0], [0], [1], [0, 0, 1, 1], [], []>} : vector<16x32xbf16>, vector<32x96xbf16>, vector<16x96xf32> -> vector<16x96xf32>
    %c0_14 = arith.constant 0 : index
    %c0_15 = arith.constant 0 : index
    %29 = vector.load %arg5[%c0_14, %c0_15] : memref<1x96xf32, #tpu.memory_space<vmem>>, vector<1x96xf32>
    %30 = vector.broadcast %29 : vector<1x96xf32> to vector<16x96xf32>
    %31 = arith.addf %28, %30 : vector<16x96xf32>
    %32 = arith.truncf %31 : vector<16x96xf32> to vector<16x96xbf16>
    %c0_16 = arith.constant 0 : index
    %c0_17 = arith.constant 0 : index
    %33 = vector.load %arg7[%c0_16, %c0_17] : memref<16x96xbf16, #tpu.memory_space<vmem>>, vector<16x96xbf16>
    tpu.vector_store %arg7[%c0_16, %c0_17], %32 {strides = array<i32>} : memref<16x96xbf16, #tpu.memory_space<vmem>>, vector<16x96xbf16>,
    return
  }
  func.func @transform_0(%arg0: i32) -> (i32, i32) {
    %c0_i32 = arith.constant 0 : i32
    %c0_i32_0 = arith.constant 0 : i32
    return %arg0, %c0_i32 : i32, i32
  }
  func.func @transform_1(%arg0: i32) -> (i32, i32) {
    %c0_i32 = arith.constant 0 : i32
    %c0_i32_0 = arith.constant 0 : i32
    %c0_i32_1 = arith.constant 0 : i32
    return %c0_i32, %c0_i32_0 : i32, i32
  }
  func.func @transform_2(%arg0: i32) -> (i32, i32) {
    %c0_i32 = arith.constant 0 : i32
    %c0_i32_0 = arith.constant 0 : i32
    %c0_i32_1 = arith.constant 0 : i32
    return %c0_i32, %c0_i32_0 : i32, i32
  }
  func.func @transform_3(%arg0: i32) -> (i32, i32) {
    %c0_i32 = arith.constant 0 : i32
    %c0_i32_0 = arith.constant 0 : i32
    %c0_i32_1 = arith.constant 0 : i32
    return %c0_i32, %c0_i32_0 : i32, i32
  }
  func.func @transform_4(%arg0: i32) -> (i32, i32) {
    %c0_i32 = arith.constant 0 : i32
    %c0_i32_0 = arith.constant 0 : i32
    %c0_i32_1 = arith.constant 0 : i32
    return %c0_i32, %c0_i32_0 : i32, i32
  }
  func.func @transform_5(%arg0: i32) -> (i32, i32) {
    %c0_i32 = arith.constant 0 : i32
    %c0_i32_0 = arith.constant 0 : i32
    return %arg0, %c0_i32 : i32, i32
  }
  func.func @transform_6(%arg0: i32) -> (i32, i32) {
    %c0_i32 = arith.constant 0 : i32
    %c0_i32_0 = arith.constant 0 : i32
    return %arg0, %c0_i32 : i32, i32
  }
}

module attributes {stable_mosaic.version = 11 : i64} {
  func.func @_mha_kernel(%arg0: i32, %arg1: memref<1x8x8x4xbf16, #tpu.memory_space<vmem>>, %arg2: memref<1x8x8x4xbf16, #tpu.memory_space<vmem>>, %arg3: memref<1x8x8x4xbf16, #tpu.memory_space<vmem>>, %arg4: memref<1x1x8xi32, #tpu.memory_space<vmem>>, %arg5: memref<1x8x8x4xbf16, #tpu.memory_space<vmem>>) attributes {dimension_semantics = [#tpu.dimension_semantics<parallel>], iteration_bounds = array<i64: 2>, scalar_prefetch = 0 : i64, scratch_operands = 0 : i64, tpu.core_type = #tpu.core_type<tc>, window_params = [{transform_indices = @transform_0, window_bounds = array<i64: 1, 8, 8, 4>}, {transform_indices = @transform_1, window_bounds = array<i64: 1, 8, 8, 4>}, {transform_indices = @transform_2, window_bounds = array<i64: 1, 8, 8, 4>}, {transform_indices = @transform_3, window_bounds = array<i64: 1, 1, 8>}, {transform_indices = @transform_4, window_bounds = array<i64: 1, 8, 8, 4>}]} {
    %c0 = arith.constant 0 : index
    %c0_0 = arith.constant 0 : index
    %c0_1 = arith.constant 0 : index
    %c0_2 = arith.constant 0 : index
    %0 = vector.load %arg1[%c0, %c0_0, %c0_1, %c0_2] : memref<1x8x8x4xbf16, #tpu.memory_space<vmem>>, vector<1x8x8x4xbf16>
    %1 = vector.shape_cast %0 : vector<1x8x8x4xbf16> to vector<8x8x4xbf16>
    %c0_3 = arith.constant 0 : index
    %c0_4 = arith.constant 0 : index
    %c0_5 = arith.constant 0 : index
    %c0_6 = arith.constant 0 : index
    %2 = vector.load %arg2[%c0_3, %c0_4, %c0_5, %c0_6] : memref<1x8x8x4xbf16, #tpu.memory_space<vmem>>, vector<1x8x8x4xbf16>
    %3 = vector.shape_cast %2 : vector<1x8x8x4xbf16> to vector<8x8x4xbf16>
    %c0_7 = arith.constant 0 : index
    %c0_8 = arith.constant 0 : index
    %c0_9 = arith.constant 0 : index
    %c0_10 = arith.constant 0 : index
    %4 = vector.load %arg3[%c0_7, %c0_8, %c0_9, %c0_10] : memref<1x8x8x4xbf16, #tpu.memory_space<vmem>>, vector<1x8x8x4xbf16>
    %5 = vector.shape_cast %4 : vector<1x8x8x4xbf16> to vector<8x8x4xbf16>
    "tpu.trace_start"() <{level = 10 : i32, message = "hqd,hkd->hqk"}> : () -> ()
    %cst = arith.constant dense<0.000000e+00> : vector<8x8x8xf32>
    %6 = tpu.matmul %1, %3, %cst {dimension_numbers = #tpu.dot_dimension_numbers<[2], [2], [1], [1], [0, 0, 0, 1, 1, 1], [0], [0]>} : vector<8x8x4xbf16>, vector<8x8x4xbf16>, vector<8x8x8xf32> -> vector<8x8x8xf32>
    "tpu.trace_stop"() : () -> ()
    %cst_11 = arith.constant 5.000000e-01 : f32
    %7 = vector.broadcast %cst_11 : f32 to vector<8x8x8xf32>
    %8 = arith.mulf %6, %7 : vector<8x8x8xf32>
    %9 = tpu.iota {dimensions = array<i32: 0>} : vector<8x8xi32>
    %10 = tpu.iota {dimensions = array<i32: 1>} : vector<8x8xi32>
    %11 = arith.cmpi sgt, %10, %9 : vector<8x8xi32>
    %c0_12 = arith.constant 0 : index
    %c0_13 = arith.constant 0 : index
    %c0_14 = arith.constant 0 : index
    %12 = vector.load %arg4[%c0_12, %c0_13, %c0_14] : memref<1x1x8xi32, #tpu.memory_space<vmem>>, vector<1x1x8xi32>
    %13 = vector.shape_cast %12 : vector<1x1x8xi32> to vector<1x8xi32>
    %c0_i32 = arith.constant 0 : i32
    %14 = vector.broadcast %c0_i32 : i32 to vector<1x8xi32>
    %15 = arith.cmpi sgt, %13, %14 : vector<1x8xi32>
    %16 = vector.broadcast %15 : vector<1x8xi1> to vector<8x8xi1>
    %17 = arith.ori %11, %16 : vector<8x8xi1>
    %18 = vector.shape_cast %17 : vector<8x8xi1> to vector<1x8x8xi1>
    %cst_15 = arith.constant -9.99999984E+17 : f32
    %19 = vector.shape_cast %18 : vector<1x8x8xi1> to vector<1x8x8xi1>
    %20 = vector.broadcast %19 : vector<1x8x8xi1> to vector<8x8x8xi1>
    %21 = vector.broadcast %cst_15 : f32 to vector<8x8x8xf32>
    %22 = arith.select %20, %21, %8 : vector<8x8x8xi1>, vector<8x8x8xf32>
    %cst_16 = arith.constant dense<0xFF800000> : vector<8x8xf32>
    %23 = vector.multi_reduction <maximumf>, %22, %cst_16 [2] : vector<8x8x8xf32> to vector<8x8xf32>
    %24 = vector.shape_cast %23 : vector<8x8xf32> to vector<8x8x1xf32>
    %25 = vector.broadcast %24 : vector<8x8x1xf32> to vector<8x8x8xf32>
    %26 = arith.subf %22, %25 : vector<8x8x8xf32>
    %27 = math.exp %26 : vector<8x8x8xf32>
    %cst_17 = arith.constant dense<0.000000e+00> : vector<8x8xf32>
    %28 = vector.multi_reduction <add>, %27, %cst_17 [2] : vector<8x8x8xf32> to vector<8x8xf32>
    %29 = vector.shape_cast %28 : vector<8x8xf32> to vector<8x8x1xf32>
    %30 = vector.broadcast %29 : vector<8x8x1xf32> to vector<8x8x8xf32>
    %31 = arith.divf %27, %30 : vector<8x8x8xf32>
    %32 = arith.truncf %31 : vector<8x8x8xf32> to vector<8x8x8xbf16>
    "tpu.trace_start"() <{level = 10 : i32, message = "hqk,hkd->hqd"}> : () -> ()
    %cst_18 = arith.constant dense<0.000000e+00> : vector<8x8x4xf32>
    %33 = tpu.matmul %32, %5, %cst_18 {dimension_numbers = #tpu.dot_dimension_numbers<[2], [1], [1], [2], [0, 0, 0, 1, 1, 2], [0], [0]>} : vector<8x8x8xbf16>, vector<8x8x4xbf16>, vector<8x8x4xf32> -> vector<8x8x4xf32>
    "tpu.trace_stop"() : () -> ()
    %34 = arith.truncf %33 : vector<8x8x4xf32> to vector<8x8x4xbf16>
    %c0_19 = arith.constant 0 : index
    %c0_20 = arith.constant 0 : index
    %c0_21 = arith.constant 0 : index
    %c0_22 = arith.constant 0 : index
    %35 = vector.load %arg5[%c0_19, %c0_20, %c0_21, %c0_22] : memref<1x8x8x4xbf16, #tpu.memory_space<vmem>>, vector<1x8x8x4xbf16>
    %36 = vector.shape_cast %35 : vector<1x8x8x4xbf16> to vector<8x8x4xbf16>
    %37 = vector.shape_cast %34 : vector<8x8x4xbf16> to vector<1x8x8x4xbf16>
    tpu.vector_store %arg5[%c0_19, %c0_20, %c0_21, %c0_22], %37 {strides = array<i32>} : memref<1x8x8x4xbf16, #tpu.memory_space<vmem>>, vector<1x8x8x4xbf16>,
    return
  }
  func.func @transform_0(%arg0: i32) -> (i32, i32, i32, i32) {
    %c0_i32 = arith.constant 0 : i32
    %c0_i32_0 = arith.constant 0 : i32
    %c0_i32_1 = arith.constant 0 : i32
    %c0_i32_2 = arith.constant 0 : i32
    return %arg0, %c0_i32, %c0_i32_0, %c0_i32_1 : i32, i32, i32, i32
  }
  func.func @transform_1(%arg0: i32) -> (i32, i32, i32, i32) {
    %c0_i32 = arith.constant 0 : i32
    %c0_i32_0 = arith.constant 0 : i32
    %c0_i32_1 = arith.constant 0 : i32
    %c0_i32_2 = arith.constant 0 : i32
    return %arg0, %c0_i32, %c0_i32_0, %c0_i32_1 : i32, i32, i32, i32
  }
  func.func @transform_2(%arg0: i32) -> (i32, i32, i32, i32) {
    %c0_i32 = arith.constant 0 : i32
    %c0_i32_0 = arith.constant 0 : i32
    %c0_i32_1 = arith.constant 0 : i32
    %c0_i32_2 = arith.constant 0 : i32
    return %arg0, %c0_i32, %c0_i32_0, %c0_i32_1 : i32, i32, i32, i32
  }
  func.func @transform_3(%arg0: i32) -> (i32, i32, i32) {
    %c0_i32 = arith.constant 0 : i32
    %c0_i32_0 = arith.constant 0 : i32
    %c0_i32_1 = arith.constant 0 : i32
    return %arg0, %c0_i32, %c0_i32_0 : i32, i32, i32
  }
  func.func @transform_4(%arg0: i32) -> (i32, i32, i32, i32) {
    %c0_i32 = arith.constant 0 : i32
    %c0_i32_0 = arith.constant 0 : i32
    %c0_i32_1 = arith.constant 0 : i32
    %c0_i32_2 = arith.constant 0 : i32
    return %arg0, %c0_i32, %c0_i32_0, %c0_i32_1 : i32, i32, i32, i32
  }
}

module attributes {stable_mosaic.version = 11 : i64} {
  func.func @_proj_res_ln_kernel(%arg0: i32, %arg1: memref<16x32xbf16, #tpu.memory_space<vmem>>, %arg2: memref<16x32xf32, #tpu.memory_space<vmem>>, %arg3: memref<32x32xbf16, #tpu.memory_space<vmem>>, %arg4: memref<1x32xf32, #tpu.memory_space<vmem>>, %arg5: memref<1x32xf32, #tpu.memory_space<vmem>>, %arg6: memref<1x32xf32, #tpu.memory_space<vmem>>, %arg7: memref<32x32xbf16, #tpu.memory_space<vmem>>, %arg8: memref<32x32xbf16, #tpu.memory_space<vmem>>, %arg9: memref<16x32xf32, #tpu.memory_space<vmem>>, %arg10: memref<16x32xf32, #tpu.memory_space<vmem>>, %arg11: memref<16x32xbf16, #tpu.memory_space<vmem>>, %arg12: memref<16x32xbf16, #tpu.memory_space<vmem>>) attributes {dimension_semantics = [#tpu.dimension_semantics<parallel>], iteration_bounds = array<i64: 1>, scalar_prefetch = 0 : i64, scratch_operands = 0 : i64, tpu.core_type = #tpu.core_type<tc>, window_params = [{transform_indices = @transform_0, window_bounds = array<i64: 16, 32>}, {transform_indices = @transform_1, window_bounds = array<i64: 16, 32>}, {pipeline_mode = #tpu.pipeline_mode<synchronous>, transform_indices = @transform_2, window_bounds = array<i64: 32, 32>}, {pipeline_mode = #tpu.pipeline_mode<synchronous>, transform_indices = @transform_3, window_bounds = array<i64: 1, 32>}, {pipeline_mode = #tpu.pipeline_mode<synchronous>, transform_indices = @transform_4, window_bounds = array<i64: 1, 32>}, {pipeline_mode = #tpu.pipeline_mode<synchronous>, transform_indices = @transform_5, window_bounds = array<i64: 1, 32>}, {pipeline_mode = #tpu.pipeline_mode<synchronous>, transform_indices = @transform_6, window_bounds = array<i64: 32, 32>}, {pipeline_mode = #tpu.pipeline_mode<synchronous>, transform_indices = @transform_7, window_bounds = array<i64: 32, 32>}, {transform_indices = @transform_8, window_bounds = array<i64: 16, 32>}, {transform_indices = @transform_9, window_bounds = array<i64: 16, 32>}, {transform_indices = @transform_10, window_bounds = array<i64: 16, 32>}, {transform_indices = @transform_11, window_bounds = array<i64: 16, 32>}]} {
    %c0 = arith.constant 0 : index
    %c0_0 = arith.constant 0 : index
    %0 = vector.load %arg1[%c0, %c0_0] : memref<16x32xbf16, #tpu.memory_space<vmem>>, vector<16x32xbf16>
    %c0_1 = arith.constant 0 : index
    %c0_2 = arith.constant 0 : index
    %1 = vector.load %arg3[%c0_1, %c0_2] : memref<32x32xbf16, #tpu.memory_space<vmem>>, vector<32x32xbf16>
    %cst = arith.constant dense<0.000000e+00> : vector<16x32xf32>
    %2 = tpu.matmul %0, %1, %cst {dimension_numbers = #tpu.dot_dimension_numbers<[1], [0], [0], [1], [0, 0, 1, 1], [], []>} : vector<16x32xbf16>, vector<32x32xbf16>, vector<16x32xf32> -> vector<16x32xf32>
    %c0_3 = arith.constant 0 : index
    %c0_4 = arith.constant 0 : index
    %3 = vector.load %arg4[%c0_3, %c0_4] : memref<1x32xf32, #tpu.memory_space<vmem>>, vector<1x32xf32>
    %4 = vector.broadcast %3 : vector<1x32xf32> to vector<16x32xf32>
    %5 = arith.addf %2, %4 : vector<16x32xf32>
    %c0_5 = arith.constant 0 : index
    %c0_6 = arith.constant 0 : index
    %6 = vector.load %arg2[%c0_5, %c0_6] : memref<16x32xf32, #tpu.memory_space<vmem>>, vector<16x32xf32>
    %7 = arith.addf %5, %6 : vector<16x32xf32>
    %c0_7 = arith.constant 0 : index
    %c0_8 = arith.constant 0 : index
    %8 = vector.load %arg9[%c0_7, %c0_8] : memref<16x32xf32, #tpu.memory_space<vmem>>, vector<16x32xf32>
    tpu.vector_store %arg9[%c0_7, %c0_8], %7 {strides = array<i32>} : memref<16x32xf32, #tpu.memory_space<vmem>>, vector<16x32xf32>,
    %cst_9 = arith.constant dense<0.000000e+00> : vector<16xf32>
    %9 = vector.multi_reduction <add>, %7, %cst_9 [1] : vector<16x32xf32> to vector<16xf32>
    %10 = vector.shape_cast %9 : vector<16xf32> to vector<16x1xf32>
    %cst_10 = arith.constant 3.200000e+01 : f32
    %11 = vector.broadcast %cst_10 : f32 to vector<16x1xf32>
    %12 = arith.divf %10, %11 : vector<16x1xf32>
    %13 = vector.broadcast %12 : vector<16x1xf32> to vector<16x32xf32>
    %14 = arith.subf %7, %13 : vector<16x32xf32>
    %15 = arith.mulf %14, %14 : vector<16x32xf32>
    %cst_11 = arith.constant dense<0.000000e+00> : vector<16xf32>
    %16 = vector.multi_reduction <add>, %15, %cst_11 [1] : vector<16x32xf32> to vector<16xf32>
    %17 = vector.shape_cast %16 : vector<16xf32> to vector<16x1xf32>
    %cst_12 = arith.constant 3.200000e+01 : f32
    %18 = vector.broadcast %cst_12 : f32 to vector<16x1xf32>
    %19 = arith.divf %17, %18 : vector<16x1xf32>
    %20 = vector.broadcast %12 : vector<16x1xf32> to vector<16x32xf32>
    %21 = arith.subf %7, %20 : vector<16x32xf32>
    %cst_13 = arith.constant 9.99999997E-7 : f32
    %22 = vector.broadcast %cst_13 : f32 to vector<16x1xf32>
    %23 = arith.addf %19, %22 : vector<16x1xf32>
    %24 = math.rsqrt %23 : vector<16x1xf32>
    %25 = vector.broadcast %24 : vector<16x1xf32> to vector<16x32xf32>
    %26 = arith.mulf %21, %25 : vector<16x32xf32>
    %c0_14 = arith.constant 0 : index
    %c0_15 = arith.constant 0 : index
    %27 = vector.load %arg5[%c0_14, %c0_15] : memref<1x32xf32, #tpu.memory_space<vmem>>, vector<1x32xf32>
    %28 = vector.broadcast %27 : vector<1x32xf32> to vector<16x32xf32>
    %29 = arith.mulf %26, %28 : vector<16x32xf32>
    %c0_16 = arith.constant 0 : index
    %c0_17 = arith.constant 0 : index
    %30 = vector.load %arg6[%c0_16, %c0_17] : memref<1x32xf32, #tpu.memory_space<vmem>>, vector<1x32xf32>
    %31 = vector.broadcast %30 : vector<1x32xf32> to vector<16x32xf32>
    %32 = arith.addf %29, %31 : vector<16x32xf32>
    %c0_18 = arith.constant 0 : index
    %c0_19 = arith.constant 0 : index
    %33 = vector.load %arg10[%c0_18, %c0_19] : memref<16x32xf32, #tpu.memory_space<vmem>>, vector<16x32xf32>
    tpu.vector_store %arg10[%c0_18, %c0_19], %32 {strides = array<i32>} : memref<16x32xf32, #tpu.memory_space<vmem>>, vector<16x32xf32>,
    %34 = arith.truncf %32 : vector<16x32xf32> to vector<16x32xbf16>
    %c0_20 = arith.constant 0 : index
    %c0_21 = arith.constant 0 : index
    %35 = vector.load %arg7[%c0_20, %c0_21] : memref<32x32xbf16, #tpu.memory_space<vmem>>, vector<32x32xbf16>
    %cst_22 = arith.constant dense<0.000000e+00> : vector<16x32xf32>
    %36 = tpu.matmul %34, %35, %cst_22 {dimension_numbers = #tpu.dot_dimension_numbers<[1], [0], [0], [1], [0, 0, 1, 1], [], []>} : vector<16x32xbf16>, vector<32x32xbf16>, vector<16x32xf32> -> vector<16x32xf32>
    %37 = arith.truncf %36 : vector<16x32xf32> to vector<16x32xbf16>
    %c0_23 = arith.constant 0 : index
    %c0_24 = arith.constant 0 : index
    %38 = vector.load %arg11[%c0_23, %c0_24] : memref<16x32xbf16, #tpu.memory_space<vmem>>, vector<16x32xbf16>
    tpu.vector_store %arg11[%c0_23, %c0_24], %37 {strides = array<i32>} : memref<16x32xbf16, #tpu.memory_space<vmem>>, vector<16x32xbf16>,
    %c0_25 = arith.constant 0 : index
    %c0_26 = arith.constant 0 : index
    %39 = vector.load %arg8[%c0_25, %c0_26] : memref<32x32xbf16, #tpu.memory_space<vmem>>, vector<32x32xbf16>
    %cst_27 = arith.constant dense<0.000000e+00> : vector<16x32xf32>
    %40 = tpu.matmul %34, %39, %cst_27 {dimension_numbers = #tpu.dot_dimension_numbers<[1], [0], [0], [1], [0, 0, 1, 1], [], []>} : vector<16x32xbf16>, vector<32x32xbf16>, vector<16x32xf32> -> vector<16x32xf32>
    %41 = arith.truncf %40 : vector<16x32xf32> to vector<16x32xbf16>
    %c0_28 = arith.constant 0 : index
    %c0_29 = arith.constant 0 : index
    %42 = vector.load %arg12[%c0_28, %c0_29] : memref<16x32xbf16, #tpu.memory_space<vmem>>, vector<16x32xbf16>
    tpu.vector_store %arg12[%c0_28, %c0_29], %41 {strides = array<i32>} : memref<16x32xbf16, #tpu.memory_space<vmem>>, vector<16x32xbf16>,
    return
  }
  func.func @transform_0(%arg0: i32) -> (i32, i32) {
    %c0_i32 = arith.constant 0 : i32
    %c0_i32_0 = arith.constant 0 : i32
    return %arg0, %c0_i32 : i32, i32
  }
  func.func @transform_1(%arg0: i32) -> (i32, i32) {
    %c0_i32 = arith.constant 0 : i32
    %c0_i32_0 = arith.constant 0 : i32
    return %arg0, %c0_i32 : i32, i32
  }
  func.func @transform_2(%arg0: i32) -> (i32, i32) {
    %c0_i32 = arith.constant 0 : i32
    %c0_i32_0 = arith.constant 0 : i32
    %c0_i32_1 = arith.constant 0 : i32
    return %c0_i32, %c0_i32_0 : i32, i32
  }
  func.func @transform_3(%arg0: i32) -> (i32, i32) {
    %c0_i32 = arith.constant 0 : i32
    %c0_i32_0 = arith.constant 0 : i32
    %c0_i32_1 = arith.constant 0 : i32
    return %c0_i32, %c0_i32_0 : i32, i32
  }
  func.func @transform_4(%arg0: i32) -> (i32, i32) {
    %c0_i32 = arith.constant 0 : i32
    %c0_i32_0 = arith.constant 0 : i32
    %c0_i32_1 = arith.constant 0 : i32
    return %c0_i32, %c0_i32_0 : i32, i32
  }
  func.func @transform_5(%arg0: i32) -> (i32, i32) {
    %c0_i32 = arith.constant 0 : i32
    %c0_i32_0 = arith.constant 0 : i32
    %c0_i32_1 = arith.constant 0 : i32
    return %c0_i32, %c0_i32_0 : i32, i32
  }
  func.func @transform_6(%arg0: i32) -> (i32, i32) {
    %c0_i32 = arith.constant 0 : i32
    %c0_i32_0 = arith.constant 0 : i32
    %c0_i32_1 = arith.constant 0 : i32
    return %c0_i32, %c0_i32_0 : i32, i32
  }
  func.func @transform_7(%arg0: i32) -> (i32, i32) {
    %c0_i32 = arith.constant 0 : i32
    %c0_i32_0 = arith.constant 0 : i32
    %c0_i32_1 = arith.constant 0 : i32
    return %c0_i32, %c0_i32_0 : i32, i32
  }
  func.func @transform_8(%arg0: i32) -> (i32, i32) {
    %c0_i32 = arith.constant 0 : i32
    %c0_i32_0 = arith.constant 0 : i32
    return %arg0, %c0_i32 : i32, i32
  }
  func.func @transform_9(%arg0: i32) -> (i32, i32) {
    %c0_i32 = arith.constant 0 : i32
    %c0_i32_0 = arith.constant 0 : i32
    return %arg0, %c0_i32 : i32, i32
  }
  func.func @transform_10(%arg0: i32) -> (i32, i32) {
    %c0_i32 = arith.constant 0 : i32
    %c0_i32_0 = arith.constant 0 : i32
    return %arg0, %c0_i32 : i32, i32
  }
  func.func @transform_11(%arg0: i32) -> (i32, i32) {
    %c0_i32 = arith.constant 0 : i32
    %c0_i32_0 = arith.constant 0 : i32
    return %arg0, %c0_i32 : i32, i32
  }
}

module attributes {stable_mosaic.version = 11 : i64} {
  func.func @_attn_scores_kernel(%arg0: i32, %arg1: memref<1x8x32xbf16, #tpu.memory_space<vmem>>, %arg2: memref<1x13x32xbf16, #tpu.memory_space<vmem>>, %arg3: memref<1x8x13xf32, #tpu.memory_space<vmem>>) attributes {dimension_semantics = [#tpu.dimension_semantics<parallel>], iteration_bounds = array<i64: 2>, scalar_prefetch = 0 : i64, scratch_operands = 0 : i64, tpu.core_type = #tpu.core_type<tc>, window_params = [{transform_indices = @transform_0, window_bounds = array<i64: 1, 8, 32>}, {transform_indices = @transform_1, window_bounds = array<i64: 1, 13, 32>}, {transform_indices = @transform_2, window_bounds = array<i64: 1, 8, 13>}]} {
    %c0 = arith.constant 0 : index
    %c0_0 = arith.constant 0 : index
    %c0_1 = arith.constant 0 : index
    %0 = vector.load %arg1[%c0, %c0_0, %c0_1] : memref<1x8x32xbf16, #tpu.memory_space<vmem>>, vector<1x8x32xbf16>
    %1 = vector.shape_cast %0 : vector<1x8x32xbf16> to vector<8x32xbf16>
    %c0_2 = arith.constant 0 : index
    %c0_3 = arith.constant 0 : index
    %c0_4 = arith.constant 0 : index
    %2 = vector.load %arg2[%c0_2, %c0_3, %c0_4] : memref<1x13x32xbf16, #tpu.memory_space<vmem>>, vector<1x13x32xbf16>
    %3 = vector.shape_cast %2 : vector<1x13x32xbf16> to vector<13x32xbf16>
    %cst = arith.constant dense<0.000000e+00> : vector<8x13xf32>
    %4 = tpu.matmul %1, %3, %cst {dimension_numbers = #tpu.dot_dimension_numbers<[1], [1], [0], [0], [0, 0, 1, 0], [], []>} : vector<8x32xbf16>, vector<13x32xbf16>, vector<8x13xf32> -> vector<8x13xf32>
    %cst_5 = arith.constant dense<0xFF800000> : vector<8xf32>
    %5 = vector.multi_reduction <maximumf>, %4, %cst_5 [1] : vector<8x13xf32> to vector<8xf32>
    %6 = vector.shape_cast %5 : vector<8xf32> to vector<8x1xf32>
    %7 = vector.broadcast %6 : vector<8x1xf32> to vector<8x13xf32>
    %8 = arith.subf %4, %7 : vector<8x13xf32>
    %9 = math.exp %8 : vector<8x13xf32>
    %cst_6 = arith.constant dense<0.000000e+00> : vector<8xf32>
    %10 = vector.multi_reduction <add>, %9, %cst_6 [1] : vector<8x13xf32> to vector<8xf32>
    %11 = vector.shape_cast %10 : vector<8xf32> to vector<8x1xf32>
    %12 = vector.broadcast %11 : vector<8x1xf32> to vector<8x13xf32>
    %13 = arith.divf %9, %12 : vector<8x13xf32>
    %c0_7 = arith.constant 0 : index
    %c0_8 = arith.constant 0 : index
    %c0_9 = arith.constant 0 : index
    %14 = vector.load %arg3[%c0_7, %c0_8, %c0_9] : memref<1x8x13xf32, #tpu.memory_space<vmem>>, vector<1x8x13xf32>
    %15 = vector.shape_cast %14 : vector<1x8x13xf32> to vector<8x13xf32>
    %16 = vector.shape_cast %13 : vector<8x13xf32> to vector<1x8x13xf32>
    tpu.vector_store %arg3[%c0_7, %c0_8, %c0_9], %16 {strides = array<i32>} : memref<1x8x13xf32, #tpu.memory_space<vmem>>, vector<1x8x13xf32>,
    return
  }
  func.func @transform_0(%arg0: i32) -> (i32, i32, i32) {
    %c0_i32 = arith.constant 0 : i32
    %c0_i32_0 = arith.constant 0 : i32
    %c0_i32_1 = arith.constant 0 : i32
    return %arg0, %c0_i32, %c0_i32_0 : i32, i32, i32
  }
  func.func @transform_1(%arg0: i32) -> (i32, i32, i32) {
    %c0_i32 = arith.constant 0 : i32
    %c0_i32_0 = arith.constant 0 : i32
    %c0_i32_1 = arith.constant 0 : i32
    return %arg0, %c0_i32, %c0_i32_0 : i32, i32, i32
  }
  func.func @transform_2(%arg0: i32) -> (i32, i32, i32) {
    %c0_i32 = arith.constant 0 : i32
    %c0_i32_0 = arith.constant 0 : i32
    %c0_i32_1 = arith.constant 0 : i32
    return %arg0, %c0_i32, %c0_i32_0 : i32, i32, i32
  }
}

module attributes {stable_mosaic.version = 11 : i64} {
  func.func @_attn_scores_kernel(%arg0: i32, %arg1: i32, %arg2: memref<1x8x32xbf16, #tpu.memory_space<vmem>>, %arg3: memref<1x1x5x32xbf16, #tpu.memory_space<vmem>>, %arg4: memref<1x1x8x5xf32, #tpu.memory_space<vmem>>) attributes {dimension_semantics = [#tpu.dimension_semantics<parallel>, #tpu.dimension_semantics<parallel>], iteration_bounds = array<i64: 2, 4>, scalar_prefetch = 0 : i64, scratch_operands = 0 : i64, tpu.core_type = #tpu.core_type<tc>, window_params = [{transform_indices = @transform_0, window_bounds = array<i64: 1, 8, 32>}, {transform_indices = @transform_1, window_bounds = array<i64: 1, 1, 5, 32>}, {transform_indices = @transform_2, window_bounds = array<i64: 1, 1, 8, 5>}]} {
    %c0 = arith.constant 0 : index
    %c0_0 = arith.constant 0 : index
    %c0_1 = arith.constant 0 : index
    %0 = vector.load %arg2[%c0, %c0_0, %c0_1] : memref<1x8x32xbf16, #tpu.memory_space<vmem>>, vector<1x8x32xbf16>
    %1 = vector.shape_cast %0 : vector<1x8x32xbf16> to vector<8x32xbf16>
    %c0_2 = arith.constant 0 : index
    %c0_3 = arith.constant 0 : index
    %c0_4 = arith.constant 0 : index
    %c0_5 = arith.constant 0 : index
    %2 = vector.load %arg3[%c0_2, %c0_3, %c0_4, %c0_5] : memref<1x1x5x32xbf16, #tpu.memory_space<vmem>>, vector<1x1x5x32xbf16>
    %3 = vector.shape_cast %2 : vector<1x1x5x32xbf16> to vector<5x32xbf16>
    %cst = arith.constant dense<0.000000e+00> : vector<8x5xf32>
    %4 = tpu.matmul %1, %3, %cst {dimension_numbers = #tpu.dot_dimension_numbers<[1], [1], [0], [0], [0, 0, 1, 0], [], []>} : vector<8x32xbf16>, vector<5x32xbf16>, vector<8x5xf32> -> vector<8x5xf32>
    %cst_6 = arith.constant dense<0xFF800000> : vector<8xf32>
    %5 = vector.multi_reduction <maximumf>, %4, %cst_6 [1] : vector<8x5xf32> to vector<8xf32>
    %6 = vector.shape_cast %5 : vector<8xf32> to vector<8x1xf32>
    %7 = vector.broadcast %6 : vector<8x1xf32> to vector<8x5xf32>
    %8 = arith.subf %4, %7 : vector<8x5xf32>
    %9 = math.exp %8 : vector<8x5xf32>
    %cst_7 = arith.constant dense<0.000000e+00> : vector<8xf32>
    %10 = vector.multi_reduction <add>, %9, %cst_7 [1] : vector<8x5xf32> to vector<8xf32>
    %11 = vector.shape_cast %10 : vector<8xf32> to vector<8x1xf32>
    %12 = vector.broadcast %11 : vector<8x1xf32> to vector<8x5xf32>
    %13 = arith.divf %9, %12 : vector<8x5xf32>
    %c0_8 = arith.constant 0 : index
    %c0_9 = arith.constant 0 : index
    %c0_10 = arith.constant 0 : index
    %c0_11 = arith.constant 0 : index
    %14 = vector.load %arg4[%c0_8, %c0_9, %c0_10, %c0_11] : memref<1x1x8x5xf32, #tpu.memory_space<vmem>>, vector<1x1x8x5xf32>
    %15 = vector.shape_cast %14 : vector<1x1x8x5xf32> to vector<8x5xf32>
    %16 = vector.shape_cast %13 : vector<8x5xf32> to vector<1x1x8x5xf32>
    tpu.vector_store %arg4[%c0_8, %c0_9, %c0_10, %c0_11], %16 {strides = array<i32>} : memref<1x1x8x5xf32, #tpu.memory_space<vmem>>, vector<1x1x8x5xf32>,
    return
  }
  func.func @transform_0(%arg0: i32, %arg1: i32) -> (i32, i32, i32) {
    %c0_i32 = arith.constant 0 : i32
    %c0_i32_0 = arith.constant 0 : i32
    %c0_i32_1 = arith.constant 0 : i32
    return %arg0, %c0_i32, %c0_i32_0 : i32, i32, i32
  }
  func.func @transform_1(%arg0: i32, %arg1: i32) -> (i32, i32, i32, i32) {
    %c0_i32 = arith.constant 0 : i32
    %c0_i32_0 = arith.constant 0 : i32
    %c0_i32_1 = arith.constant 0 : i32
    return %arg0, %arg1, %c0_i32, %c0_i32_0 : i32, i32, i32, i32
  }
  func.func @transform_2(%arg0: i32, %arg1: i32) -> (i32, i32, i32, i32) {
    %c0_i32 = arith.constant 0 : i32
    %c0_i32_0 = arith.constant 0 : i32
    %c0_i32_1 = arith.constant 0 : i32
    return %arg0, %arg1, %c0_i32, %c0_i32_0 : i32, i32, i32, i32
  }
}

module attributes {stable_mosaic.version = 11 : i64} {
  func.func @_attn_scores_kernel(%arg0: i32, %arg1: i32, %arg2: memref<1x8x32xbf16, #tpu.memory_space<vmem>>, %arg3: memref<1x1x3x32xbf16, #tpu.memory_space<vmem>>, %arg4: memref<1x1x8x3xf32, #tpu.memory_space<vmem>>) attributes {dimension_semantics = [#tpu.dimension_semantics<parallel>, #tpu.dimension_semantics<parallel>], iteration_bounds = array<i64: 2, 2>, scalar_prefetch = 0 : i64, scratch_operands = 0 : i64, tpu.core_type = #tpu.core_type<tc>, window_params = [{transform_indices = @transform_0, window_bounds = array<i64: 1, 8, 32>}, {transform_indices = @transform_1, window_bounds = array<i64: 1, 1, 3, 32>}, {transform_indices = @transform_2, window_bounds = array<i64: 1, 1, 8, 3>}]} {
    %c0 = arith.constant 0 : index
    %c0_0 = arith.constant 0 : index
    %c0_1 = arith.constant 0 : index
    %0 = vector.load %arg2[%c0, %c0_0, %c0_1] : memref<1x8x32xbf16, #tpu.memory_space<vmem>>, vector<1x8x32xbf16>
    %1 = vector.shape_cast %0 : vector<1x8x32xbf16> to vector<8x32xbf16>
    %c0_2 = arith.constant 0 : index
    %c0_3 = arith.constant 0 : index
    %c0_4 = arith.constant 0 : index
    %c0_5 = arith.constant 0 : index
    %2 = vector.load %arg3[%c0_2, %c0_3, %c0_4, %c0_5] : memref<1x1x3x32xbf16, #tpu.memory_space<vmem>>, vector<1x1x3x32xbf16>
    %3 = vector.shape_cast %2 : vector<1x1x3x32xbf16> to vector<3x32xbf16>
    %cst = arith.constant dense<0.000000e+00> : vector<8x3xf32>
    %4 = tpu.matmul %1, %3, %cst {dimension_numbers = #tpu.dot_dimension_numbers<[1], [1], [0], [0], [0, 0, 1, 0], [], []>} : vector<8x32xbf16>, vector<3x32xbf16>, vector<8x3xf32> -> vector<8x3xf32>
    %cst_6 = arith.constant dense<0xFF800000> : vector<8xf32>
    %5 = vector.multi_reduction <maximumf>, %4, %cst_6 [1] : vector<8x3xf32> to vector<8xf32>
    %6 = vector.shape_cast %5 : vector<8xf32> to vector<8x1xf32>
    %7 = vector.broadcast %6 : vector<8x1xf32> to vector<8x3xf32>
    %8 = arith.subf %4, %7 : vector<8x3xf32>
    %9 = math.exp %8 : vector<8x3xf32>
    %cst_7 = arith.constant dense<0.000000e+00> : vector<8xf32>
    %10 = vector.multi_reduction <add>, %9, %cst_7 [1] : vector<8x3xf32> to vector<8xf32>
    %11 = vector.shape_cast %10 : vector<8xf32> to vector<8x1xf32>
    %12 = vector.broadcast %11 : vector<8x1xf32> to vector<8x3xf32>
    %13 = arith.divf %9, %12 : vector<8x3xf32>
    %c0_8 = arith.constant 0 : index
    %c0_9 = arith.constant 0 : index
    %c0_10 = arith.constant 0 : index
    %c0_11 = arith.constant 0 : index
    %14 = vector.load %arg4[%c0_8, %c0_9, %c0_10, %c0_11] : memref<1x1x8x3xf32, #tpu.memory_space<vmem>>, vector<1x1x8x3xf32>
    %15 = vector.shape_cast %14 : vector<1x1x8x3xf32> to vector<8x3xf32>
    %16 = vector.shape_cast %13 : vector<8x3xf32> to vector<1x1x8x3xf32>
    tpu.vector_store %arg4[%c0_8, %c0_9, %c0_10, %c0_11], %16 {strides = array<i32>} : memref<1x1x8x3xf32, #tpu.memory_space<vmem>>, vector<1x1x8x3xf32>,
    return
  }
  func.func @transform_0(%arg0: i32, %arg1: i32) -> (i32, i32, i32) {
    %c0_i32 = arith.constant 0 : i32
    %c0_i32_0 = arith.constant 0 : i32
    %c0_i32_1 = arith.constant 0 : i32
    return %arg0, %c0_i32, %c0_i32_0 : i32, i32, i32
  }
  func.func @transform_1(%arg0: i32, %arg1: i32) -> (i32, i32, i32, i32) {
    %c0_i32 = arith.constant 0 : i32
    %c0_i32_0 = arith.constant 0 : i32
    %c0_i32_1 = arith.constant 0 : i32
    return %arg0, %arg1, %c0_i32, %c0_i32_0 : i32, i32, i32, i32
  }
  func.func @transform_2(%arg0: i32, %arg1: i32) -> (i32, i32, i32, i32) {
    %c0_i32 = arith.constant 0 : i32
    %c0_i32_0 = arith.constant 0 : i32
    %c0_i32_1 = arith.constant 0 : i32
    return %arg0, %arg1, %c0_i32, %c0_i32_0 : i32, i32, i32, i32
  }
}

module attributes {stable_mosaic.version = 11 : i64} {
  func.func @_glob_attn_align_kernel(%arg0: i32, %arg1: memref<1x8x32xf32, #tpu.memory_space<vmem>>, %arg2: memref<1x49x32xbf16, #tpu.memory_space<vmem>>, %arg3: memref<1x8x49xf32, #tpu.memory_space<vmem>>, %arg4: memref<32x32xbf16, #tpu.memory_space<vmem>>, %arg5: memref<32x32xbf16, #tpu.memory_space<vmem>>, %arg6: memref<1x8x32xf32, #tpu.memory_space<vmem>>) attributes {dimension_semantics = [#tpu.dimension_semantics<parallel>], iteration_bounds = array<i64: 2>, scalar_prefetch = 0 : i64, scratch_operands = 0 : i64, tpu.core_type = #tpu.core_type<tc>, window_params = [{transform_indices = @transform_0, window_bounds = array<i64: 1, 8, 32>}, {transform_indices = @transform_1, window_bounds = array<i64: 1, 49, 32>}, {transform_indices = @transform_2, window_bounds = array<i64: 1, 8, 49>}, {pipeline_mode = #tpu.pipeline_mode<synchronous>, transform_indices = @transform_3, window_bounds = array<i64: 32, 32>}, {pipeline_mode = #tpu.pipeline_mode<synchronous>, transform_indices = @transform_4, window_bounds = array<i64: 32, 32>}, {transform_indices = @transform_5, window_bounds = array<i64: 1, 8, 32>}]} {
    %c0 = arith.constant 0 : index
    %c0_0 = arith.constant 0 : index
    %c0_1 = arith.constant 0 : index
    %0 = vector.load %arg3[%c0, %c0_0, %c0_1] : memref<1x8x49xf32, #tpu.memory_space<vmem>>, vector<1x8x49xf32>
    %1 = vector.shape_cast %0 : vector<1x8x49xf32> to vector<8x49xf32>
    %2 = arith.truncf %1 : vector<8x49xf32> to vector<8x49xbf16>
    %c0_2 = arith.constant 0 : index
    %c0_3 = arith.constant 0 : index
    %c0_4 = arith.constant 0 : index
    %3 = vector.load %arg2[%c0_2, %c0_3, %c0_4] : memref<1x49x32xbf16, #tpu.memory_space<vmem>>, vector<1x49x32xbf16>
    %4 = vector.shape_cast %3 : vector<1x49x32xbf16> to vector<49x32xbf16>
    %cst = arith.constant dense<0.000000e+00> : vector<8x32xf32>
    %5 = tpu.matmul %2, %4, %cst {dimension_numbers = #tpu.dot_dimension_numbers<[1], [0], [0], [1], [0, 0, 1, 1], [], []>} : vector<8x49xbf16>, vector<49x32xbf16>, vector<8x32xf32> -> vector<8x32xf32>
    %6 = arith.truncf %5 : vector<8x32xf32> to vector<8x32xbf16>
    %c0_5 = arith.constant 0 : index
    %c0_6 = arith.constant 0 : index
    %7 = vector.load %arg4[%c0_5, %c0_6] : memref<32x32xbf16, #tpu.memory_space<vmem>>, vector<32x32xbf16>
    %cst_7 = arith.constant dense<0.000000e+00> : vector<8x32xf32>
    %8 = tpu.matmul %6, %7, %cst_7 {dimension_numbers = #tpu.dot_dimension_numbers<[1], [0], [0], [1], [0, 0, 1, 1], [], []>} : vector<8x32xbf16>, vector<32x32xbf16>, vector<8x32xf32> -> vector<8x32xf32>
    %c0_8 = arith.constant 0 : index
    %c0_9 = arith.constant 0 : index
    %c0_10 = arith.constant 0 : index
    %9 = vector.load %arg1[%c0_8, %c0_9, %c0_10] : memref<1x8x32xf32, #tpu.memory_space<vmem>>, vector<1x8x32xf32>
    %10 = vector.shape_cast %9 : vector<1x8x32xf32> to vector<8x32xf32>
    %11 = arith.truncf %10 : vector<8x32xf32> to vector<8x32xbf16>
    %c0_11 = arith.constant 0 : index
    %c0_12 = arith.constant 0 : index
    %12 = vector.load %arg5[%c0_11, %c0_12] : memref<32x32xbf16, #tpu.memory_space<vmem>>, vector<32x32xbf16>
    %cst_13 = arith.constant dense<0.000000e+00> : vector<8x32xf32>
    %13 = tpu.matmul %11, %12, %cst_13 {dimension_numbers = #tpu.dot_dimension_numbers<[1], [0], [0], [1], [0, 0, 1, 1], [], []>} : vector<8x32xbf16>, vector<32x32xbf16>, vector<8x32xf32> -> vector<8x32xf32>
    %14 = arith.addf %8, %13 : vector<8x32xf32>
    %15 = math.tanh %14 : vector<8x32xf32>
    %c0_14 = arith.constant 0 : index
    %c0_15 = arith.constant 0 : index
    %c0_16 = arith.constant 0 : index
    %16 = vector.load %arg6[%c0_14, %c0_15, %c0_16] : memref<1x8x32xf32, #tpu.memory_space<vmem>>, vector<1x8x32xf32>
    %17 = vector.shape_cast %16 : vector<1x8x32xf32> to vector<8x32xf32>
    %18 = vector.shape_cast %15 : vector<8x32xf32> to vector<1x8x32xf32>
    tpu.vector_store %arg6[%c0_14, %c0_15, %c0_16], %18 {strides = array<i32>} : memref<1x8x32xf32, #tpu.memory_space<vmem>>, vector<1x8x32xf32>,
    return
  }
  func.func @transform_0(%arg0: i32) -> (i32, i32, i32) {
    %c0_i32 = arith.constant 0 : i32
    %c0_i32_0 = arith.constant 0 : i32
    %c0_i32_1 = arith.constant 0 : i32
    return %arg0, %c0_i32, %c0_i32_0 : i32, i32, i32
  }
  func.func @transform_1(%arg0: i32) -> (i32, i32, i32) {
    %c0_i32 = arith.constant 0 : i32
    %c0_i32_0 = arith.constant 0 : i32
    %c0_i32_1 = arith.constant 0 : i32
    return %arg0, %c0_i32, %c0_i32_0 : i32, i32, i32
  }
  func.func @transform_2(%arg0: i32) -> (i32, i32, i32) {
    %c0_i32 = arith.constant 0 : i32
    %c0_i32_0 = arith.constant 0 : i32
    %c0_i32_1 = arith.constant 0 : i32
    return %arg0, %c0_i32, %c0_i32_0 : i32, i32, i32
  }
  func.func @transform_3(%arg0: i32) -> (i32, i32) {
    %c0_i32 = arith.constant 0 : i32
    %c0_i32_0 = arith.constant 0 : i32
    %c0_i32_1 = arith.constant 0 : i32
    return %c0_i32, %c0_i32_0 : i32, i32
  }
  func.func @transform_4(%arg0: i32) -> (i32, i32) {
    %c0_i32 = arith.constant 0 : i32
    %c0_i32_0 = arith.constant 0 : i32
    %c0_i32_1 = arith.constant 0 : i32
    return %c0_i32, %c0_i32_0 : i32, i32
  }
  func.func @transform_5(%arg0: i32) -> (i32, i32, i32) {
    %c0_i32 = arith.constant 0 : i32
    %c0_i32_0 = arith.constant 0 : i32
    %c0_i32_1 = arith.constant 0 : i32
    return %arg0, %c0_i32, %c0_i32_0 : i32, i32, i32
  }
}

module attributes {stable_mosaic.version = 11 : i64} {
  func.func @_ffn_kernel(%arg0: i32, %arg1: memref<16x32xf32, #tpu.memory_space<vmem>>, %arg2: memref<16x32xf32, #tpu.memory_space<vmem>>, %arg3: memref<1x32xf32, #tpu.memory_space<vmem>>, %arg4: memref<1x32xf32, #tpu.memory_space<vmem>>, %arg5: memref<32x64xbf16, #tpu.memory_space<vmem>>, %arg6: memref<1x64xf32, #tpu.memory_space<vmem>>, %arg7: memref<64x32xbf16, #tpu.memory_space<vmem>>, %arg8: memref<1x32xf32, #tpu.memory_space<vmem>>, %arg9: memref<16x32xf32, #tpu.memory_space<vmem>>) attributes {dimension_semantics = [#tpu.dimension_semantics<parallel>], iteration_bounds = array<i64: 1>, scalar_prefetch = 0 : i64, scratch_operands = 0 : i64, tpu.core_type = #tpu.core_type<tc>, window_params = [{transform_indices = @transform_0, window_bounds = array<i64: 16, 32>}, {transform_indices = @transform_1, window_bounds = array<i64: 16, 32>}, {pipeline_mode = #tpu.pipeline_mode<synchronous>, transform_indices = @transform_2, window_bounds = array<i64: 1, 32>}, {pipeline_mode = #tpu.pipeline_mode<synchronous>, transform_indices = @transform_3, window_bounds = array<i64: 1, 32>}, {pipeline_mode = #tpu.pipeline_mode<synchronous>, transform_indices = @transform_4, window_bounds = array<i64: 32, 64>}, {pipeline_mode = #tpu.pipeline_mode<synchronous>, transform_indices = @transform_5, window_bounds = array<i64: 1, 64>}, {pipeline_mode = #tpu.pipeline_mode<synchronous>, transform_indices = @transform_6, window_bounds = array<i64: 64, 32>}, {pipeline_mode = #tpu.pipeline_mode<synchronous>, transform_indices = @transform_7, window_bounds = array<i64: 1, 32>}, {transform_indices = @transform_8, window_bounds = array<i64: 16, 32>}]} {
    %c0 = arith.constant 0 : index
    %c0_0 = arith.constant 0 : index
    %0 = vector.load %arg1[%c0, %c0_0] : memref<16x32xf32, #tpu.memory_space<vmem>>, vector<16x32xf32>
    %c0_1 = arith.constant 0 : index
    %c0_2 = arith.constant 0 : index
    %1 = vector.load %arg2[%c0_1, %c0_2] : memref<16x32xf32, #tpu.memory_space<vmem>>, vector<16x32xf32>
    %2 = arith.addf %0, %1 : vector<16x32xf32>
    %cst = arith.constant dense<0.000000e+00> : vector<16xf32>
    %3 = vector.multi_reduction <add>, %2, %cst [1] : vector<16x32xf32> to vector<16xf32>
    %4 = vector.shape_cast %3 : vector<16xf32> to vector<16x1xf32>
    %cst_3 = arith.constant 3.200000e+01 : f32
    %5 = vector.broadcast %cst_3 : f32 to vector<16x1xf32>
    %6 = arith.divf %4, %5 : vector<16x1xf32>
    %7 = vector.broadcast %6 : vector<16x1xf32> to vector<16x32xf32>
    %8 = arith.subf %2, %7 : vector<16x32xf32>
    %9 = arith.mulf %8, %8 : vector<16x32xf32>
    %cst_4 = arith.constant dense<0.000000e+00> : vector<16xf32>
    %10 = vector.multi_reduction <add>, %9, %cst_4 [1] : vector<16x32xf32> to vector<16xf32>
    %11 = vector.shape_cast %10 : vector<16xf32> to vector<16x1xf32>
    %cst_5 = arith.constant 3.200000e+01 : f32
    %12 = vector.broadcast %cst_5 : f32 to vector<16x1xf32>
    %13 = arith.divf %11, %12 : vector<16x1xf32>
    %14 = vector.broadcast %6 : vector<16x1xf32> to vector<16x32xf32>
    %15 = arith.subf %2, %14 : vector<16x32xf32>
    %cst_6 = arith.constant 9.99999997E-7 : f32
    %16 = vector.broadcast %cst_6 : f32 to vector<16x1xf32>
    %17 = arith.addf %13, %16 : vector<16x1xf32>
    %18 = math.rsqrt %17 : vector<16x1xf32>
    %19 = vector.broadcast %18 : vector<16x1xf32> to vector<16x32xf32>
    %20 = arith.mulf %15, %19 : vector<16x32xf32>
    %c0_7 = arith.constant 0 : index
    %c0_8 = arith.constant 0 : index
    %21 = vector.load %arg3[%c0_7, %c0_8] : memref<1x32xf32, #tpu.memory_space<vmem>>, vector<1x32xf32>
    %22 = vector.broadcast %21 : vector<1x32xf32> to vector<16x32xf32>
    %23 = arith.mulf %20, %22 : vector<16x32xf32>
    %c0_9 = arith.constant 0 : index
    %c0_10 = arith.constant 0 : index
    %24 = vector.load %arg4[%c0_9, %c0_10] : memref<1x32xf32, #tpu.memory_space<vmem>>, vector<1x32xf32>
    %25 = vector.broadcast %24 : vector<1x32xf32> to vector<16x32xf32>
    %26 = arith.addf %23, %25 : vector<16x32xf32>
    %27 = arith.truncf %26 : vector<16x32xf32> to vector<16x32xbf16>
    %c0_11 = arith.constant 0 : index
    %c0_12 = arith.constant 0 : index
    %28 = vector.load %arg5[%c0_11, %c0_12] : memref<32x64xbf16, #tpu.memory_space<vmem>>, vector<32x64xbf16>
    %cst_13 = arith.constant dense<0.000000e+00> : vector<16x64xf32>
    %29 = tpu.matmul %27, %28, %cst_13 {dimension_numbers = #tpu.dot_dimension_numbers<[1], [0], [0], [1], [0, 0, 1, 1], [], []>} : vector<16x32xbf16>, vector<32x64xbf16>, vector<16x64xf32> -> vector<16x64xf32>
    %c0_14 = arith.constant 0 : index
    %c0_15 = arith.constant 0 : index
    %30 = vector.load %arg6[%c0_14, %c0_15] : memref<1x64xf32, #tpu.memory_space<vmem>>, vector<1x64xf32>
    %31 = vector.broadcast %30 : vector<1x64xf32> to vector<16x64xf32>
    %32 = arith.addf %29, %31 : vector<16x64xf32>
    %cst_16 = arith.constant 0.000000e+00 : f32
    %33 = vector.broadcast %cst_16 : f32 to vector<16x64xf32>
    %34 = arith.maximumf %32, %33 : vector<16x64xf32>
    %35 = arith.truncf %34 : vector<16x64xf32> to vector<16x64xbf16>
    %c0_17 = arith.constant 0 : index
    %c0_18 = arith.constant 0 : index
    %36 = vector.load %arg7[%c0_17, %c0_18] : memref<64x32xbf16, #tpu.memory_space<vmem>>, vector<64x32xbf16>
    %cst_19 = arith.constant dense<0.000000e+00> : vector<16x32xf32>
    %37 = tpu.matmul %35, %36, %cst_19 {dimension_numbers = #tpu.dot_dimension_numbers<[1], [0], [0], [1], [0, 0, 1, 1], [], []>} : vector<16x64xbf16>, vector<64x32xbf16>, vector<16x32xf32> -> vector<16x32xf32>
    %c0_20 = arith.constant 0 : index
    %c0_21 = arith.constant 0 : index
    %38 = vector.load %arg8[%c0_20, %c0_21] : memref<1x32xf32, #tpu.memory_space<vmem>>, vector<1x32xf32>
    %39 = vector.broadcast %38 : vector<1x32xf32> to vector<16x32xf32>
    %40 = arith.addf %37, %39 : vector<16x32xf32>
    %41 = arith.addf %40, %2 : vector<16x32xf32>
    %c0_22 = arith.constant 0 : index
    %c0_23 = arith.constant 0 : index
    %42 = vector.load %arg9[%c0_22, %c0_23] : memref<16x32xf32, #tpu.memory_space<vmem>>, vector<16x32xf32>
    tpu.vector_store %arg9[%c0_22, %c0_23], %41 {strides = array<i32>} : memref<16x32xf32, #tpu.memory_space<vmem>>, vector<16x32xf32>,
    return
  }
  func.func @transform_0(%arg0: i32) -> (i32, i32) {
    %c0_i32 = arith.constant 0 : i32
    %c0_i32_0 = arith.constant 0 : i32
    return %arg0, %c0_i32 : i32, i32
  }
  func.func @transform_1(%arg0: i32) -> (i32, i32) {
    %c0_i32 = arith.constant 0 : i32
    %c0_i32_0 = arith.constant 0 : i32
    return %arg0, %c0_i32 : i32, i32
  }
  func.func @transform_2(%arg0: i32) -> (i32, i32) {
    %c0_i32 = arith.constant 0 : i32
    %c0_i32_0 = arith.constant 0 : i32
    %c0_i32_1 = arith.constant 0 : i32
    return %c0_i32, %c0_i32_0 : i32, i32
  }
  func.func @transform_3(%arg0: i32) -> (i32, i32) {
    %c0_i32 = arith.constant 0 : i32
    %c0_i32_0 = arith.constant 0 : i32
    %c0_i32_1 = arith.constant 0 : i32
    return %c0_i32, %c0_i32_0 : i32, i32
  }
  func.func @transform_4(%arg0: i32) -> (i32, i32) {
    %c0_i32 = arith.constant 0 : i32
    %c0_i32_0 = arith.constant 0 : i32
    %c0_i32_1 = arith.constant 0 : i32
    return %c0_i32, %c0_i32_0 : i32, i32
  }
  func.func @transform_5(%arg0: i32) -> (i32, i32) {
    %c0_i32 = arith.constant 0 : i32
    %c0_i32_0 = arith.constant 0 : i32
    %c0_i32_1 = arith.constant 0 : i32
    return %c0_i32, %c0_i32_0 : i32, i32
  }
  func.func @transform_6(%arg0: i32) -> (i32, i32) {
    %c0_i32 = arith.constant 0 : i32
    %c0_i32_0 = arith.constant 0 : i32
    %c0_i32_1 = arith.constant 0 : i32
    return %c0_i32, %c0_i32_0 : i32, i32
  }
  func.func @transform_7(%arg0: i32) -> (i32, i32) {
    %c0_i32 = arith.constant 0 : i32
    %c0_i32_0 = arith.constant 0 : i32
    %c0_i32_1 = arith.constant 0 : i32
    return %c0_i32, %c0_i32_0 : i32, i32
  }
  func.func @transform_8(%arg0: i32) -> (i32, i32) {
    %c0_i32 = arith.constant 0 : i32
    %c0_i32_0 = arith.constant 0 : i32
    return %arg0, %c0_i32 : i32, i32
  }
}

</mosaic_0001>

<llo_original>
// kernel: transformer_decoder_layer.9
$region0: #{transformer_decoder_layer.9}
  #allocation0 [shape = 'u32[]', space=smem, size = 0x4, offset = 0x4, fixed_abs, tag = 'smem constant byte address 0x4 - core index']
  #allocation1 [shape = 'u32[144,128]{1,0:T(1,128)}', space=vmem, size = 0x12000, scoped, tag = 'internal scratch']
  %s0 = inlined_call_operand.vmem [shape: f32[16,32], index: 0, kind: input, shape index: {}]
  %s1 = inlined_call_operand.vmem [shape: f32[1,32], index: 1, kind: input, shape index: {}]
  %s2 = inlined_call_operand.vmem [shape: f32[1,32], index: 2, kind: input, shape index: {}]
  %s3 = inlined_call_operand.vmem [shape: bf16[32,96], index: 3, kind: input, shape index: {}]
  %s4 = inlined_call_operand.vmem [shape: f32[1,96], index: 4, kind: input, shape index: {}]
  %s5 = inlined_call_operand.hbm [shape: f32[16,32], index: 5, kind: output, shape index: {0}]
  %s6 = inlined_call_operand.vmem [shape: bf16[16,96], index: 6, kind: output, shape index: {1}]
  %7 = xla_tuple %s5, %s6
  %s8 = sld [smem:[#allocation0]]
  $region38: #{transformer_decoder_layer.9} parent=0
    _
  %s10 = ssub.s32 1, %s8
  %s11 = scalar_select 0, %s10, %s8
  $region1: #{transformer_decoder_layer.9} parent=0
    #allocation2 [shape = 'u8[8192]{0}', space=vmem, size = 0x2000, scoped, tag = 'output window, operand 0, single buffered']
    #allocation3 [shape = 's32[1]{0}', space=sflag, size = 0x4, scoped, tag = 'scoped memory for transformer_decoder_layer.9']
    %12 = vsyncpa [#allocation3], 0
    // Predicated region
    $region2: #{transformer_decoder_layer.9} parent=1 // pred_check
      _
    $region3: #{transformer_decoder_layer.9} parent=1 // pred_check_branch
      %14 = sbr.rel (0) target = $region5
    $region4: #{transformer_decoder_layer.9} parent=1 // pred_region
      _
    $region5: #{transformer_decoder_layer.9} parent=1 // pred_fallthru
      _
    // Predicated region
    $region6: #{transformer_decoder_layer.9} parent=1 // pred_check
      _
    $region7: #{transformer_decoder_layer.9} parent=1 // pred_check_branch
      %16 = sbr.rel (0) target = $region9
    $region8: #{transformer_decoder_layer.9} parent=1 // pred_region
      _
    $region9: #{transformer_decoder_layer.9} parent=1 // pred_fallthru
      _
    // Predicated region
    $region10: #{transformer_decoder_layer.9} parent=1 // pred_check
      _
    $region11: #{transformer_decoder_layer.9} parent=1 // pred_check_branch
      %18 = sbr.rel (0) target = $region13
    $region12: #{transformer_decoder_layer.9} parent=1 // pred_region
      _
    $region13: #{transformer_decoder_layer.9} parent=1 // pred_fallthru
      _
    // Predicated region
    $region14: #{transformer_decoder_layer.9} parent=1 // pred_check
      _
    $region15: #{transformer_decoder_layer.9} parent=1 // pred_check_branch
      %20 = sbr.rel (0) target = $region17
    $region16: #{transformer_decoder_layer.9} parent=1 // pred_region
      _
    $region17: #{transformer_decoder_layer.9} parent=1 // pred_fallthru
      _
    // Predicated region
    $region18: #{transformer_decoder_layer.9} parent=1 // pred_check
      _
    $region19: #{transformer_decoder_layer.9} parent=1 // pred_check_branch
      %22 = sbr.rel (0) target = $region21
    $region20: #{transformer_decoder_layer.9} parent=1 // pred_region
      _
    $region21: #{transformer_decoder_layer.9} parent=1 // pred_fallthru
      _
    %v24 = vld [vmem:[%s0] sm:$0xff]
    %v25 = vld [vmem:[%s0 + $0x8] sm:$0xff]
    %vm26 = vcmask 261120
    %v27 = vsel %vm26, %v24, 0.0
    %28 = vadd.xlane.f32.xlu0 %v27
    %v29 = vpop.xlane.xlu0 %28
    %v30 = vsel %vm26, %v25, 0.0
    %31 = vadd.xlane.f32.xlu0 %v30
    %v32 = vpop.xlane.xlu0 %31
    %v33 = vrcp.pop 32.0
    %v34 = vmul.f32 %v29, %v33
    %v35 = vmul.f32 %v32, %v33
    %v36 = vsub.f32 %v24, %v34
    %v37 = vsub.f32 %v25, %v35
    %v38 = vmul.f32 %v36, %v36
    %v39 = vmul.f32 %v37, %v37
    %v40 = vsel %vm26, %v38, 0.0
    %41 = vadd.xlane.f32.xlu0 %v40
    %v42 = vpop.xlane.xlu0 %41
    %v43 = vsel %vm26, %v39, 0.0
    %44 = vadd.xlane.f32.xlu0 %v43
    %v45 = vpop.xlane.xlu0 %44
    %v46 = vmul.f32 %v42, %v33
    %v47 = vmul.f32 %v45, %v33
    %v48 = vadd.f32 %v46, 1e-06
    %v49 = vadd.f32 %v47, 1e-06
    %v50 = vrsqrt.pop %v48
    %v51 = vrsqrt.pop %v49
    %v52 = vmul.f32 %v36, %v50
    %v53 = vmul.f32 %v37, %v51
    %v54 = vld [vmem:[%s1] sm:$0x1]
    %v56 = vlaneseq
    %v57 = vshrl.u32 %v56, 7
    %v58 = vsub.s32 0, %v57
    %v59 = vrot.slane %v54, %v58
    %v61 = vmul.f32 %v52, %v59
    %v62 = vmul.f32 %v53, %v59
    %v63 = vld [vmem:[%s2] sm:$0x1]
    %v65 = vlaneseq
    %v66 = vshrl.u32 %v65, 7
    %v67 = vsub.s32 0, %v66
    %v68 = vrot.slane %v63, %v67
    %v70 = vadd.f32 %v61, %v68
    %v71 = vadd.f32 %v62, %v68
    %72 = vst.msk [vmem:[#allocation2] sm:$0xff] %vm26, %v70
    %73 = vst.msk [vmem:[#allocation2 + $0x8] sm:$0xff] %vm26, %v71
    %v74 = vpack.c.bf16 %v71, %v70
    %v75 = vld [vmem:[%s3] sm:$0xf]
    %v76 = vld [vmem:[%s3 + $0x4] sm:$0xf]
    %v77 = vld [vmem:[%s3 + $0x8] sm:$0xf]
    %v78 = vld [vmem:[%s3 + $0xc] sm:$0xf]
    %v79 = vld [vmem:[%s4] sm:$0x1]
    %v81 = vlaneseq
    %v82 = vshrl.u32 %v81, 7
    %v83 = vsub.s32 0, %v82
    %v84 = vrot.slane %v79, %v83
    %v90 = vunpack.c.l.b16 %v75
    %v91 = vunpack.c.l.b16 %v76
    %v92 = vunpack.c.l.b16 %v77
    %v93 = vunpack.c.l.b16 %v78
    %v94 = vpack.c.b16 %v91, %v90
    %v95 = vpack.c.b16 %v93, %v92
    %v99 = vsel %vm26, %v74, 0
    %101 = vmatprep.subr.bf16.mxu0 0
    %102 = vmatpush1.bf16.msra.mxu0 0
    %103 = vmatprep.subr.bf16.mxu0 0
    %104 = vmatpush1.bf16.msra.mxu0 0
    %105 = vmatprep.subr.bf16.mxu0 0
    %106 = vmatpush1.bf16.msra.mxu0 0
    %107 = vmatprep.subr.bf16.mxu0 0
    %108 = vmatpush1.bf16.msra.mxu0 0
    %109 = vmatprep.subr.bf16.mxu0 0
    %110 = vmatpush1.bf16.msra.mxu0 0
    %111 = vmatprep.subr.bf16.mxu0 0
    %112 = vmatpush1.bf16.msra.mxu0 0
    %113 = vmatprep.subr.bf16.mxu0 0
    %114 = vmatpush1.bf16.msra.mxu0 %v95
    %115 = vmatprep.subr.bf16.mxu0 0
    %116 = vmatpush1.bf16.msra.mxu0 %v94
    %117 = vmatprep.subr.bf16.mxu0 0
    %118 = vmatpush2.bf16.msra.mxu0 0
    %119 = vmatprep.subr.bf16.mxu0 0
    %120 = vmatpush2.bf16.msra.mxu0 0
    %121 = vmatprep.subr.bf16.mxu0 0
    %122 = vmatpush2.bf16.msra.mxu0 0
    %123 = vmatprep.subr.bf16.mxu0 0
    %124 = vmatpush2.bf16.msra.mxu0 0
    %125 = vmatprep.subr.bf16.mxu0 0
    %126 = vmatpush2.bf16.msra.mxu0 0
    %127 = vmatprep.subr.bf16.mxu0 0
    %128 = vmatpush2.bf16.msra.mxu0 0
    %129 = vmatprep.subr.bf16.mxu0 0
    %130 = vmatpush2.bf16.msra.mxu0 0
    %131 = vmatprep.subr.bf16.mxu0 0
    %132 = vmatpush2.bf16.msra.mxu0 0
    %133 = vmatprep.mubr.bf16.mxu0 0
    %134 = vmatmul.mubr.bf16.gmra.mxu0 %v99
    %v135 = vpop.f32.mrf.mxu0
    %v136 = vadd.f32 %v84, %v135
    %v137 = vpop.f32.mrf.mxu0
    %v138 = vpop.f32.mrf.mxu0
    %v139 = vadd.f32 %v84, %v138
    %v140 = vpop.f32.mrf.mxu0
    %141 = vdwg.mxu0
    %v142 = vpack.c.bf16 %v139, %v136
    %v144 = vunpack.c.l.b16 %v142
    %v145 = vunpack.c.h.b16 %v142
    %v146 = vpack.c.b16 %v144, %v144
    %v147 = vpack.c.b16 %v145, %v145
    %vm150 = vcmask 781312
    %151 = vst.msk [vmem:[%s6] sm:$0xf] %vm150, %v146
    %152 = vst.msk [vmem:[%s6 + $0x4] sm:$0xf] %vm150, %v147
    // Predicated region
    $region22: #{transformer_decoder_layer.9} parent=1 // pred_check
      _
    $region23: #{transformer_decoder_layer.9} parent=1 // pred_check_branch
      %154 = sbr.rel (0) target = $region25
    $region24: #{transformer_decoder_layer.9} parent=1 // pred_region
      %s156 = ssub.s32 256, 256
      %157 = vsyncadd [#allocation3], %s156
      %s158 = sshll.u32 [#allocation2], 4
      %s159 = int_to_ptr.vmem [resolvable:$true] %s158
      %164 = dma.vmem_to_hbm [thread:$0]  %s159, 256, %s5, [#allocation3], 128, 128, 8
    $region25: #{transformer_decoder_layer.9} parent=1 // pred_fallthru
      _
    // Predicated region
    $region26: #{transformer_decoder_layer.9} parent=1 // pred_check
      _
    $region27: #{transformer_decoder_layer.9} parent=1 // pred_check_branch
      %166 = sbr.rel (0) target = $region29
    $region28: #{transformer_decoder_layer.9} parent=1 // pred_region
      _
    $region29: #{transformer_decoder_layer.9} parent=1 // pred_fallthru
      _
    // Predicated region
    $region30: #{transformer_decoder_layer.9} parent=1 // pred_check
      _
    $region31: #{transformer_decoder_layer.9} parent=1 // pred_check_branch
      %168 = sbr.rel (0) target = $region33
    $region32: #{transformer_decoder_layer.9} parent=1 // pred_region
      %169 = dma.done [#allocation3], 256
    $region33: #{transformer_decoder_layer.9} parent=1 // pred_fallthru
      _
    // Predicated region
    $region34: #{transformer_decoder_layer.9} parent=1 // pred_check
      _
    $region35: #{transformer_decoder_layer.9} parent=1 // pred_check_branch
      %171 = sbr.rel (0) target = $region37
    $region36: #{transformer_decoder_layer.9} parent=1 // pred_region
      _
    $region37: #{transformer_decoder_layer.9} parent=1 // pred_fallthru
      _
    %172 = vsyncpa [#allocation3], 1

// kernel: transformer_decoder_layer.11
$region0: #{transformer_decoder_layer.11}
  #allocation0 [shape = 'u32[]', space=smem, size = 0x4, offset = 0x4, fixed_abs, tag = 'smem constant byte address 0x4 - core index']
  #allocation1 [shape = 'u32[144,128]{1,0:T(1,128)}', space=vmem, size = 0x12000, scoped, tag = 'internal scratch']
  %s0 = inlined_call_operand.vmem [shape: bf16[16,32], index: 0, kind: input, shape index: {}]
  %s1 = inlined_call_operand.vmem [shape: f32[16,32], index: 1, kind: input, shape index: {}]
  %s2 = inlined_call_operand.vmem [shape: bf16[32,32], index: 2, kind: input, shape index: {}]
  %s3 = inlined_call_operand.vmem [shape: f32[1,32], index: 3, kind: input, shape index: {}]
  %s4 = inlined_call_operand.vmem [shape: f32[1,32], index: 4, kind: input, shape index: {}]
  %s5 = inlined_call_operand.vmem [shape: f32[1,32], index: 5, kind: input, shape index: {}]
  %s6 = inlined_call_operand.vmem [shape: bf16[32,32], index: 6, kind: input, shape index: {}]
  %s7 = inlined_call_operand.vmem [shape: bf16[32,32], index: 7, kind: input, shape index: {}]
  %s8 = inlined_call_operand.vmem [shape: f32[16,32], index: 8, kind: output, shape index: {0}]
  %s9 = inlined_call_operand.vmem [shape: f32[16,32], index: 9, kind: output, shape index: {1}]
  %s10 = inlined_call_operand.vmem [shape: bf16[16,32], index: 10, kind: output, shape index: {2}]
  %s11 = inlined_call_operand.vmem [shape: bf16[16,32], index: 11, kind: output, shape index: {3}]
  %12 = xla_tuple %s8, %s9, %s10, %s11
  %s13 = sld [smem:[#allocation0]]
  $region66: #{transformer_decoder_layer.11} parent=0
    _
  %s15 = ssub.s32 1, %s13
  %s16 = scalar_select 0, %s15, %s13
  // Predicated region
  $region2: #{transformer_decoder_layer.11} parent=0 // pred_check
    _
  $region3: #{transformer_decoder_layer.11} parent=0 // pred_check_branch
    %18 = sbr.rel (0) target = $region5
  $region4: #{transformer_decoder_layer.11} parent=0 // pred_region
    _
  $region5: #{transformer_decoder_layer.11} parent=0 // pred_fallthru
    _
  // Predicated region
  $region6: #{transformer_decoder_layer.11} parent=0 // pred_check
    _
  $region7: #{transformer_decoder_layer.11} parent=0 // pred_check_branch
    %20 = sbr.rel (0) target = $region9
  $region8: #{transformer_decoder_layer.11} parent=0 // pred_region
    _
  $region9: #{transformer_decoder_layer.11} parent=0 // pred_fallthru
    _
  // Predicated region
  $region10: #{transformer_decoder_layer.11} parent=0 // pred_check
    _
  $region11: #{transformer_decoder_layer.11} parent=0 // pred_check_branch
    %22 = sbr.rel (0) target = $region13
  $region12: #{transformer_decoder_layer.11} parent=0 // pred_region
    _
  $region13: #{transformer_decoder_layer.11} parent=0 // pred_fallthru
    _
  // Predicated region
  $region14: #{transformer_decoder_layer.11} parent=0 // pred_check
    _
  $region15: #{transformer_decoder_layer.11} parent=0 // pred_check_branch
    %24 = sbr.rel (0) target = $region17
  $region16: #{transformer_decoder_layer.11} parent=0 // pred_region
    _
  $region17: #{transformer_decoder_layer.11} parent=0 // pred_fallthru
    _
  // Predicated region
  $region18: #{transformer_decoder_layer.11} parent=0 // pred_check
    _
  $region19: #{transformer_decoder_layer.11} parent=0 // pred_check_branch
    %26 = sbr.rel (0) target = $region21
  $region20: #{transformer_decoder_layer.11} parent=0 // pred_region
    _
  $region21: #{transformer_decoder_layer.11} parent=0 // pred_fallthru
    _
  // Predicated region
  $region22: #{transformer_decoder_layer.11} parent=0 // pred_check
    _
  $region23: #{transformer_decoder_layer.11} parent=0 // pred_check_branch
    %28 = sbr.rel (0) target = $region25
  $region24: #{transformer_decoder_layer.11} parent=0 // pred_region
    _
  $region25: #{transformer_decoder_layer.11} parent=0 // pred_fallthru
    _
  // Predicated region
  $region26: #{transformer_decoder_layer.11} parent=0 // pred_check
    _
  $region27: #{transformer_decoder_layer.11} parent=0 // pred_check_branch
    %30 = sbr.rel (0) target = $region29
  $region28: #{transformer_decoder_layer.11} parent=0 // pred_region
    _
  $region29: #{transformer_decoder_layer.11} parent=0 // pred_fallthru
    _
  // Predicated region
  $region30: #{transformer_decoder_layer.11} parent=0 // pred_check
    _
  $region31: #{transformer_decoder_layer.11} parent=0 // pred_check_branch
    %32 = sbr.rel (0) target = $region33
  $region32: #{transformer_decoder_layer.11} parent=0 // pred_region
    _
  $region33: #{transformer_decoder_layer.11} parent=0 // pred_fallthru
    _
  %v34 = vld [vmem:[%s0] sm:$0xf]
  %v35 = vld [vmem:[%s0 + $0x4] sm:$0xf]
  %v36 = vld [vmem:[%s2] sm:$0xf]
  %v37 = vld [vmem:[%s2 + $0x4] sm:$0xf]
  %v38 = vld [vmem:[%s2 + $0x8] sm:$0xf]
  %v39 = vld [vmem:[%s2 + $0xc] sm:$0xf]
  %v40 = vld [vmem:[%s3] sm:$0x1]
  %v42 = vlaneseq
  %v43 = vshrl.u32 %v42, 7
  %v44 = vsub.s32 0, %v43
  %v45 = vrot.slane %v40, %v44
  %v49 = vunpack.c.l.b16 %v34
  %v50 = vunpack.c.l.b16 %v35
  %v51 = vpack.c.b16 %v50, %v49
  %v56 = vunpack.c.l.b16 %v36
  %v57 = vunpack.c.l.b16 %v37
  %v58 = vunpack.c.l.b16 %v38
  %v59 = vunpack.c.l.b16 %v39
  %v60 = vpack.c.b16 %v57, %v56
  %v61 = vpack.c.b16 %v59, %v58
  %vm64 = vcmask 261120
  %v66 = vsel %vm64, %v51, 0
  %68 = vmatprep.subr.bf16.mxu0 0
  %69 = vmatpush1.bf16.msra.mxu0 0
  %70 = vmatprep.subr.bf16.mxu0 0
  %71 = vmatpush1.bf16.msra.mxu0 0
  %72 = vmatprep.subr.bf16.mxu0 0
  %73 = vmatpush1.bf16.msra.mxu0 0
  %74 = vmatprep.subr.bf16.mxu0 0
  %75 = vmatpush1.bf16.msra.mxu0 0
  %76 = vmatprep.subr.bf16.mxu0 0
  %77 = vmatpush1.bf16.msra.mxu0 0
  %78 = vmatprep.subr.bf16.mxu0 0
  %79 = vmatpush1.bf16.msra.mxu0 0
  %80 = vmatprep.subr.bf16.mxu0 0
  %81 = vmatpush1.bf16.msra.mxu0 %v61
  %82 = vmatprep.subr.bf16.mxu0 0
  %83 = vmatpush1.bf16.msra.mxu0 %v60
  %84 = vmatprep.subr.bf16.mxu0 0
  %85 = vmatpush2.bf16.msra.mxu0 0
  %86 = vmatprep.subr.bf16.mxu0 0
  %87 = vmatpush2.bf16.msra.mxu0 0
  %88 = vmatprep.subr.bf16.mxu0 0
  %89 = vmatpush2.bf16.msra.mxu0 0
  %90 = vmatprep.subr.bf16.mxu0 0
  %91 = vmatpush2.bf16.msra.mxu0 0
  %92 = vmatprep.subr.bf16.mxu0 0
  %93 = vmatpush2.bf16.msra.mxu0 0
  %94 = vmatprep.subr.bf16.mxu0 0
  %95 = vmatpush2.bf16.msra.mxu0 0
  %96 = vmatprep.subr.bf16.mxu0 0
  %97 = vmatpush2.bf16.msra.mxu0 0
  %98 = vmatprep.subr.bf16.mxu0 0
  %99 = vmatpush2.bf16.msra.mxu0 0
  %100 = vmatprep.mubr.bf16.mxu0 0
  %101 = vmatmul.mubr.bf16.gmra.mxu0 %v66
  %v102 = vpop.f32.mrf.mxu0
  %v103 = vadd.f32 %v45, %v102
  %v104 = vpop.f32.mrf.mxu0
  %v105 = vpop.f32.mrf.mxu0
  %v106 = vadd.f32 %v45, %v105
  %v107 = vpop.f32.mrf.mxu0
  %108 = vdwg.mxu0
  %v109 = vld [vmem:[%s1] sm:$0xff]
  %v110 = vld [vmem:[%s1 + $0x8] sm:$0xff]
  %v111 = vadd.f32 %v103, %v109
  %v112 = vadd.f32 %v106, %v110
  %113 = vst.msk [vmem:[%s8] sm:$0xff] %vm64, %v111
  %114 = vst.msk [vmem:[%s8 + $0x8] sm:$0xff] %vm64, %v112
  %v115 = vsel %vm64, %v111, 0.0
  %116 = vadd.xlane.f32.xlu0 %v115
  %v117 = vpop.xlane.xlu0 %116
  %v118 = vsel %vm64, %v112, 0.0
  %119 = vadd.xlane.f32.xlu0 %v118
  %v120 = vpop.xlane.xlu0 %119
  %v121 = vrcp.pop 32.0
  %v122 = vmul.f32 %v117, %v121
  %v123 = vmul.f32 %v120, %v121
  %v124 = vsub.f32 %v111, %v122
  %v125 = vsub.f32 %v112, %v123
  %v126 = vmul.f32 %v124, %v124
  %v127 = vmul.f32 %v125, %v125
  %v128 = vsel %vm64, %v126, 0.0
  %129 = vadd.xlane.f32.xlu0 %v128
  %v130 = vpop.xlane.xlu0 %129
  %v131 = vsel %vm64, %v127, 0.0
  %132 = vadd.xlane.f32.xlu0 %v131
  %v133 = vpop.xlane.xlu0 %132
  %v134 = vmul.f32 %v130, %v121
  %v135 = vmul.f32 %v133, %v121
  %v136 = vadd.f32 %v134, 1e-06
  %v137 = vadd.f32 %v135, 1e-06
  %v138 = vrsqrt.pop %v136
  %v139 = vrsqrt.pop %v137
  %v140 = vmul.f32 %v124, %v138
  %v141 = vmul.f32 %v125, %v139
  %v142 = vld [vmem:[%s4] sm:$0x1]
  %v144 = vlaneseq
  %v145 = vshrl.u32 %v144, 7
  %v146 = vsub.s32 0, %v145
  %v147 = vrot.slane %v142, %v146
  %v149 = vmul.f32 %v140, %v147
  %v150 = vmul.f32 %v141, %v147
  %v151 = vld [vmem:[%s5] sm:$0x1]
  %v153 = vlaneseq
  %v154 = vshrl.u32 %v153, 7
  %v155 = vsub.s32 0, %v154
  %v156 = vrot.slane %v151, %v155
  %v158 = vadd.f32 %v149, %v156
  %v159 = vadd.f32 %v150, %v156
  %160 = vst.msk [vmem:[%s9] sm:$0xff] %vm64, %v158
  %161 = vst.msk [vmem:[%s9 + $0x8] sm:$0xff] %vm64, %v159
  %v162 = vpack.c.bf16 %v159, %v158
  %v163 = vld [vmem:[%s6] sm:$0xf]
  %v164 = vld [vmem:[%s6 + $0x4] sm:$0xf]
  %v165 = vld [vmem:[%s6 + $0x8] sm:$0xf]
  %v166 = vld [vmem:[%s6 + $0xc] sm:$0xf]
  %v171 = vunpack.c.l.b16 %v163
  %v172 = vunpack.c.l.b16 %v164
  %v173 = vunpack.c.l.b16 %v165
  %v174 = vunpack.c.l.b16 %v166
  %v175 = vpack.c.b16 %v172, %v171
  %v176 = vpack.c.b16 %v174, %v173
  %v180 = vsel %vm64, %v162, 0
  %182 = vmatprep.subr.bf16.mxu0 0
  %183 = vmatpush1.bf16.msra.mxu0 0
  %184 = vmatprep.subr.bf16.mxu0 0
  %185 = vmatpush1.bf16.msra.mxu0 0
  %186 = vmatprep.subr.bf16.mxu0 0
  %187 = vmatpush1.bf16.msra.mxu0 0
  %188 = vmatprep.subr.bf16.mxu0 0
  %189 = vmatpush1.bf16.msra.mxu0 0
  %190 = vmatprep.subr.bf16.mxu0 0
  %191 = vmatpush1.bf16.msra.mxu0 0
  %192 = vmatprep.subr.bf16.mxu0 0
  %193 = vmatpush1.bf16.msra.mxu0 0
  %194 = vmatprep.subr.bf16.mxu0 0
  %195 = vmatpush1.bf16.msra.mxu0 %v176
  %196 = vmatprep.subr.bf16.mxu0 0
  %197 = vmatpush1.bf16.msra.mxu0 %v175
  %198 = vmatprep.subr.bf16.mxu0 0
  %199 = vmatpush2.bf16.msra.mxu0 0
  %200 = vmatprep.subr.bf16.mxu0 0
  %201 = vmatpush2.bf16.msra.mxu0 0
  %202 = vmatprep.subr.bf16.mxu0 0
  %203 = vmatpush2.bf16.msra.mxu0 0
  %204 = vmatprep.subr.bf16.mxu0 0
  %205 = vmatpush2.bf16.msra.mxu0 0
  %206 = vmatprep.subr.bf16.mxu0 0
  %207 = vmatpush2.bf16.msra.mxu0 0
  %208 = vmatprep.subr.bf16.mxu0 0
  %209 = vmatpush2.bf16.msra.mxu0 0
  %210 = vmatprep.subr.bf16.mxu0 0
  %211 = vmatpush2.bf16.msra.mxu0 0
  %212 = vmatprep.subr.bf16.mxu0 0
  %213 = vmatpush2.bf16.msra.mxu0 0
  %214 = vmatprep.mubr.bf16.mxu0 0
  %215 = vmatmul.mubr.bf16.gmra.mxu0 %v180
  %v216 = vpop.f32.mrf.mxu0
  %v217 = vadd.f32 0.0, %v216
  %v218 = vpop.f32.mrf.mxu0
  %v219 = vpop.f32.mrf.mxu0
  %v220 = vadd.f32 0.0, %v219
  %v221 = vpop.f32.mrf.mxu0
  %222 = vdwg.mxu0
  %v223 = vpack.c.bf16 %v220, %v217
  %v225 = vunpack.c.l.b16 %v223
  %v226 = vunpack.c.h.b16 %v223
  %v227 = vpack.c.b16 %v225, %v225
  %v228 = vpack.c.b16 %v226, %v226
  %vm231 = vcmask 257024
  %232 = vst.msk [vmem:[%s10] sm:$0xf] %vm231, %v227
  %233 = vst.msk [vmem:[%s10 + $0x4] sm:$0xf] %vm231, %v228
  %v234 = vld [vmem:[%s7] sm:$0xf]
  %v235 = vld [vmem:[%s7 + $0x4] sm:$0xf]
  %v236 = vld [vmem:[%s7 + $0x8] sm:$0xf]
  %v237 = vld [vmem:[%s7 + $0xc] sm:$0xf]
  %v242 = vunpack.c.l.b16 %v234
  %v243 = vunpack.c.l.b16 %v235
  %v244 = vunpack.c.l.b16 %v236
  %v245 = vunpack.c.l.b16 %v237
  %v246 = vpack.c.b16 %v243, %v242
  %v247 = vpack.c.b16 %v245, %v244
  %250 = vmatprep.subr.bf16.mxu0 0
  %251 = vmatpush1.bf16.msra.mxu0 0
  %252 = vmatprep.subr.bf16.mxu0 0
  %253 = vmatpush1.bf16.msra.mxu0 0
  %254 = vmatprep.subr.bf16.mxu0 0
  %255 = vmatpush1.bf16.msra.mxu0 0
  %256 = vmatprep.subr.bf16.mxu0 0
  %257 = vmatpush1.bf16.msra.mxu0 0
  %258 = vmatprep.subr.bf16.mxu0 0
  %259 = vmatpush1.bf16.msra.mxu0 0
  %260 = vmatprep.subr.bf16.mxu0 0
  %261 = vmatpush1.bf16.msra.mxu0 0
  %262 = vmatprep.subr.bf16.mxu0 0
  %263 = vmatpush1.bf16.msra.mxu0 %v247
  %264 = vmatprep.subr.bf16.mxu0 0
  %265 = vmatpush1.bf16.msra.mxu0 %v246
  %266 = vmatprep.subr.bf16.mxu0 0
  %267 = vmatpush2.bf16.msra.mxu0 0
  %268 = vmatprep.subr.bf16.mxu0 0
  %269 = vmatpush2.bf16.msra.mxu0 0
  %270 = vmatprep.subr.bf16.mxu0 0
  %271 = vmatpush2.bf16.msra.mxu0 0
  %272 = vmatprep.subr.bf16.mxu0 0
  %273 = vmatpush2.bf16.msra.mxu0 0
  %274 = vmatprep.subr.bf16.mxu0 0
  %275 = vmatpush2.bf16.msra.mxu0 0
  %276 = vmatprep.subr.bf16.mxu0 0
  %277 = vmatpush2.bf16.msra.mxu0 0
  %278 = vmatprep.subr.bf16.mxu0 0
  %279 = vmatpush2.bf16.msra.mxu0 0
  %280 = vmatprep.subr.bf16.mxu0 0
  %281 = vmatpush2.bf16.msra.mxu0 0
  %282 = vmatprep.mubr.bf16.mxu0 0
  %283 = vmatmul.mubr.bf16.gmra.mxu0 %v180
  %v284 = vpop.f32.mrf.mxu0
  %v285 = vadd.f32 0.0, %v284
  %v286 = vpop.f32.mrf.mxu0
  %v287 = vpop.f32.mrf.mxu0
  %v288 = vadd.f32 0.0, %v287
  %v289 = vpop.f32.mrf.mxu0
  %290 = vdwg.mxu0
  %v291 = vpack.c.bf16 %v288, %v285
  %v293 = vunpack.c.l.b16 %v291
  %v294 = vunpack.c.h.b16 %v291
  %v295 = vpack.c.b16 %v293, %v293
  %v296 = vpack.c.b16 %v294, %v294
  %299 = vst.msk [vmem:[%s11] sm:$0xf] %vm231, %v295
  %300 = vst.msk [vmem:[%s11 + $0x4] sm:$0xf] %vm231, %v296
  // Predicated region
  $region34: #{transformer_decoder_layer.11} parent=0 // pred_check
    _
  $region35: #{transformer_decoder_layer.11} parent=0 // pred_check_branch
    %302 = sbr.rel (0) target = $region37
  $region36: #{transformer_decoder_layer.11} parent=0 // pred_region
    _
  $region37: #{transformer_decoder_layer.11} parent=0 // pred_fallthru
    _
  // Predicated region
  $region38: #{transformer_decoder_layer.11} parent=0 // pred_check
    _
  $region39: #{transformer_decoder_layer.11} parent=0 // pred_check_branch
    %304 = sbr.rel (0) target = $region41
  $region40: #{transformer_decoder_layer.11} parent=0 // pred_region
    _
  $region41: #{transformer_decoder_layer.11} parent=0 // pred_fallthru
    _
  // Predicated region
  $region42: #{transformer_decoder_layer.11} parent=0 // pred_check
    _
  $region43: #{transformer_decoder_layer.11} parent=0 // pred_check_branch
    %306 = sbr.rel (0) target = $region45
  $region44: #{transformer_decoder_layer.11} parent=0 // pred_region
    _
  $region45: #{transformer_decoder_layer.11} parent=0 // pred_fallthru
    _
  // Predicated region
  $region46: #{transformer_decoder_layer.11} parent=0 // pred_check
    _
  $region47: #{transformer_decoder_layer.11} parent=0 // pred_check_branch
    %308 = sbr.rel (0) target = $region49
  $region48: #{transformer_decoder_layer.11} parent=0 // pred_region
    _
  $region49: #{transformer_decoder_layer.11} parent=0 // pred_fallthru
    _
  // Predicated region
  $region50: #{transformer_decoder_layer.11} parent=0 // pred_check
    _
  $region51: #{transformer_decoder_layer.11} parent=0 // pred_check_branch
    %310 = sbr.rel (0) target = $region53
  $region52: #{transformer_decoder_layer.11} parent=0 // pred_region
    _
  $region53: #{transformer_decoder_layer.11} parent=0 // pred_fallthru
    _
  // Predicated region
  $region54: #{transformer_decoder_layer.11} parent=0 // pred_check
    _
  $region55: #{transformer_decoder_layer.11} parent=0 // pred_check_branch
    %312 = sbr.rel (0) target = $region57
  $region56: #{transformer_decoder_layer.11} parent=0 // pred_region
    _
  $region57: #{transformer_decoder_layer.11} parent=0 // pred_fallthru
    _
  // Predicated region
  $region58: #{transformer_decoder_layer.11} parent=0 // pred_check
    _
  $region59: #{transformer_decoder_layer.11} parent=0 // pred_check_branch
    %314 = sbr.rel (0) target = $region61
  $region60: #{transformer_decoder_layer.11} parent=0 // pred_region
    _
  $region61: #{transformer_decoder_layer.11} parent=0 // pred_fallthru
    _
  // Predicated region
  $region62: #{transformer_decoder_layer.11} parent=0 // pred_check
    _
  $region63: #{transformer_decoder_layer.11} parent=0 // pred_check_branch
    %316 = sbr.rel (0) target = $region65
  $region64: #{transformer_decoder_layer.11} parent=0 // pred_region
    _
  $region65: #{transformer_decoder_layer.11} parent=0 // pred_fallthru
    _

// kernel: transformer_decoder_layer.12
$region0: #{transformer_decoder_layer.12}
  #allocation0 [shape = 'u32[]', space=smem, size = 0x4, offset = 0x4, fixed_abs, tag = 'smem constant byte address 0x4 - core index']
  #allocation1 [shape = 'u32[144,128]{1,0:T(1,128)}', space=vmem, size = 0x12000, scoped, tag = 'internal scratch']
  %s0 = inlined_call_operand.vmem [shape: bf16[2,8,32], index: 0, kind: input, shape index: {}]
  %s1 = inlined_call_operand.vmem [shape: bf16[2,13,32], index: 1, kind: input, shape index: {}]
  %s2 = inlined_call_operand.vmem [shape: f32[2,8,13], index: 2, kind: output, shape index: {}]
  %s3 = sld [smem:[#allocation0]]
  $region41: #{transformer_decoder_layer.12} parent=0
    _
  %s5 = ssub.s32 1, %s3
  %s6 = scalar_select 0, %s5, %s3
  loop: start=0, step=1, limit=4
  $region2: #{transformer_decoder_layer.12} parent=0 // loop_pre_header
    _
  $region3: #{transformer_decoder_layer.12} parent=0 // loop_header
    %s8 = sphi 0, %s12
    %p9 = scmp.ge.s32.totalorder %s8, 4
    %s18 = sphi 0, %s20
    %s21 = sphi 0, %s18
    %s22 = sphi 0, %s21
    %s38 = sphi 0, %s22
    %s44 = sphi 0, %s46
    %s47 = sphi 0, %s44
    %s48 = sphi 0, %s47
    %s64 = sphi 0, %s48
    %s70 = sphi 0, %s72
    %s73 = sphi 0, %s70
    %s74 = sphi 0, %s73
    %s90 = sphi 0, %s74
  $region4: #{transformer_decoder_layer.12} parent=0 // loop_header_branch
    %11 = sbr.rel (%p9) target = $region8
  $region5: #{transformer_decoder_layer.12} parent=0 // loop_body
    %s13 = ssub.s32 %s8, 1
    %s14 = ssub.s32 %s8, 2
    %s15 = sadd.s32 %s8, 1
    %s16 = ssub.s32 %s8, %s15
    %p17 = scmp.eq.s32.totalorder %s16, 0
    %s19 = sadd.s32 %s18, 1
    %s20 = scalar_select %p17, %s18, %s19
    %p23 = pneg %p17
    %p24 = scmp.eq.s32.totalorder %s8, 1
    %p25 = por %p23, %p24
    %p26 = scmp.ne.s32.totalorder %s18, %s21
    %p27 = scmp.eq.s32.totalorder %s8, 0
    %p28 = por %p26, %p27
    %p29 = scmp.ne.s32.totalorder %s18, %s21
    %p30 = scmp.eq.s32.totalorder %s13, 1
    %p31 = por %p29, %p30
    %p32 = scmp.ne.s32.totalorder %s21, %s22
    %p33 = scmp.eq.s32.totalorder %s13, 0
    %p34 = por %p32, %p33
    %p35 = scmp.ne.s32.totalorder %s21, %s22
    %p36 = scmp.eq.s32.totalorder %s14, 1
    %p37 = por %p35, %p36
    %p39 = scmp.ne.s32.totalorder %s22, %s38
    %p40 = scmp.eq.s32.totalorder %s14, 0
    %p41 = por %p39, %p40
    %s42 = ssub.s32 %s8, %s15
    %p43 = scmp.eq.s32.totalorder %s42, 0
    %s45 = sadd.s32 %s44, 1
    %s46 = scalar_select %p43, %s44, %s45
    %p49 = pneg %p43
    %p50 = scmp.eq.s32.totalorder %s8, 1
    %p51 = por %p49, %p50
    %p52 = scmp.ne.s32.totalorder %s44, %s47
    %p53 = scmp.eq.s32.totalorder %s8, 0
    %p54 = por %p52, %p53
    %p55 = scmp.ne.s32.totalorder %s44, %s47
    %p56 = scmp.eq.s32.totalorder %s13, 1
    %p57 = por %p55, %p56
    %p58 = scmp.ne.s32.totalorder %s47, %s48
    %p59 = scmp.eq.s32.totalorder %s13, 0
    %p60 = por %p58, %p59
    %p61 = scmp.ne.s32.totalorder %s47, %s48
    %p62 = scmp.eq.s32.totalorder %s14, 1
    %p63 = por %p61, %p62
    %p65 = scmp.ne.s32.totalorder %s48, %s64
    %p66 = scmp.eq.s32.totalorder %s14, 0
    %p67 = por %p65, %p66
    %s68 = ssub.s32 %s8, %s15
    %p69 = scmp.eq.s32.totalorder %s68, 0
    %s71 = sadd.s32 %s70, 1
    %s72 = scalar_select %p69, %s70, %s71
    %p75 = pneg %p69
    %p76 = scmp.eq.s32.totalorder %s8, 1
    %p77 = por %p75, %p76
    %p78 = scmp.ne.s32.totalorder %s70, %s73
    %p79 = scmp.eq.s32.totalorder %s8, 0
    %p80 = por %p78, %p79
    %p81 = scmp.ne.s32.totalorder %s70, %s73
    %p82 = scmp.eq.s32.totalorder %s13, 1
    %p83 = por %p81, %p82
    %p84 = scmp.ne.s32.totalorder %s73, %s74
    %p85 = scmp.eq.s32.totalorder %s13, 0
    %p86 = por %p84, %p85
    %p87 = scmp.ne.s32.totalorder %s73, %s74
    %p88 = scmp.eq.s32.totalorder %s14, 1
    %p89 = por %p87, %p88
    %p91 = scmp.ne.s32.totalorder %s74, %s90
    %p92 = scmp.eq.s32.totalorder %s14, 0
    %p93 = por %p91, %p92
    %p94 = scmp.le.s32.totalorder 1, %s8
    %p95 = scmp.lt.s32.totalorder %s8, 3
    %p96 = pnand %p94, %p95
    %p97 = pneg %p96
    // Predicated region
    $region9: #{transformer_decoder_layer.12} parent=5 // pred_check
      _
    $region10: #{transformer_decoder_layer.12} parent=5 // pred_check_branch
      %99 = sbr.rel (%p96) target = $region12
    $region11: #{transformer_decoder_layer.12} parent=5 // pred_region
      %s100 = ssub.s32 %s8, 1
    $region12: #{transformer_decoder_layer.12} parent=5 // pred_fallthru
      _
    %p101 = scmp.lt.s32.totalorder %s8, 2
    // Predicated region
    $region13: #{transformer_decoder_layer.12} parent=5 // pred_check
      %p102 = pneg %p101
    $region14: #{transformer_decoder_layer.12} parent=5 // pred_check_branch
      %104 = sbr.rel (%p102) target = $region16
    $region15: #{transformer_decoder_layer.12} parent=5 // pred_region
      // Predicated region
      $region17: #{transformer_decoder_layer.12} parent=15 // pred_check
        %p105 = pneg %p28
      $region18: #{transformer_decoder_layer.12} parent=15 // pred_check_branch
        %107 = sbr.rel (%p105) target = $region20
      $region19: #{transformer_decoder_layer.12} parent=15 // pred_region
        %p108 = scmp.lt.s32.totalorder %s8, 1
        %s109 = scalar_select %p108, %s8, 1
        %s110 = smul.addr %s109, 4
        %s111 = scalar_lea.vmem %s0, %s110
      $region20: #{transformer_decoder_layer.12} parent=15 // pred_fallthru
        _
      // Predicated region
      $region21: #{transformer_decoder_layer.12} parent=15 // pred_check
        %p112 = pneg %p54
      $region22: #{transformer_decoder_layer.12} parent=15 // pred_check_branch
        %114 = sbr.rel (%p112) target = $region24
      $region23: #{transformer_decoder_layer.12} parent=15 // pred_region
        %p115 = scmp.lt.s32.totalorder %s8, 1
        %s116 = scalar_select %p115, %s8, 1
        %s117 = smul.addr %s116, 2
        %s118 = smul.addr %s117, 4
        %s119 = scalar_lea.vmem %s1, %s118
      $region24: #{transformer_decoder_layer.12} parent=15 // pred_fallthru
        _
    $region16: #{transformer_decoder_layer.12} parent=5 // pred_fallthru
      _
    %p120 = scmp.le.s32.totalorder 1, %s8
    %p121 = scmp.lt.s32.totalorder %s8, 3
    %p122 = pnand %p120, %p121
    %p123 = pneg %p122
    // Predicated region
    $region25: #{transformer_decoder_layer.12} parent=5 // pred_check
      _
    $region26: #{transformer_decoder_layer.12} parent=5 // pred_check_branch
      %125 = sbr.rel (%p122) target = $region28
    $region27: #{transformer_decoder_layer.12} parent=5 // pred_region
      %s126 = ssub.s32 %s8, 1
      %p127 = scmp.lt.s32.totalorder %s13, 1
      %s128 = scalar_select %p127, %s13, 1
      %s129 = smul.addr %s128, 4
      %s130 = scalar_lea.vmem %s0, %s129
      %p131 = pneg %p34
      %p132 = pneg %p31
      %p133 = scmp.lt.s32.totalorder %s13, 1
      %s134 = scalar_select %p133, %s13, 1
      %s135 = smul.addr %s134, 2
      %s136 = smul.addr %s135, 4
      %s137 = scalar_lea.vmem %s1, %s136
      %p138 = pneg %p60
      %p139 = pneg %p57
      %p140 = pneg %p86
      %p141 = pneg %p83
      %p142 = scmp.lt.s32.totalorder %s13, 1
      %s143 = scalar_select %p142, %s13, 1
      %s144 = smul.addr %s143, 8
      %s145 = scalar_lea.vmem %s2, %s144
      %p146 = scmp.lt.s32.totalorder %s13, 1
      %s147 = scalar_select %p146, %s13, 1
      %s148 = smul.addr %s147, 4
      %s149 = scalar_lea.vmem %s0, %s148
      %p150 = scmp.lt.s32.totalorder %s13, 1
      %s151 = scalar_select %p150, %s13, 1
      %s152 = smul.addr %s151, 2
      %s153 = smul.addr %s152, 4
      %s154 = scalar_lea.vmem %s1, %s153
      %p155 = scmp.lt.s32.totalorder %s13, 1
      %s156 = scalar_select %p155, %s13, 1
      %s157 = smul.addr %s156, 8
      %s158 = scalar_lea.vmem %s2, %s157
      %v160 = vld [vmem:[%s149] sm:$0xf]
      %v161 = vld [vmem:[%s154] sm:$0xf]
      %v162 = vld [vmem:[%s154 + $0x4] sm:$0x7]
      %v165 = vunpack.c.l.b16 %v161
      %v166 = vunpack.c.l.b16 %v162
      %v167 = vpack.c.b16 %v166, %v165
      %vm168 = vcmask 261120
      %v170 = vsel %vm168, %v160, 0
      %v173 = vsel %vm168, %v167, 0
      %175 = vmatprep.subr.bf16.mxu0 0
      %176 = vmatpush1.bf16.xpose.msra.mxu0 0
      %177 = vmatprep.subr.bf16.mxu0 0
      %178 = vmatpush1.bf16.xpose.msra.mxu0 0
      %179 = vmatprep.subr.bf16.mxu0 0
      %180 = vmatpush1.bf16.xpose.msra.mxu0 0
      %181 = vmatprep.subr.bf16.mxu0 0
      %182 = vmatpush1.bf16.xpose.msra.mxu0 0
      %183 = vmatprep.subr.bf16.mxu0 0
      %184 = vmatpush1.bf16.xpose.msra.mxu0 0
      %185 = vmatprep.subr.bf16.mxu0 0
      %186 = vmatpush1.bf16.xpose.msra.mxu0 0
      %187 = vmatprep.subr.bf16.mxu0 0
      %188 = vmatpush1.bf16.xpose.msra.mxu0 0
      %189 = vmatprep.subr.bf16.mxu0 0
      %190 = vmatpush1.bf16.xpose.msra.mxu0 %v173
      %191 = vmatprep.subr.bf16.mxu0 0
      %192 = vmatpush2.bf16.xpose.msra.mxu0 0
      %193 = vmatprep.subr.bf16.mxu0 0
      %194 = vmatpush2.bf16.xpose.msra.mxu0 0
      %195 = vmatprep.subr.bf16.mxu0 0
      %196 = vmatpush2.bf16.xpose.msra.mxu0 0
      %197 = vmatprep.subr.bf16.mxu0 0
      %198 = vmatpush2.bf16.xpose.msra.mxu0 0
      %199 = vmatprep.subr.bf16.mxu0 0
      %200 = vmatpush2.bf16.xpose.msra.mxu0 0
      %201 = vmatprep.subr.bf16.mxu0 0
      %202 = vmatpush2.bf16.xpose.msra.mxu0 0
      %203 = vmatprep.subr.bf16.mxu0 0
      %204 = vmatpush2.bf16.xpose.msra.mxu0 0
      %205 = vmatprep.subr.bf16.mxu0 0
      %206 = vmatpush2.bf16.xpose.msra.mxu0 0
      %207 = vmatprep.mubr.bf16.mxu0 0
      %208 = vmatmul.mubr.bf16.gmra.mxu0 %v170
      %v209 = vpop.f32.mrf.mxu0
      %v210 = vadd.f32 0.0, %v209
      %v211 = vpop.f32.mrf.mxu0
      %v212 = vpop.f32.mrf.mxu0
      %v213 = vpop.f32.mrf.mxu0
      %214 = vdwg.mxu0
      %vm215 = vcmask 105472
      %v216 = vsel %vm215, %v210, -inf
      %217 = vmax.xlane.f32.xlu0 %v216
      %v218 = vpop.xlane.xlu0 %217
      %v219 = vsub.f32 %v210, %v218
      %v220 = vmul.f32 %v219, 1.442695
      %v221 = vpow.pop %v220
      %v222 = vsel %vm215, %v221, 0.0
      %223 = vadd.xlane.f32.xlu0 %v222
      %v224 = vpop.xlane.xlu0 %223
      %v225 = vrcp.pop %v224
      %v226 = vmul.f32 %v221, %v225
      %227 = vst.msk [vmem:[%s158] sm:$0xff] %vm215, %v226
      %p228 = scmp.lt.s32.totalorder %s13, 1
      %s229 = scalar_select %p228, %s13, 1
      %s230 = smul.addr %s229, 8
      %s231 = scalar_lea.vmem %s2, %s230
      // Predicated region
      $region29: #{transformer_decoder_layer.12} parent=27 // pred_check
        %p232 = pneg %p83
      $region30: #{transformer_decoder_layer.12} parent=27 // pred_check_branch
        %234 = sbr.rel (%p232) target = $region32
      $region31: #{transformer_decoder_layer.12} parent=27 // pred_region
        _
      $region32: #{transformer_decoder_layer.12} parent=27 // pred_fallthru
        _
    $region28: #{transformer_decoder_layer.12} parent=5 // pred_fallthru
      _
    %p235 = scmp.le.s32.totalorder 2, %s8
    // Predicated region
    $region33: #{transformer_decoder_layer.12} parent=5 // pred_check
      %p236 = pneg %p235
    $region34: #{transformer_decoder_layer.12} parent=5 // pred_check_branch
      %238 = sbr.rel (%p236) target = $region36
    $region35: #{transformer_decoder_layer.12} parent=5 // pred_region
      %s239 = ssub.s32 %s8, 2
      // Predicated region
      $region37: #{transformer_decoder_layer.12} parent=35 // pred_check
        %p240 = pneg %p89
      $region38: #{transformer_decoder_layer.12} parent=35 // pred_check_branch
        %242 = sbr.rel (%p240) target = $region40
      $region39: #{transformer_decoder_layer.12} parent=35 // pred_region
        %p243 = scmp.lt.s32.totalorder %s14, 1
        %s244 = scalar_select %p243, %s14, 1
        %s245 = smul.addr %s244, 8
        %s246 = scalar_lea.vmem %s2, %s245
      $region40: #{transformer_decoder_layer.12} parent=35 // pred_fallthru
        _
    $region36: #{transformer_decoder_layer.12} parent=5 // pred_fallthru
      _
  $region6: #{transformer_decoder_layer.12} parent=0 // loop_footer
    %s12 = sadd.s32 1, %s8
  $region7: #{transformer_decoder_layer.12} parent=0 // loop_footer_branch
    %7 = sbr.rel target = $region3
  $region8: #{transformer_decoder_layer.12} parent=0 // loop_exit
    _

// kernel: transformer_decoder_layer.10
$region0: #{transformer_decoder_layer.10}
  #allocation0 [shape = 'u32[]', space=smem, size = 0x4, offset = 0x4, fixed_abs, tag = 'smem constant byte address 0x4 - core index']
  #allocation1 [shape = 'u32[144,128]{1,0:T(1,128)}', space=vmem, size = 0x12000, scoped, tag = 'internal scratch']
  %s0 = inlined_call_operand.vmem [shape: bf16[2,8,8,4], index: 0, kind: input, shape index: {}]
  %s1 = inlined_call_operand.vmem [shape: bf16[2,8,8,4], index: 1, kind: input, shape index: {}]
  %s2 = inlined_call_operand.vmem [shape: bf16[2,8,8,4], index: 2, kind: input, shape index: {}]
  %s3 = inlined_call_operand.vmem [shape: s32[2,1,8], index: 3, kind: input, shape index: {}]
  %s4 = inlined_call_operand.vmem [shape: bf16[2,8,8,4], index: 4, kind: output, shape index: {}]
  %s5 = sld [smem:[#allocation0]]
  $region49: #{transformer_decoder_layer.10} parent=0
    _
  %s7 = ssub.s32 1, %s5
  %s8 = scalar_select 0, %s7, %s5
  loop: start=0, step=1, limit=4
  $region2: #{transformer_decoder_layer.10} parent=0 // loop_pre_header
    _
  $region3: #{transformer_decoder_layer.10} parent=0 // loop_header
    %s10 = sphi 0, %s14
    %p11 = scmp.ge.s32.totalorder %s10, 4
    %s20 = sphi 0, %s22
    %s23 = sphi 0, %s20
    %s24 = sphi 0, %s23
    %s40 = sphi 0, %s24
    %s46 = sphi 0, %s48
    %s49 = sphi 0, %s46
    %s50 = sphi 0, %s49
    %s66 = sphi 0, %s50
    %s72 = sphi 0, %s74
    %s75 = sphi 0, %s72
    %s76 = sphi 0, %s75
    %s92 = sphi 0, %s76
    %s98 = sphi 0, %s100
    %s101 = sphi 0, %s98
    %s102 = sphi 0, %s101
    %s118 = sphi 0, %s102
    %s124 = sphi 0, %s126
    %s127 = sphi 0, %s124
    %s128 = sphi 0, %s127
    %s144 = sphi 0, %s128
  $region4: #{transformer_decoder_layer.10} parent=0 // loop_header_branch
    %13 = sbr.rel (%p11) target = $region8
  $region5: #{transformer_decoder_layer.10} parent=0 // loop_body
    %s15 = ssub.s32 %s10, 1
    %s16 = ssub.s32 %s10, 2
    %s17 = sadd.s32 %s10, 1
    %s18 = ssub.s32 %s10, %s17
    %p19 = scmp.eq.s32.totalorder %s18, 0
    %s21 = sadd.s32 %s20, 1
    %s22 = scalar_select %p19, %s20, %s21
    %p25 = pneg %p19
    %p26 = scmp.eq.s32.totalorder %s10, 1
    %p27 = por %p25, %p26
    %p28 = scmp.ne.s32.totalorder %s20, %s23
    %p29 = scmp.eq.s32.totalorder %s10, 0
    %p30 = por %p28, %p29
    %p31 = scmp.ne.s32.totalorder %s20, %s23
    %p32 = scmp.eq.s32.totalorder %s15, 1
    %p33 = por %p31, %p32
    %p34 = scmp.ne.s32.totalorder %s23, %s24
    %p35 = scmp.eq.s32.totalorder %s15, 0
    %p36 = por %p34, %p35
    %p37 = scmp.ne.s32.totalorder %s23, %s24
    %p38 = scmp.eq.s32.totalorder %s16, 1
    %p39 = por %p37, %p38
    %p41 = scmp.ne.s32.totalorder %s24, %s40
    %p42 = scmp.eq.s32.totalorder %s16, 0
    %p43 = por %p41, %p42
    %s44 = ssub.s32 %s10, %s17
    %p45 = scmp.eq.s32.totalorder %s44, 0
    %s47 = sadd.s32 %s46, 1
    %s48 = scalar_select %p45, %s46, %s47
    %p51 = pneg %p45
    %p52 = scmp.eq.s32.totalorder %s10, 1
    %p53 = por %p51, %p52
    %p54 = scmp.ne.s32.totalorder %s46, %s49
    %p55 = scmp.eq.s32.totalorder %s10, 0
    %p56 = por %p54, %p55
    %p57 = scmp.ne.s32.totalorder %s46, %s49
    %p58 = scmp.eq.s32.totalorder %s15, 1
    %p59 = por %p57, %p58
    %p60 = scmp.ne.s32.totalorder %s49, %s50
    %p61 = scmp.eq.s32.totalorder %s15, 0
    %p62 = por %p60, %p61
    %p63 = scmp.ne.s32.totalorder %s49, %s50
    %p64 = scmp.eq.s32.totalorder %s16, 1
    %p65 = por %p63, %p64
    %p67 = scmp.ne.s32.totalorder %s50, %s66
    %p68 = scmp.eq.s32.totalorder %s16, 0
    %p69 = por %p67, %p68
    %s70 = ssub.s32 %s10, %s17
    %p71 = scmp.eq.s32.totalorder %s70, 0
    %s73 = sadd.s32 %s72, 1
    %s74 = scalar_select %p71, %s72, %s73
    %p77 = pneg %p71
    %p78 = scmp.eq.s32.totalorder %s10, 1
    %p79 = por %p77, %p78
    %p80 = scmp.ne.s32.totalorder %s72, %s75
    %p81 = scmp.eq.s32.totalorder %s10, 0
    %p82 = por %p80, %p81
    %p83 = scmp.ne.s32.totalorder %s72, %s75
    %p84 = scmp.eq.s32.totalorder %s15, 1
    %p85 = por %p83, %p84
    %p86 = scmp.ne.s32.totalorder %s75, %s76
    %p87 = scmp.eq.s32.totalorder %s15, 0
    %p88 = por %p86, %p87
    %p89 = scmp.ne.s32.totalorder %s75, %s76
    %p90 = scmp.eq.s32.totalorder %s16, 1
    %p91 = por %p89, %p90
    %p93 = scmp.ne.s32.totalorder %s76, %s92
    %p94 = scmp.eq.s32.totalorder %s16, 0
    %p95 = por %p93, %p94
    %s96 = ssub.s32 %s10, %s17
    %p97 = scmp.eq.s32.totalorder %s96, 0
    %s99 = sadd.s32 %s98, 1
    %s100 = scalar_select %p97, %s98, %s99
    %p103 = pneg %p97
    %p104 = scmp.eq.s32.totalorder %s10, 1
    %p105 = por %p103, %p104
    %p106 = scmp.ne.s32.totalorder %s98, %s101
    %p107 = scmp.eq.s32.totalorder %s10, 0
    %p108 = por %p106, %p107
    %p109 = scmp.ne.s32.totalorder %s98, %s101
    %p110 = scmp.eq.s32.totalorder %s15, 1
    %p111 = por %p109, %p110
    %p112 = scmp.ne.s32.totalorder %s101, %s102
    %p113 = scmp.eq.s32.totalorder %s15, 0
    %p114 = por %p112, %p113
    %p115 = scmp.ne.s32.totalorder %s101, %s102
    %p116 = scmp.eq.s32.totalorder %s16, 1
    %p117 = por %p115, %p116
    %p119 = scmp.ne.s32.totalorder %s102, %s118
    %p120 = scmp.eq.s32.totalorder %s16, 0
    %p121 = por %p119, %p120
    %s122 = ssub.s32 %s10, %s17
    %p123 = scmp.eq.s32.totalorder %s122, 0
    %s125 = sadd.s32 %s124, 1
    %s126 = scalar_select %p123, %s124, %s125
    %p129 = pneg %p123
    %p130 = scmp.eq.s32.totalorder %s10, 1
    %p131 = por %p129, %p130
    %p132 = scmp.ne.s32.totalorder %s124, %s127
    %p133 = scmp.eq.s32.totalorder %s10, 0
    %p134 = por %p132, %p133
    %p135 = scmp.ne.s32.totalorder %s124, %s127
    %p136 = scmp.eq.s32.totalorder %s15, 1
    %p137 = por %p135, %p136
    %p138 = scmp.ne.s32.totalorder %s127, %s128
    %p139 = scmp.eq.s32.totalorder %s15, 0
    %p140 = por %p138, %p139
    %p141 = scmp.ne.s32.totalorder %s127, %s128
    %p142 = scmp.eq.s32.totalorder %s16, 1
    %p143 = por %p141, %p142
    %p145 = scmp.ne.s32.totalorder %s128, %s144
    %p146 = scmp.eq.s32.totalorder %s16, 0
    %p147 = por %p145, %p146
    %p148 = scmp.le.s32.totalorder 1, %s10
    %p149 = scmp.lt.s32.totalorder %s10, 3
    %p150 = pnand %p148, %p149
    %p151 = pneg %p150
    // Predicated region
    $region9: #{transformer_decoder_layer.10} parent=5 // pred_check
      _
    $region10: #{transformer_decoder_layer.10} parent=5 // pred_check_branch
      %153 = sbr.rel (%p150) target = $region12
    $region11: #{transformer_decoder_layer.10} parent=5 // pred_region
      %s154 = ssub.s32 %s10, 1
    $region12: #{transformer_decoder_layer.10} parent=5 // pred_fallthru
      _
    %p155 = scmp.lt.s32.totalorder %s10, 2
    // Predicated region
    $region13: #{transformer_decoder_layer.10} parent=5 // pred_check
      %p156 = pneg %p155
    $region14: #{transformer_decoder_layer.10} parent=5 // pred_check_branch
      %158 = sbr.rel (%p156) target = $region16
    $region15: #{transformer_decoder_layer.10} parent=5 // pred_region
      // Predicated region
      $region17: #{transformer_decoder_layer.10} parent=15 // pred_check
        %p159 = pneg %p30
      $region18: #{transformer_decoder_layer.10} parent=15 // pred_check_branch
        %161 = sbr.rel (%p159) target = $region20
      $region19: #{transformer_decoder_layer.10} parent=15 // pred_region
        %p162 = scmp.lt.s32.totalorder %s10, 1
        %s163 = scalar_select %p162, %s10, 1
        %s164 = smul.addr %s163, 8
        %s165 = smul.addr %s164, 4
        %s166 = scalar_lea.vmem %s0, %s165
      $region20: #{transformer_decoder_layer.10} parent=15 // pred_fallthru
        _
      // Predicated region
      $region21: #{transformer_decoder_layer.10} parent=15 // pred_check
        %p167 = pneg %p56
      $region22: #{transformer_decoder_layer.10} parent=15 // pred_check_branch
        %169 = sbr.rel (%p167) target = $region24
      $region23: #{transformer_decoder_layer.10} parent=15 // pred_region
        %p170 = scmp.lt.s32.totalorder %s10, 1
        %s171 = scalar_select %p170, %s10, 1
        %s172 = smul.addr %s171, 8
        %s173 = smul.addr %s172, 4
        %s174 = scalar_lea.vmem %s1, %s173
      $region24: #{transformer_decoder_layer.10} parent=15 // pred_fallthru
        _
      // Predicated region
      $region25: #{transformer_decoder_layer.10} parent=15 // pred_check
        %p175 = pneg %p82
      $region26: #{transformer_decoder_layer.10} parent=15 // pred_check_branch
        %177 = sbr.rel (%p175) target = $region28
      $region27: #{transformer_decoder_layer.10} parent=15 // pred_region
        %p178 = scmp.lt.s32.totalorder %s10, 1
        %s179 = scalar_select %p178, %s10, 1
        %s180 = smul.addr %s179, 8
        %s181 = smul.addr %s180, 4
        %s182 = scalar_lea.vmem %s2, %s181
      $region28: #{transformer_decoder_layer.10} parent=15 // pred_fallthru
        _
      // Predicated region
      $region29: #{transformer_decoder_layer.10} parent=15 // pred_check
        %p183 = pneg %p108
      $region30: #{transformer_decoder_layer.10} parent=15 // pred_check_branch
        %185 = sbr.rel (%p183) target = $region32
      $region31: #{transformer_decoder_layer.10} parent=15 // pred_region
        %p186 = scmp.lt.s32.totalorder %s10, 1
        %s187 = scalar_select %p186, %s10, 1
        %s188 = scalar_lea.vmem %s3, %s187
      $region32: #{transformer_decoder_layer.10} parent=15 // pred_fallthru
        _
    $region16: #{transformer_decoder_layer.10} parent=5 // pred_fallthru
      _
    %p189 = scmp.le.s32.totalorder 1, %s10
    %p190 = scmp.lt.s32.totalorder %s10, 3
    %p191 = pnand %p189, %p190
    %p192 = pneg %p191
    // Predicated region
    $region33: #{transformer_decoder_layer.10} parent=5 // pred_check
      _
    $region34: #{transformer_decoder_layer.10} parent=5 // pred_check_branch
      %194 = sbr.rel (%p191) target = $region36
    $region35: #{transformer_decoder_layer.10} parent=5 // pred_region
      %s195 = ssub.s32 %s10, 1
      %p196 = scmp.lt.s32.totalorder %s15, 1
      %s197 = scalar_select %p196, %s15, 1
      %s198 = smul.addr %s197, 8
      %s199 = smul.addr %s198, 4
      %s200 = scalar_lea.vmem %s0, %s199
      %p201 = pneg %p36
      %p202 = pneg %p33
      %p203 = scmp.lt.s32.totalorder %s15, 1
      %s204 = scalar_select %p203, %s15, 1
      %s205 = smul.addr %s204, 8
      %s206 = smul.addr %s205, 4
      %s207 = scalar_lea.vmem %s1, %s206
      %p208 = pneg %p62
      %p209 = pneg %p59
      %p210 = scmp.lt.s32.totalorder %s15, 1
      %s211 = scalar_select %p210, %s15, 1
      %s212 = smul.addr %s211, 8
      %s213 = smul.addr %s212, 4
      %s214 = scalar_lea.vmem %s2, %s213
      %p215 = pneg %p88
      %p216 = pneg %p85
      %p217 = scmp.lt.s32.totalorder %s15, 1
      %s218 = scalar_select %p217, %s15, 1
      %s219 = scalar_lea.vmem %s3, %s218
      %p220 = pneg %p114
      %p221 = pneg %p111
      %p222 = pneg %p140
      %p223 = pneg %p137
      %p224 = scmp.lt.s32.totalorder %s15, 1
      %s225 = scalar_select %p224, %s15, 1
      %s226 = smul.addr %s225, 8
      %s227 = smul.addr %s226, 4
      %s228 = scalar_lea.vmem %s4, %s227
      %p229 = scmp.lt.s32.totalorder %s15, 1
      %s230 = scalar_select %p229, %s15, 1
      %s231 = smul.addr %s230, 8
      %s232 = smul.addr %s231, 4
      %s233 = scalar_lea.vmem %s0, %s232
      %p234 = scmp.lt.s32.totalorder %s15, 1
      %s235 = scalar_select %p234, %s15, 1
      %s236 = smul.addr %s235, 8
      %s237 = smul.addr %s236, 4
      %s238 = scalar_lea.vmem %s1, %s237
      %p239 = scmp.lt.s32.totalorder %s15, 1
      %s240 = scalar_select %p239, %s15, 1
      %s241 = smul.addr %s240, 8
      %s242 = smul.addr %s241, 4
      %s243 = scalar_lea.vmem %s2, %s242
      %p244 = scmp.lt.s32.totalorder %s15, 1
      %s245 = scalar_select %p244, %s15, 1
      %s246 = scalar_lea.vmem %s3, %s245
      %p247 = scmp.lt.s32.totalorder %s15, 1
      %s248 = scalar_select %p247, %s15, 1
      %s249 = smul.addr %s248, 8
      %s250 = smul.addr %s249, 4
      %s251 = scalar_lea.vmem %s4, %s250
      %v253 = vld [vmem:[%s233] sm:$0xf]
      %v254 = vld [vmem:[%s233 + $0x4] sm:$0xf]
      %v255 = vld [vmem:[%s233 + $0x8] sm:$0xf]
      %v256 = vld [vmem:[%s233 + $0xc] sm:$0xf]
      %v257 = vld [vmem:[%s233 + $0x10] sm:$0xf]
      %v258 = vld [vmem:[%s233 + $0x14] sm:$0xf]
      %v259 = vld [vmem:[%s233 + $0x18] sm:$0xf]
      %v260 = vld [vmem:[%s233 + $0x1c] sm:$0xf]
      %v261 = vld [vmem:[%s238] sm:$0xf]
      %v262 = vld [vmem:[%s238 + $0x4] sm:$0xf]
      %v263 = vld [vmem:[%s238 + $0x8] sm:$0xf]
      %v264 = vld [vmem:[%s238 + $0xc] sm:$0xf]
      %v265 = vld [vmem:[%s238 + $0x10] sm:$0xf]
      %v266 = vld [vmem:[%s238 + $0x14] sm:$0xf]
      %v267 = vld [vmem:[%s238 + $0x18] sm:$0xf]
      %v268 = vld [vmem:[%s238 + $0x1c] sm:$0xf]
      %v269 = vld [vmem:[%s243] sm:$0xf]
      %v270 = vld [vmem:[%s243 + $0x4] sm:$0xf]
      %v271 = vld [vmem:[%s243 + $0x8] sm:$0xf]
      %v272 = vld [vmem:[%s243 + $0xc] sm:$0xf]
      %v273 = vld [vmem:[%s243 + $0x10] sm:$0xf]
      %v274 = vld [vmem:[%s243 + $0x14] sm:$0xf]
      %v275 = vld [vmem:[%s243 + $0x18] sm:$0xf]
      %v276 = vld [vmem:[%s243 + $0x1c] sm:$0xf]
      %vm277 = vcmask 31744
      %v279 = vsel %vm277, %v253, 0
      %v282 = vsel %vm277, %v261, 0
      %284 = vmatprep.subr.bf16.mxu0 0
      %285 = vmatpush1.bf16.xpose.msra.mxu0 0
      %286 = vmatprep.subr.bf16.mxu0 0
      %287 = vmatpush1.bf16.xpose.msra.mxu0 0
      %288 = vmatprep.subr.bf16.mxu0 0
      %289 = vmatpush1.bf16.xpose.msra.mxu0 0
      %290 = vmatprep.subr.bf16.mxu0 0
      %291 = vmatpush1.bf16.xpose.msra.mxu0 0
      %292 = vmatprep.subr.bf16.mxu0 0
      %293 = vmatpush1.bf16.xpose.msra.mxu0 0
      %294 = vmatprep.subr.bf16.mxu0 0
      %295 = vmatpush1.bf16.xpose.msra.mxu0 0
      %296 = vmatprep.subr.bf16.mxu0 0
      %297 = vmatpush1.bf16.xpose.msra.mxu0 0
      %298 = vmatprep.subr.bf16.mxu0 0
      %299 = vmatpush1.bf16.xpose.msra.mxu0 %v282
      %300 = vmatprep.subr.bf16.mxu0 0
      %301 = vmatpush2.bf16.xpose.msra.mxu0 0
      %302 = vmatprep.subr.bf16.mxu0 0
      %303 = vmatpush2.bf16.xpose.msra.mxu0 0
      %304 = vmatprep.subr.bf16.mxu0 0
      %305 = vmatpush2.bf16.xpose.msra.mxu0 0
      %306 = vmatprep.subr.bf16.mxu0 0
      %307 = vmatpush2.bf16.xpose.msra.mxu0 0
      %308 = vmatprep.subr.bf16.mxu0 0
      %309 = vmatpush2.bf16.xpose.msra.mxu0 0
      %310 = vmatprep.subr.bf16.mxu0 0
      %311 = vmatpush2.bf16.xpose.msra.mxu0 0
      %312 = vmatprep.subr.bf16.mxu0 0
      %313 = vmatpush2.bf16.xpose.msra.mxu0 0
      %314 = vmatprep.subr.bf16.mxu0 0
      %315 = vmatpush2.bf16.xpose.msra.mxu0 0
      %316 = vmatprep.mubr.bf16.mxu0 0
      %317 = vmatmul.mubr.bf16.gmra.mxu0 %v279
      %v318 = vpop.f32.mrf.mxu0
      %v319 = vadd.f32 0.0, %v318
      %v320 = vpop.f32.mrf.mxu0
      %v321 = vpop.f32.mrf.mxu0
      %v322 = vpop.f32.mrf.mxu0
      %323 = vdwg.mxu0
      %v325 = vsel %vm277, %v254, 0
      %v328 = vsel %vm277, %v262, 0
      %330 = vmatprep.subr.bf16.mxu0 0
      %331 = vmatpush1.bf16.xpose.msra.mxu0 0
      %332 = vmatprep.subr.bf16.mxu0 0
      %333 = vmatpush1.bf16.xpose.msra.mxu0 0
      %334 = vmatprep.subr.bf16.mxu0 0
      %335 = vmatpush1.bf16.xpose.msra.mxu0 0
      %336 = vmatprep.subr.bf16.mxu0 0
      %337 = vmatpush1.bf16.xpose.msra.mxu0 0
      %338 = vmatprep.subr.bf16.mxu0 0
      %339 = vmatpush1.bf16.xpose.msra.mxu0 0
      %340 = vmatprep.subr.bf16.mxu0 0
      %341 = vmatpush1.bf16.xpose.msra.mxu0 0
      %342 = vmatprep.subr.bf16.mxu0 0
      %343 = vmatpush1.bf16.xpose.msra.mxu0 0
      %344 = vmatprep.subr.bf16.mxu0 0
      %345 = vmatpush1.bf16.xpose.msra.mxu0 %v328
      %346 = vmatprep.subr.bf16.mxu0 0
      %347 = vmatpush2.bf16.xpose.msra.mxu0 0
      %348 = vmatprep.subr.bf16.mxu0 0
      %349 = vmatpush2.bf16.xpose.msra.mxu0 0
      %350 = vmatprep.subr.bf16.mxu0 0
      %351 = vmatpush2.bf16.xpose.msra.mxu0 0
      %352 = vmatprep.subr.bf16.mxu0 0
      %353 = vmatpush2.bf16.xpose.msra.mxu0 0
      %354 = vmatprep.subr.bf16.mxu0 0
      %355 = vmatpush2.bf16.xpose.msra.mxu0 0
      %356 = vmatprep.subr.bf16.mxu0 0
      %357 = vmatpush2.bf16.xpose.msra.mxu0 0
      %358 = vmatprep.subr.bf16.mxu0 0
      %359 = vmatpush2.bf16.xpose.msra.mxu0 0
      %360 = vmatprep.subr.bf16.mxu0 0
      %361 = vmatpush2.bf16.xpose.msra.mxu0 0
      %362 = vmatprep.mubr.bf16.mxu0 0
      %363 = vmatmul.mubr.bf16.gmra.mxu0 %v325
      %v364 = vpop.f32.mrf.mxu0
      %v365 = vadd.f32 0.0, %v364
      %v366 = vpop.f32.mrf.mxu0
      %v367 = vpop.f32.mrf.mxu0
      %v368 = vpop.f32.mrf.mxu0
      %369 = vdwg.mxu0
      %v371 = vsel %vm277, %v255, 0
      %v374 = vsel %vm277, %v263, 0
      %376 = vmatprep.subr.bf16.mxu0 0
      %377 = vmatpush1.bf16.xpose.msra.mxu0 0
      %378 = vmatprep.subr.bf16.mxu0 0
      %379 = vmatpush1.bf16.xpose.msra.mxu0 0
      %380 = vmatprep.subr.bf16.mxu0 0
      %381 = vmatpush1.bf16.xpose.msra.mxu0 0
      %382 = vmatprep.subr.bf16.mxu0 0
      %383 = vmatpush1.bf16.xpose.msra.mxu0 0
      %384 = vmatprep.subr.bf16.mxu0 0
      %385 = vmatpush1.bf16.xpose.msra.mxu0 0
      %386 = vmatprep.subr.bf16.mxu0 0
      %387 = vmatpush1.bf16.xpose.msra.mxu0 0
      %388 = vmatprep.subr.bf16.mxu0 0
      %389 = vmatpush1.bf16.xpose.msra.mxu0 0
      %390 = vmatprep.subr.bf16.mxu0 0
      %391 = vmatpush1.bf16.xpose.msra.mxu0 %v374
      %392 = vmatprep.subr.bf16.mxu0 0
      %393 = vmatpush2.bf16.xpose.msra.mxu0 0
      %394 = vmatprep.subr.bf16.mxu0 0
      %395 = vmatpush2.bf16.xpose.msra.mxu0 0
      %396 = vmatprep.subr.bf16.mxu0 0
      %397 = vmatpush2.bf16.xpose.msra.mxu0 0
      %398 = vmatprep.subr.bf16.mxu0 0
      %399 = vmatpush2.bf16.xpose.msra.mxu0 0
      %400 = vmatprep.subr.bf16.mxu0 0
      %401 = vmatpush2.bf16.xpose.msra.mxu0 0
      %402 = vmatprep.subr.bf16.mxu0 0
      %403 = vmatpush2.bf16.xpose.msra.mxu0 0
      %404 = vmatprep.subr.bf16.mxu0 0
      %405 = vmatpush2.bf16.xpose.msra.mxu0 0
      %406 = vmatprep.subr.bf16.mxu0 0
      %407 = vmatpush2.bf16.xpose.msra.mxu0 0
      %408 = vmatprep.mubr.bf16.mxu0 0
      %409 = vmatmul.mubr.bf16.gmra.mxu0 %v371
      %v410 = vpop.f32.mrf.mxu0
      %v411 = vadd.f32 0.0, %v410
      %v412 = vpop.f32.mrf.mxu0
      %v413 = vpop.f32.mrf.mxu0
      %v414 = vpop.f32.mrf.mxu0
      %415 = vdwg.mxu0
      %v417 = vsel %vm277, %v256, 0
      %v420 = vsel %vm277, %v264, 0
      %422 = vmatprep.subr.bf16.mxu0 0
      %423 = vmatpush1.bf16.xpose.msra.mxu0 0
      %424 = vmatprep.subr.bf16.mxu0 0
      %425 = vmatpush1.bf16.xpose.msra.mxu0 0
      %426 = vmatprep.subr.bf16.mxu0 0
      %427 = vmatpush1.bf16.xpose.msra.mxu0 0
      %428 = vmatprep.subr.bf16.mxu0 0
      %429 = vmatpush1.bf16.xpose.msra.mxu0 0
      %430 = vmatprep.subr.bf16.mxu0 0
      %431 = vmatpush1.bf16.xpose.msra.mxu0 0
      %432 = vmatprep.subr.bf16.mxu0 0
      %433 = vmatpush1.bf16.xpose.msra.mxu0 0
      %434 = vmatprep.subr.bf16.mxu0 0
      %435 = vmatpush1.bf16.xpose.msra.mxu0 0
      %436 = vmatprep.subr.bf16.mxu0 0
      %437 = vmatpush1.bf16.xpose.msra.mxu0 %v420
      %438 = vmatprep.subr.bf16.mxu0 0
      %439 = vmatpush2.bf16.xpose.msra.mxu0 0
      %440 = vmatprep.subr.bf16.mxu0 0
      %441 = vmatpush2.bf16.xpose.msra.mxu0 0
      %442 = vmatprep.subr.bf16.mxu0 0
      %443 = vmatpush2.bf16.xpose.msra.mxu0 0
      %444 = vmatprep.subr.bf16.mxu0 0
      %445 = vmatpush2.bf16.xpose.msra.mxu0 0
      %446 = vmatprep.subr.bf16.mxu0 0
      %447 = vmatpush2.bf16.xpose.msra.mxu0 0
      %448 = vmatprep.subr.bf16.mxu0 0
      %449 = vmatpush2.bf16.xpose.msra.mxu0 0
      %450 = vmatprep.subr.bf16.mxu0 0
      %451 = vmatpush2.bf16.xpose.msra.mxu0 0
      %452 = vmatprep.subr.bf16.mxu0 0
      %453 = vmatpush2.bf16.xpose.msra.mxu0 0
      %454 = vmatprep.mubr.bf16.mxu0 0
      %455 = vmatmul.mubr.bf16.gmra.mxu0 %v417
      %v456 = vpop.f32.mrf.mxu0
      %v457 = vadd.f32 0.0, %v456
      %v458 = vpop.f32.mrf.mxu0
      %v459 = vpop.f32.mrf.mxu0
      %v460 = vpop.f32.mrf.mxu0
      %461 = vdwg.mxu0
      %v463 = vsel %vm277, %v257, 0
      %v466 = vsel %vm277, %v265, 0
      %468 = vmatprep.subr.bf16.mxu0 0
      %469 = vmatpush1.bf16.xpose.msra.mxu0 0
      %470 = vmatprep.subr.bf16.mxu0 0
      %471 = vmatpush1.bf16.xpose.msra.mxu0 0
      %472 = vmatprep.subr.bf16.mxu0 0
      %473 = vmatpush1.bf16.xpose.msra.mxu0 0
      %474 = vmatprep.subr.bf16.mxu0 0
      %475 = vmatpush1.bf16.xpose.msra.mxu0 0
      %476 = vmatprep.subr.bf16.mxu0 0
      %477 = vmatpush1.bf16.xpose.msra.mxu0 0
      %478 = vmatprep.subr.bf16.mxu0 0
      %479 = vmatpush1.bf16.xpose.msra.mxu0 0
      %480 = vmatprep.subr.bf16.mxu0 0
      %481 = vmatpush1.bf16.xpose.msra.mxu0 0
      %482 = vmatprep.subr.bf16.mxu0 0
      %483 = vmatpush1.bf16.xpose.msra.mxu0 %v466
      %484 = vmatprep.subr.bf16.mxu0 0
      %485 = vmatpush2.bf16.xpose.msra.mxu0 0
      %486 = vmatprep.subr.bf16.mxu0 0
      %487 = vmatpush2.bf16.xpose.msra.mxu0 0
      %488 = vmatprep.subr.bf16.mxu0 0
      %489 = vmatpush2.bf16.xpose.msra.mxu0 0
      %490 = vmatprep.subr.bf16.mxu0 0
      %491 = vmatpush2.bf16.xpose.msra.mxu0 0
      %492 = vmatprep.subr.bf16.mxu0 0
      %493 = vmatpush2.bf16.xpose.msra.mxu0 0
      %494 = vmatprep.subr.bf16.mxu0 0
      %495 = vmatpush2.bf16.xpose.msra.mxu0 0
      %496 = vmatprep.subr.bf16.mxu0 0
      %497 = vmatpush2.bf16.xpose.msra.mxu0 0
      %498 = vmatprep.subr.bf16.mxu0 0
      %499 = vmatpush2.bf16.xpose.msra.mxu0 0
      %500 = vmatprep.mubr.bf16.mxu0 0
      %501 = vmatmul.mubr.bf16.gmra.mxu0 %v463
      %v502 = vpop.f32.mrf.mxu0
      %v503 = vadd.f32 0.0, %v502
      %v504 = vpop.f32.mrf.mxu0
      %v505 = vpop.f32.mrf.mxu0
      %v506 = vpop.f32.mrf.mxu0
      %507 = vdwg.mxu0
      %v509 = vsel %vm277, %v258, 0
      %v512 = vsel %vm277, %v266, 0
      %514 = vmatprep.subr.bf16.mxu0 0
      %515 = vmatpush1.bf16.xpose.msra.mxu0 0
      %516 = vmatprep.subr.bf16.mxu0 0
      %517 = vmatpush1.bf16.xpose.msra.mxu0 0
      %518 = vmatprep.subr.bf16.mxu0 0
      %519 = vmatpush1.bf16.xpose.msra.mxu0 0
      %520 = vmatprep.subr.bf16.mxu0 0
      %521 = vmatpush1.bf16.xpose.msra.mxu0 0
      %522 = vmatprep.subr.bf16.mxu0 0
      %523 = vmatpush1.bf16.xpose.msra.mxu0 0
      %524 = vmatprep.subr.bf16.mxu0 0
      %525 = vmatpush1.bf16.xpose.msra.mxu0 0
      %526 = vmatprep.subr.bf16.mxu0 0
      %527 = vmatpush1.bf16.xpose.msra.mxu0 0
      %528 = vmatprep.subr.bf16.mxu0 0
      %529 = vmatpush1.bf16.xpose.msra.mxu0 %v512
      %530 = vmatprep.subr.bf16.mxu0 0
      %531 = vmatpush2.bf16.xpose.msra.mxu0 0
      %532 = vmatprep.subr.bf16.mxu0 0
      %533 = vmatpush2.bf16.xpose.msra.mxu0 0
      %534 = vmatprep.subr.bf16.mxu0 0
      %535 = vmatpush2.bf16.xpose.msra.mxu0 0
      %536 = vmatprep.subr.bf16.mxu0 0
      %537 = vmatpush2.bf16.xpose.msra.mxu0 0
      %538 = vmatprep.subr.bf16.mxu0 0
      %539 = vmatpush2.bf16.xpose.msra.mxu0 0
      %540 = vmatprep.subr.bf16.mxu0 0
      %541 = vmatpush2.bf16.xpose.msra.mxu0 0
      %542 = vmatprep.subr.bf16.mxu0 0
      %543 = vmatpush2.bf16.xpose.msra.mxu0 0
      %544 = vmatprep.subr.bf16.mxu0 0
      %545 = vmatpush2.bf16.xpose.msra.mxu0 0
      %546 = vmatprep.mubr.bf16.mxu0 0
      %547 = vmatmul.mubr.bf16.gmra.mxu0 %v509
      %v548 = vpop.f32.mrf.mxu0
      %v549 = vadd.f32 0.0, %v548
      %v550 = vpop.f32.mrf.mxu0
      %v551 = vpop.f32.mrf.mxu0
      %v552 = vpop.f32.mrf.mxu0
      %553 = vdwg.mxu0
      %v555 = vsel %vm277, %v259, 0
      %v558 = vsel %vm277, %v267, 0
      %560 = vmatprep.subr.bf16.mxu0 0
      %561 = vmatpush1.bf16.xpose.msra.mxu0 0
      %562 = vmatprep.subr.bf16.mxu0 0
      %563 = vmatpush1.bf16.xpose.msra.mxu0 0
      %564 = vmatprep.subr.bf16.mxu0 0
      %565 = vmatpush1.bf16.xpose.msra.mxu0 0
      %566 = vmatprep.subr.bf16.mxu0 0
      %567 = vmatpush1.bf16.xpose.msra.mxu0 0
      %568 = vmatprep.subr.bf16.mxu0 0
      %569 = vmatpush1.bf16.xpose.msra.mxu0 0
      %570 = vmatprep.subr.bf16.mxu0 0
      %571 = vmatpush1.bf16.xpose.msra.mxu0 0
      %572 = vmatprep.subr.bf16.mxu0 0
      %573 = vmatpush1.bf16.xpose.msra.mxu0 0
      %574 = vmatprep.subr.bf16.mxu0 0
      %575 = vmatpush1.bf16.xpose.msra.mxu0 %v558
      %576 = vmatprep.subr.bf16.mxu0 0
      %577 = vmatpush2.bf16.xpose.msra.mxu0 0
      %578 = vmatprep.subr.bf16.mxu0 0
      %579 = vmatpush2.bf16.xpose.msra.mxu0 0
      %580 = vmatprep.subr.bf16.mxu0 0
      %581 = vmatpush2.bf16.xpose.msra.mxu0 0
      %582 = vmatprep.subr.bf16.mxu0 0
      %583 = vmatpush2.bf16.xpose.msra.mxu0 0
      %584 = vmatprep.subr.bf16.mxu0 0
      %585 = vmatpush2.bf16.xpose.msra.mxu0 0
      %586 = vmatprep.subr.bf16.mxu0 0
      %587 = vmatpush2.bf16.xpose.msra.mxu0 0
      %588 = vmatprep.subr.bf16.mxu0 0
      %589 = vmatpush2.bf16.xpose.msra.mxu0 0
      %590 = vmatprep.subr.bf16.mxu0 0
      %591 = vmatpush2.bf16.xpose.msra.mxu0 0
      %592 = vmatprep.mubr.bf16.mxu0 0
      %593 = vmatmul.mubr.bf16.gmra.mxu0 %v555
      %v594 = vpop.f32.mrf.mxu0
      %v595 = vadd.f32 0.0, %v594
      %v596 = vpop.f32.mrf.mxu0
      %v597 = vpop.f32.mrf.mxu0
      %v598 = vpop.f32.mrf.mxu0
      %599 = vdwg.mxu0
      %v601 = vsel %vm277, %v260, 0
      %v604 = vsel %vm277, %v268, 0
      %606 = vmatprep.subr.bf16.mxu0 0
      %607 = vmatpush1.bf16.xpose.msra.mxu0 0
      %608 = vmatprep.subr.bf16.mxu0 0
      %609 = vmatpush1.bf16.xpose.msra.mxu0 0
      %610 = vmatprep.subr.bf16.mxu0 0
      %611 = vmatpush1.bf16.xpose.msra.mxu0 0
      %612 = vmatprep.subr.bf16.mxu0 0
      %613 = vmatpush1.bf16.xpose.msra.mxu0 0
      %614 = vmatprep.subr.bf16.mxu0 0
      %615 = vmatpush1.bf16.xpose.msra.mxu0 0
      %616 = vmatprep.subr.bf16.mxu0 0
      %617 = vmatpush1.bf16.xpose.msra.mxu0 0
      %618 = vmatprep.subr.bf16.mxu0 0
      %619 = vmatpush1.bf16.xpose.msra.mxu0 0
      %620 = vmatprep.subr.bf16.mxu0 0
      %621 = vmatpush1.bf16.xpose.msra.mxu0 %v604
      %622 = vmatprep.subr.bf16.mxu0 0
      %623 = vmatpush2.bf16.xpose.msra.mxu0 0
      %624 = vmatprep.subr.bf16.mxu0 0
      %625 = vmatpush2.bf16.xpose.msra.mxu0 0
      %626 = vmatprep.subr.bf16.mxu0 0
      %627 = vmatpush2.bf16.xpose.msra.mxu0 0
      %628 = vmatprep.subr.bf16.mxu0 0
      %629 = vmatpush2.bf16.xpose.msra.mxu0 0
      %630 = vmatprep.subr.bf16.mxu0 0
      %631 = vmatpush2.bf16.xpose.msra.mxu0 0
      %632 = vmatprep.subr.bf16.mxu0 0
      %633 = vmatpush2.bf16.xpose.msra.mxu0 0
      %634 = vmatprep.subr.bf16.mxu0 0
      %635 = vmatpush2.bf16.xpose.msra.mxu0 0
      %636 = vmatprep.subr.bf16.mxu0 0
      %637 = vmatpush2.bf16.xpose.msra.mxu0 0
      %638 = vmatprep.mubr.bf16.mxu0 0
      %639 = vmatmul.mubr.bf16.gmra.mxu0 %v601
      %v640 = vpop.f32.mrf.mxu0
      %v641 = vadd.f32 0.0, %v640
      %v642 = vpop.f32.mrf.mxu0
      %v643 = vpop.f32.mrf.mxu0
      %v644 = vpop.f32.mrf.mxu0
      %645 = vdwg.mxu0
      %v646 = vmul.f32 %v319, 0.5
      %v647 = vmul.f32 %v365, 0.5
      %v648 = vmul.f32 %v411, 0.5
      %v649 = vmul.f32 %v457, 0.5
      %v650 = vmul.f32 %v503, 0.5
      %v651 = vmul.f32 %v549, 0.5
      %v652 = vmul.f32 %v595, 0.5
      %v653 = vmul.f32 %v641, 0.5
      %v654 = vlaneseq
      %v655 = vshrl.u32 %v654, 7
      %v656 = vlaneseq
      %v657 = vand.u32 %v656, 127
      %vm658 = vcmp.gt.s32.totalorder %v657, %v655
      %v659 = vld [vmem:[%s246] sm:$0x1]
      %vm660 = vcmp.gt.s32.totalorder %v659, 0
      %v661 = vsel %vm660, 1, 0
      %v662 = vlaneseq
      %v663 = vshrl.u32 %v662, 7
      %v664 = vsub.s32 0, %v663
      %v665 = vrot.slane %v661, %v664
      %vm666 = vcmp.eq.s32.totalorder %v665, 1
      %vm667 = vmor %vm658, %vm666
      %v668 = vsel %vm667, 1, 0
      %vm669 = vcmp.eq.s32.totalorder %v668, 1
      %v670 = vsel %vm669, -1e+18, %v646
      %v671 = vsel %vm669, -1e+18, %v647
      %v672 = vsel %vm669, -1e+18, %v648
      %v673 = vsel %vm669, -1e+18, %v649
      %v674 = vsel %vm669, -1e+18, %v650
      %v675 = vsel %vm669, -1e+18, %v651
      %v676 = vsel %vm669, -1e+18, %v652
      %v677 = vsel %vm669, -1e+18, %v653
      %vm678 = vcmask 64512
      %v679 = vsel %vm678, %v670, -inf
      %680 = vmax.xlane.f32.xlu0 %v679
      %v681 = vpop.xlane.xlu0 %680
      %v682 = vsel %vm678, %v671, -inf
      %683 = vmax.xlane.f32.xlu0 %v682
      %v684 = vpop.xlane.xlu0 %683
      %v685 = vsel %vm678, %v672, -inf
      %686 = vmax.xlane.f32.xlu0 %v685
      %v687 = vpop.xlane.xlu0 %686
      %v688 = vsel %vm678, %v673, -inf
      %689 = vmax.xlane.f32.xlu0 %v688
      %v690 = vpop.xlane.xlu0 %689
      %v691 = vsel %vm678, %v674, -inf
      %692 = vmax.xlane.f32.xlu0 %v691
      %v693 = vpop.xlane.xlu0 %692
      %v694 = vsel %vm678, %v675, -inf
      %695 = vmax.xlane.f32.xlu0 %v694
      %v696 = vpop.xlane.xlu0 %695
      %v697 = vsel %vm678, %v676, -inf
      %698 = vmax.xlane.f32.xlu0 %v697
      %v699 = vpop.xlane.xlu0 %698
      %v700 = vsel %vm678, %v677, -inf
      %701 = vmax.xlane.f32.xlu0 %v700
      %v702 = vpop.xlane.xlu0 %701
      %v703 = vsub.f32 %v670, %v681
      %v704 = vsub.f32 %v671, %v684
      %v705 = vsub.f32 %v672, %v687
      %v706 = vsub.f32 %v673, %v690
      %v707 = vsub.f32 %v674, %v693
      %v708 = vsub.f32 %v675, %v696
      %v709 = vsub.f32 %v676, %v699
      %v710 = vsub.f32 %v677, %v702
      %v711 = vmul.f32 %v703, 1.442695
      %v712 = vpow.pop %v711
      %v713 = vmul.f32 %v704, 1.442695
      %v714 = vpow.pop %v713
      %v715 = vmul.f32 %v705, 1.442695
      %v716 = vpow.pop %v715
      %v717 = vmul.f32 %v706, 1.442695
      %v718 = vpow.pop %v717
      %v719 = vmul.f32 %v707, 1.442695
      %v720 = vpow.pop %v719
      %v721 = vmul.f32 %v708, 1.442695
      %v722 = vpow.pop %v721
      %v723 = vmul.f32 %v709, 1.442695
      %v724 = vpow.pop %v723
      %v725 = vmul.f32 %v710, 1.442695
      %v726 = vpow.pop %v725
      %v727 = vsel %vm678, %v712, 0.0
      %728 = vadd.xlane.f32.xlu0 %v727
      %v729 = vpop.xlane.xlu0 %728
      %v730 = vsel %vm678, %v714, 0.0
      %731 = vadd.xlane.f32.xlu0 %v730
      %v732 = vpop.xlane.xlu0 %731
      %v733 = vsel %vm678, %v716, 0.0
      %734 = vadd.xlane.f32.xlu0 %v733
      %v735 = vpop.xlane.xlu0 %734
      %v736 = vsel %vm678, %v718, 0.0
      %737 = vadd.xlane.f32.xlu0 %v736
      %v738 = vpop.xlane.xlu0 %737
      %v739 = vsel %vm678, %v720, 0.0
      %740 = vadd.xlane.f32.xlu0 %v739
      %v741 = vpop.xlane.xlu0 %740
      %v742 = vsel %vm678, %v722, 0.0
      %743 = vadd.xlane.f32.xlu0 %v742
      %v744 = vpop.xlane.xlu0 %743
      %v745 = vsel %vm678, %v724, 0.0
      %746 = vadd.xlane.f32.xlu0 %v745
      %v747 = vpop.xlane.xlu0 %746
      %v748 = vsel %vm678, %v726, 0.0
      %749 = vadd.xlane.f32.xlu0 %v748
      %v750 = vpop.xlane.xlu0 %749
      %v751 = vrcp.pop %v729
      %v752 = vmul.f32 %v712, %v751
      %v753 = vrcp.pop %v732
      %v754 = vmul.f32 %v714, %v753
      %v755 = vrcp.pop %v735
      %v756 = vmul.f32 %v716, %v755
      %v757 = vrcp.pop %v738
      %v758 = vmul.f32 %v718, %v757
      %v759 = vrcp.pop %v741
      %v760 = vmul.f32 %v720, %v759
      %v761 = vrcp.pop %v744
      %v762 = vmul.f32 %v722, %v761
      %v763 = vrcp.pop %v747
      %v764 = vmul.f32 %v724, %v763
      %v765 = vrcp.pop %v750
      %v766 = vmul.f32 %v726, %v765
      %v767 = vpack.c.bf16 %v752, %v752
      %v768 = vpack.c.bf16 %v754, %v754
      %v769 = vpack.c.bf16 %v756, %v756
      %v770 = vpack.c.bf16 %v758, %v758
      %v771 = vpack.c.bf16 %v760, %v760
      %v772 = vpack.c.bf16 %v762, %v762
      %v773 = vpack.c.bf16 %v764, %v764
      %v774 = vpack.c.bf16 %v766, %v766
      %v776 = vsel %vm678, %v767, 0
      %vm778 = vcmask 1043456
      %v780 = vsel %vm778, %v269, 0
      %782 = vmatprep.subr.bf16.mxu0 0
      %783 = vmatpush1.bf16.msra.mxu0 0
      %784 = vmatprep.subr.bf16.mxu0 0
      %785 = vmatpush1.bf16.msra.mxu0 0
      %786 = vmatprep.subr.bf16.mxu0 0
      %787 = vmatpush1.bf16.msra.mxu0 0
      %788 = vmatprep.subr.bf16.mxu0 0
      %789 = vmatpush1.bf16.msra.mxu0 0
      %790 = vmatprep.subr.bf16.mxu0 0
      %791 = vmatpush1.bf16.msra.mxu0 0
      %792 = vmatprep.subr.bf16.mxu0 0
      %793 = vmatpush1.bf16.msra.mxu0 0
      %794 = vmatprep.subr.bf16.mxu0 0
      %795 = vmatpush1.bf16.msra.mxu0 0
      %796 = vmatprep.subr.bf16.mxu0 0
      %797 = vmatpush1.bf16.msra.mxu0 %v780
      %798 = vmatprep.subr.bf16.mxu0 0
      %799 = vmatpush2.bf16.msra.mxu0 0
      %800 = vmatprep.subr.bf16.mxu0 0
      %801 = vmatpush2.bf16.msra.mxu0 0
      %802 = vmatprep.subr.bf16.mxu0 0
      %803 = vmatpush2.bf16.msra.mxu0 0
      %804 = vmatprep.subr.bf16.mxu0 0
      %805 = vmatpush2.bf16.msra.mxu0 0
      %806 = vmatprep.subr.bf16.mxu0 0
      %807 = vmatpush2.bf16.msra.mxu0 0
      %808 = vmatprep.subr.bf16.mxu0 0
      %809 = vmatpush2.bf16.msra.mxu0 0
      %810 = vmatprep.subr.bf16.mxu0 0
      %811 = vmatpush2.bf16.msra.mxu0 0
      %812 = vmatprep.subr.bf16.mxu0 0
      %813 = vmatpush2.bf16.msra.mxu0 0
      %814 = vmatprep.mubr.bf16.mxu0 0
      %815 = vmatmul.mubr.bf16.gmra.mxu0 %v776
      %v816 = vpop.f32.mrf.mxu0
      %v817 = vadd.f32 0.0, %v816
      %v818 = vpop.f32.mrf.mxu0
      %v819 = vpop.f32.mrf.mxu0
      %v820 = vpop.f32.mrf.mxu0
      %821 = vdwg.mxu0
      %v823 = vsel %vm678, %v768, 0
      %v826 = vsel %vm778, %v270, 0
      %828 = vmatprep.subr.bf16.mxu0 0
      %829 = vmatpush1.bf16.msra.mxu0 0
      %830 = vmatprep.subr.bf16.mxu0 0
      %831 = vmatpush1.bf16.msra.mxu0 0
      %832 = vmatprep.subr.bf16.mxu0 0
      %833 = vmatpush1.bf16.msra.mxu0 0
      %834 = vmatprep.subr.bf16.mxu0 0
      %835 = vmatpush1.bf16.msra.mxu0 0
      %836 = vmatprep.subr.bf16.mxu0 0
      %837 = vmatpush1.bf16.msra.mxu0 0
      %838 = vmatprep.subr.bf16.mxu0 0
      %839 = vmatpush1.bf16.msra.mxu0 0
      %840 = vmatprep.subr.bf16.mxu0 0
      %841 = vmatpush1.bf16.msra.mxu0 0
      %842 = vmatprep.subr.bf16.mxu0 0
      %843 = vmatpush1.bf16.msra.mxu0 %v826
      %844 = vmatprep.subr.bf16.mxu0 0
      %845 = vmatpush2.bf16.msra.mxu0 0
      %846 = vmatprep.subr.bf16.mxu0 0
      %847 = vmatpush2.bf16.msra.mxu0 0
      %848 = vmatprep.subr.bf16.mxu0 0
      %849 = vmatpush2.bf16.msra.mxu0 0
      %850 = vmatprep.subr.bf16.mxu0 0
      %851 = vmatpush2.bf16.msra.mxu0 0
      %852 = vmatprep.subr.bf16.mxu0 0
      %853 = vmatpush2.bf16.msra.mxu0 0
      %854 = vmatprep.subr.bf16.mxu0 0
      %855 = vmatpush2.bf16.msra.mxu0 0
      %856 = vmatprep.subr.bf16.mxu0 0
      %857 = vmatpush2.bf16.msra.mxu0 0
      %858 = vmatprep.subr.bf16.mxu0 0
      %859 = vmatpush2.bf16.msra.mxu0 0
      %860 = vmatprep.mubr.bf16.mxu0 0
      %861 = vmatmul.mubr.bf16.gmra.mxu0 %v823
      %v862 = vpop.f32.mrf.mxu0
      %v863 = vadd.f32 0.0, %v862
      %v864 = vpop.f32.mrf.mxu0
      %v865 = vpop.f32.mrf.mxu0
      %v866 = vpop.f32.mrf.mxu0
      %867 = vdwg.mxu0
      %v869 = vsel %vm678, %v769, 0
      %v872 = vsel %vm778, %v271, 0
      %874 = vmatprep.subr.bf16.mxu0 0
      %875 = vmatpush1.bf16.msra.mxu0 0
      %876 = vmatprep.subr.bf16.mxu0 0
      %877 = vmatpush1.bf16.msra.mxu0 0
      %878 = vmatprep.subr.bf16.mxu0 0
      %879 = vmatpush1.bf16.msra.mxu0 0
      %880 = vmatprep.subr.bf16.mxu0 0
      %881 = vmatpush1.bf16.msra.mxu0 0
      %882 = vmatprep.subr.bf16.mxu0 0
      %883 = vmatpush1.bf16.msra.mxu0 0
      %884 = vmatprep.subr.bf16.mxu0 0
      %885 = vmatpush1.bf16.msra.mxu0 0
      %886 = vmatprep.subr.bf16.mxu0 0
      %887 = vmatpush1.bf16.msra.mxu0 0
      %888 = vmatprep.subr.bf16.mxu0 0
      %889 = vmatpush1.bf16.msra.mxu0 %v872
      %890 = vmatprep.subr.bf16.mxu0 0
      %891 = vmatpush2.bf16.msra.mxu0 0
      %892 = vmatprep.subr.bf16.mxu0 0
      %893 = vmatpush2.bf16.msra.mxu0 0
      %894 = vmatprep.subr.bf16.mxu0 0
      %895 = vmatpush2.bf16.msra.mxu0 0
      %896 = vmatprep.subr.bf16.mxu0 0
      %897 = vmatpush2.bf16.msra.mxu0 0
      %898 = vmatprep.subr.bf16.mxu0 0
      %899 = vmatpush2.bf16.msra.mxu0 0
      %900 = vmatprep.subr.bf16.mxu0 0
      %901 = vmatpush2.bf16.msra.mxu0 0
      %902 = vmatprep.subr.bf16.mxu0 0
      %903 = vmatpush2.bf16.msra.mxu0 0
      %904 = vmatprep.subr.bf16.mxu0 0
      %905 = vmatpush2.bf16.msra.mxu0 0
      %906 = vmatprep.mubr.bf16.mxu0 0
      %907 = vmatmul.mubr.bf16.gmra.mxu0 %v869
      %v908 = vpop.f32.mrf.mxu0
      %v909 = vadd.f32 0.0, %v908
      %v910 = vpop.f32.mrf.mxu0
      %v911 = vpop.f32.mrf.mxu0
      %v912 = vpop.f32.mrf.mxu0
      %913 = vdwg.mxu0
      %v915 = vsel %vm678, %v770, 0
      %v918 = vsel %vm778, %v272, 0
      %920 = vmatprep.subr.bf16.mxu0 0
      %921 = vmatpush1.bf16.msra.mxu0 0
      %922 = vmatprep.subr.bf16.mxu0 0
      %923 = vmatpush1.bf16.msra.mxu0 0
      %924 = vmatprep.subr.bf16.mxu0 0
      %925 = vmatpush1.bf16.msra.mxu0 0
      %926 = vmatprep.subr.bf16.mxu0 0
      %927 = vmatpush1.bf16.msra.mxu0 0
      %928 = vmatprep.subr.bf16.mxu0 0
      %929 = vmatpush1.bf16.msra.mxu0 0
      %930 = vmatprep.subr.bf16.mxu0 0
      %931 = vmatpush1.bf16.msra.mxu0 0
      %932 = vmatprep.subr.bf16.mxu0 0
      %933 = vmatpush1.bf16.msra.mxu0 0
      %934 = vmatprep.subr.bf16.mxu0 0
      %935 = vmatpush1.bf16.msra.mxu0 %v918
      %936 = vmatprep.subr.bf16.mxu0 0
      %937 = vmatpush2.bf16.msra.mxu0 0
      %938 = vmatprep.subr.bf16.mxu0 0
      %939 = vmatpush2.bf16.msra.mxu0 0
      %940 = vmatprep.subr.bf16.mxu0 0
      %941 = vmatpush2.bf16.msra.mxu0 0
      %942 = vmatprep.subr.bf16.mxu0 0
      %943 = vmatpush2.bf16.msra.mxu0 0
      %944 = vmatprep.subr.bf16.mxu0 0
      %945 = vmatpush2.bf16.msra.mxu0 0
      %946 = vmatprep.subr.bf16.mxu0 0
      %947 = vmatpush2.bf16.msra.mxu0 0
      %948 = vmatprep.subr.bf16.mxu0 0
      %949 = vmatpush2.bf16.msra.mxu0 0
      %950 = vmatprep.subr.bf16.mxu0 0
      %951 = vmatpush2.bf16.msra.mxu0 0
      %952 = vmatprep.mubr.bf16.mxu0 0
      %953 = vmatmul.mubr.bf16.gmra.mxu0 %v915
      %v954 = vpop.f32.mrf.mxu0
      %v955 = vadd.f32 0.0, %v954
      %v956 = vpop.f32.mrf.mxu0
      %v957 = vpop.f32.mrf.mxu0
      %v958 = vpop.f32.mrf.mxu0
      %959 = vdwg.mxu0
      %v961 = vsel %vm678, %v771, 0
      %v964 = vsel %vm778, %v273, 0
      %966 = vmatprep.subr.bf16.mxu0 0
      %967 = vmatpush1.bf16.msra.mxu0 0
      %968 = vmatprep.subr.bf16.mxu0 0
      %969 = vmatpush1.bf16.msra.mxu0 0
      %970 = vmatprep.subr.bf16.mxu0 0
      %971 = vmatpush1.bf16.msra.mxu0 0
      %972 = vmatprep.subr.bf16.mxu0 0
      %973 = vmatpush1.bf16.msra.mxu0 0
      %974 = vmatprep.subr.bf16.mxu0 0
      %975 = vmatpush1.bf16.msra.mxu0 0
      %976 = vmatprep.subr.bf16.mxu0 0
      %977 = vmatpush1.bf16.msra.mxu0 0
      %978 = vmatprep.subr.bf16.mxu0 0
      %979 = vmatpush1.bf16.msra.mxu0 0
      %980 = vmatprep.subr.bf16.mxu0 0
      %981 = vmatpush1.bf16.msra.mxu0 %v964
      %982 = vmatprep.subr.bf16.mxu0 0
      %983 = vmatpush2.bf16.msra.mxu0 0
      %984 = vmatprep.subr.bf16.mxu0 0
      %985 = vmatpush2.bf16.msra.mxu0 0
      %986 = vmatprep.subr.bf16.mxu0 0
      %987 = vmatpush2.bf16.msra.mxu0 0
      %988 = vmatprep.subr.bf16.mxu0 0
      %989 = vmatpush2.bf16.msra.mxu0 0
      %990 = vmatprep.subr.bf16.mxu0 0
      %991 = vmatpush2.bf16.msra.mxu0 0
      %992 = vmatprep.subr.bf16.mxu0 0
      %993 = vmatpush2.bf16.msra.mxu0 0
      %994 = vmatprep.subr.bf16.mxu0 0
      %995 = vmatpush2.bf16.msra.mxu0 0
      %996 = vmatprep.subr.bf16.mxu0 0
      %997 = vmatpush2.bf16.msra.mxu0 0
      %998 = vmatprep.mubr.bf16.mxu0 0
      %999 = vmatmul.mubr.bf16.gmra.mxu0 %v961
      %v1000 = vpop.f32.mrf.mxu0
      %v1001 = vadd.f32 0.0, %v1000
      %v1002 = vpop.f32.mrf.mxu0
      %v1003 = vpop.f32.mrf.mxu0
      %v1004 = vpop.f32.mrf.mxu0
      %1005 = vdwg.mxu0
      %v1007 = vsel %vm678, %v772, 0
      %v1010 = vsel %vm778, %v274, 0
      %1012 = vmatprep.subr.bf16.mxu0 0
      %1013 = vmatpush1.bf16.msra.mxu0 0
      %1014 = vmatprep.subr.bf16.mxu0 0
      %1015 = vmatpush1.bf16.msra.mxu0 0
      %1016 = vmatprep.subr.bf16.mxu0 0
      %1017 = vmatpush1.bf16.msra.mxu0 0
      %1018 = vmatprep.subr.bf16.mxu0 0
      %1019 = vmatpush1.bf16.msra.mxu0 0
      %1020 = vmatprep.subr.bf16.mxu0 0
      %1021 = vmatpush1.bf16.msra.mxu0 0
      %1022 = vmatprep.subr.bf16.mxu0 0
      %1023 = vmatpush1.bf16.msra.mxu0 0
      %1024 = vmatprep.subr.bf16.mxu0 0
      %1025 = vmatpush1.bf16.msra.mxu0 0
      %1026 = vmatprep.subr.bf16.mxu0 0
      %1027 = vmatpush1.bf16.msra.mxu0 %v1010
      %1028 = vmatprep.subr.bf16.mxu0 0
      %1029 = vmatpush2.bf16.msra.mxu0 0
      %1030 = vmatprep.subr.bf16.mxu0 0
      %1031 = vmatpush2.bf16.msra.mxu0 0
      %1032 = vmatprep.subr.bf16.mxu0 0
      %1033 = vmatpush2.bf16.msra.mxu0 0
      %1034 = vmatprep.subr.bf16.mxu0 0
      %1035 = vmatpush2.bf16.msra.mxu0 0
      %1036 = vmatprep.subr.bf16.mxu0 0
      %1037 = vmatpush2.bf16.msra.mxu0 0
      %1038 = vmatprep.subr.bf16.mxu0 0
      %1039 = vmatpush2.bf16.msra.mxu0 0
      %1040 = vmatprep.subr.bf16.mxu0 0
      %1041 = vmatpush2.bf16.msra.mxu0 0
      %1042 = vmatprep.subr.bf16.mxu0 0
      %1043 = vmatpush2.bf16.msra.mxu0 0
      %1044 = vmatprep.mubr.bf16.mxu0 0
      %1045 = vmatmul.mubr.bf16.gmra.mxu0 %v1007
      %v1046 = vpop.f32.mrf.mxu0
      %v1047 = vadd.f32 0.0, %v1046
      %v1048 = vpop.f32.mrf.mxu0
      %v1049 = vpop.f32.mrf.mxu0
      %v1050 = vpop.f32.mrf.mxu0
      %1051 = vdwg.mxu0
      %v1053 = vsel %vm678, %v773, 0
      %v1056 = vsel %vm778, %v275, 0
      %1058 = vmatprep.subr.bf16.mxu0 0
      %1059 = vmatpush1.bf16.msra.mxu0 0
      %1060 = vmatprep.subr.bf16.mxu0 0
      %1061 = vmatpush1.bf16.msra.mxu0 0
      %1062 = vmatprep.subr.bf16.mxu0 0
      %1063 = vmatpush1.bf16.msra.mxu0 0
      %1064 = vmatprep.subr.bf16.mxu0 0
      %1065 = vmatpush1.bf16.msra.mxu0 0
      %1066 = vmatprep.subr.bf16.mxu0 0
      %1067 = vmatpush1.bf16.msra.mxu0 0
      %1068 = vmatprep.subr.bf16.mxu0 0
      %1069 = vmatpush1.bf16.msra.mxu0 0
      %1070 = vmatprep.subr.bf16.mxu0 0
      %1071 = vmatpush1.bf16.msra.mxu0 0
      %1072 = vmatprep.subr.bf16.mxu0 0
      %1073 = vmatpush1.bf16.msra.mxu0 %v1056
      %1074 = vmatprep.subr.bf16.mxu0 0
      %1075 = vmatpush2.bf16.msra.mxu0 0
      %1076 = vmatprep.subr.bf16.mxu0 0
      %1077 = vmatpush2.bf16.msra.mxu0 0
      %1078 = vmatprep.subr.bf16.mxu0 0
      %1079 = vmatpush2.bf16.msra.mxu0 0
      %1080 = vmatprep.subr.bf16.mxu0 0
      %1081 = vmatpush2.bf16.msra.mxu0 0
      %1082 = vmatprep.subr.bf16.mxu0 0
      %1083 = vmatpush2.bf16.msra.mxu0 0
      %1084 = vmatprep.subr.bf16.mxu0 0
      %1085 = vmatpush2.bf16.msra.mxu0 0
      %1086 = vmatprep.subr.bf16.mxu0 0
      %1087 = vmatpush2.bf16.msra.mxu0 0
      %1088 = vmatprep.subr.bf16.mxu0 0
      %1089 = vmatpush2.bf16.msra.mxu0 0
      %1090 = vmatprep.mubr.bf16.mxu0 0
      %1091 = vmatmul.mubr.bf16.gmra.mxu0 %v1053
      %v1092 = vpop.f32.mrf.mxu0
      %v1093 = vadd.f32 0.0, %v1092
      %v1094 = vpop.f32.mrf.mxu0
      %v1095 = vpop.f32.mrf.mxu0
      %v1096 = vpop.f32.mrf.mxu0
      %1097 = vdwg.mxu0
      %v1099 = vsel %vm678, %v774, 0
      %v1102 = vsel %vm778, %v276, 0
      %1104 = vmatprep.subr.bf16.mxu0 0
      %1105 = vmatpush1.bf16.msra.mxu0 0
      %1106 = vmatprep.subr.bf16.mxu0 0
      %1107 = vmatpush1.bf16.msra.mxu0 0
      %1108 = vmatprep.subr.bf16.mxu0 0
      %1109 = vmatpush1.bf16.msra.mxu0 0
      %1110 = vmatprep.subr.bf16.mxu0 0
      %1111 = vmatpush1.bf16.msra.mxu0 0
      %1112 = vmatprep.subr.bf16.mxu0 0
      %1113 = vmatpush1.bf16.msra.mxu0 0
      %1114 = vmatprep.subr.bf16.mxu0 0
      %1115 = vmatpush1.bf16.msra.mxu0 0
      %1116 = vmatprep.subr.bf16.mxu0 0
      %1117 = vmatpush1.bf16.msra.mxu0 0
      %1118 = vmatprep.subr.bf16.mxu0 0
      %1119 = vmatpush1.bf16.msra.mxu0 %v1102
      %1120 = vmatprep.subr.bf16.mxu0 0
      %1121 = vmatpush2.bf16.msra.mxu0 0
      %1122 = vmatprep.subr.bf16.mxu0 0
      %1123 = vmatpush2.bf16.msra.mxu0 0
      %1124 = vmatprep.subr.bf16.mxu0 0
      %1125 = vmatpush2.bf16.msra.mxu0 0
      %1126 = vmatprep.subr.bf16.mxu0 0
      %1127 = vmatpush2.bf16.msra.mxu0 0
      %1128 = vmatprep.subr.bf16.mxu0 0
      %1129 = vmatpush2.bf16.msra.mxu0 0
      %1130 = vmatprep.subr.bf16.mxu0 0
      %1131 = vmatpush2.bf16.msra.mxu0 0
      %1132 = vmatprep.subr.bf16.mxu0 0
      %1133 = vmatpush2.bf16.msra.mxu0 0
      %1134 = vmatprep.subr.bf16.mxu0 0
      %1135 = vmatpush2.bf16.msra.mxu0 0
      %1136 = vmatprep.mubr.bf16.mxu0 0
      %1137 = vmatmul.mubr.bf16.gmra.mxu0 %v1099
      %v1138 = vpop.f32.mrf.mxu0
      %v1139 = vadd.f32 0.0, %v1138
      %v1140 = vpop.f32.mrf.mxu0
      %v1141 = vpop.f32.mrf.mxu0
      %v1142 = vpop.f32.mrf.mxu0
      %1143 = vdwg.mxu0
      %v1144 = vpack.c.bf16 %v817, %v817
      %v1145 = vpack.c.bf16 %v863, %v863
      %v1146 = vpack.c.bf16 %v909, %v909
      %v1147 = vpack.c.bf16 %v955, %v955
      %v1148 = vpack.c.bf16 %v1001, %v1001
      %v1149 = vpack.c.bf16 %v1047, %v1047
      %v1150 = vpack.c.bf16 %v1093, %v1093
      %v1151 = vpack.c.bf16 %v1139, %v1139
      %vm1152 = vcmask 27648
      %1153 = vst.msk [vmem:[%s251] sm:$0xf] %vm1152, %v1144
      %1154 = vst.msk [vmem:[%s251 + $0x4] sm:$0xf] %vm1152, %v1145
      %1155 = vst.msk [vmem:[%s251 + $0x8] sm:$0xf] %vm1152, %v1146
      %1156 = vst.msk [vmem:[%s251 + $0xc] sm:$0xf] %vm1152, %v1147
      %1157 = vst.msk [vmem:[%s251 + $0x10] sm:$0xf] %vm1152, %v1148
      %1158 = vst.msk [vmem:[%s251 + $0x14] sm:$0xf] %vm1152, %v1149
      %1159 = vst.msk [vmem:[%s251 + $0x18] sm:$0xf] %vm1152, %v1150
      %1160 = vst.msk [vmem:[%s251 + $0x1c] sm:$0xf] %vm1152, %v1151
      %p1161 = scmp.lt.s32.totalorder %s15, 1
      %s1162 = scalar_select %p1161, %s15, 1
      %s1163 = smul.addr %s1162, 8
      %s1164 = smul.addr %s1163, 4
      %s1165 = scalar_lea.vmem %s4, %s1164
      // Predicated region
      $region37: #{transformer_decoder_layer.10} parent=35 // pred_check
        %p1166 = pneg %p137
      $region38: #{transformer_decoder_layer.10} parent=35 // pred_check_branch
        %1168 = sbr.rel (%p1166) target = $region40
      $region39: #{transformer_decoder_layer.10} parent=35 // pred_region
        _
      $region40: #{transformer_decoder_layer.10} parent=35 // pred_fallthru
        _
    $region36: #{transformer_decoder_layer.10} parent=5 // pred_fallthru
      _
    %p1169 = scmp.le.s32.totalorder 2, %s10
    // Predicated region
    $region41: #{transformer_decoder_layer.10} parent=5 // pred_check
      %p1170 = pneg %p1169
    $region42: #{transformer_decoder_layer.10} parent=5 // pred_check_branch
      %1172 = sbr.rel (%p1170) target = $region44
    $region43: #{transformer_decoder_layer.10} parent=5 // pred_region
      %s1173 = ssub.s32 %s10, 2
      // Predicated region
      $region45: #{transformer_decoder_layer.10} parent=43 // pred_check
        %p1174 = pneg %p143
      $region46: #{transformer_decoder_layer.10} parent=43 // pred_check_branch
        %1176 = sbr.rel (%p1174) target = $region48
      $region47: #{transformer_decoder_layer.10} parent=43 // pred_region
        %p1177 = scmp.lt.s32.totalorder %s16, 1
        %s1178 = scalar_select %p1177, %s16, 1
        %s1179 = smul.addr %s1178, 8
        %s1180 = smul.addr %s1179, 4
        %s1181 = scalar_lea.vmem %s4, %s1180
      $region48: #{transformer_decoder_layer.10} parent=43 // pred_fallthru
        _
    $region44: #{transformer_decoder_layer.10} parent=5 // pred_fallthru
      _
  $region6: #{transformer_decoder_layer.10} parent=0 // loop_footer
    %s14 = sadd.s32 1, %s10
  $region7: #{transformer_decoder_layer.10} parent=0 // loop_footer_branch
    %9 = sbr.rel target = $region3
  $region8: #{transformer_decoder_layer.10} parent=0 // loop_exit
    _

// kernel: transformer_decoder_layer.13
$region0: #{transformer_decoder_layer.13}
  #allocation0 [shape = 'u32[]', space=smem, size = 0x4, offset = 0x4, fixed_abs, tag = 'smem constant byte address 0x4 - core index']
  #allocation1 [shape = 'u32[144,128]{1,0:T(1,128)}', space=vmem, size = 0x12000, scoped, tag = 'internal scratch']
  %s0 = inlined_call_operand.vmem [shape: bf16[2,8,32], index: 0, kind: input, shape index: {}]
  %s1 = inlined_call_operand.vmem [shape: bf16[2,4,5,32], index: 1, kind: input, shape index: {}]
  %s2 = inlined_call_operand.vmem [shape: f32[2,4,8,5], index: 2, kind: output, shape index: {}]
  %s3 = sld [smem:[#allocation0]]
  $region41: #{transformer_decoder_layer.13} parent=0
    _
  %s5 = ssub.s32 1, %s3
  %s6 = scalar_select 0, %s5, %s3
  loop: start=0, step=1, limit=10
  $region2: #{transformer_decoder_layer.13} parent=0 // loop_pre_header
    _
  $region3: #{transformer_decoder_layer.13} parent=0 // loop_header
    %s8 = sphi 0, %s12
    %p9 = scmp.ge.s32.totalorder %s8, 10
    %s15 = sphi 0, %s27
    %s16 = sphi 0, %s23
    %s17 = sphi 0, %s15
    %s18 = sphi 0, %s16
    %s19 = sphi 0, %s17
    %s20 = sphi 0, %s18
    %s30 = sphi 0, %s32
    %s33 = sphi 0, %s30
    %s34 = sphi 0, %s33
    %s50 = sphi 0, %s34
    %s58 = sphi 0, %s60
    %s61 = sphi 0, %s58
    %s62 = sphi 0, %s61
    %s78 = sphi 0, %s62
    %s86 = sphi 0, %s88
    %s89 = sphi 0, %s86
    %s90 = sphi 0, %s89
    %s106 = sphi 0, %s90
  $region4: #{transformer_decoder_layer.13} parent=0 // loop_header_branch
    %11 = sbr.rel (%p9) target = $region8
  $region5: #{transformer_decoder_layer.13} parent=0 // loop_body
    %s13 = ssub.s32 %s8, 1
    %s14 = ssub.s32 %s8, 2
    %s21 = sadd.s32 1, %s16
    %p22 = scmp.ge.s32.totalorder %s21, 4
    %s23 = scalar_select %p22, 0, %s21
    %s24 = sadd.s32 1, %s15
    %s25 = scalar_select %p22, %s24, %s15
    %p26 = scmp.ge.s32.totalorder %s25, 2
    %s27 = scalar_select %p26, 0, %s25
    %s28 = ssub.s32 %s15, %s27
    %p29 = scmp.eq.s32.totalorder %s28, 0
    %s31 = sadd.s32 %s30, 1
    %s32 = scalar_select %p29, %s30, %s31
    %p35 = pneg %p29
    %p36 = scmp.eq.s32.totalorder %s8, 7
    %p37 = por %p35, %p36
    %p38 = scmp.ne.s32.totalorder %s30, %s33
    %p39 = scmp.eq.s32.totalorder %s8, 0
    %p40 = por %p38, %p39
    %p41 = scmp.ne.s32.totalorder %s30, %s33
    %p42 = scmp.eq.s32.totalorder %s13, 7
    %p43 = por %p41, %p42
    %p44 = scmp.ne.s32.totalorder %s33, %s34
    %p45 = scmp.eq.s32.totalorder %s13, 0
    %p46 = por %p44, %p45
    %p47 = scmp.ne.s32.totalorder %s33, %s34
    %p48 = scmp.eq.s32.totalorder %s14, 7
    %p49 = por %p47, %p48
    %p51 = scmp.ne.s32.totalorder %s34, %s50
    %p52 = scmp.eq.s32.totalorder %s14, 0
    %p53 = por %p51, %p52
    %s54 = ssub.s32 %s15, %s27
    %s55 = ssub.s32 %s16, %s23
    %s56 = sor.u32 %s54, %s55
    %p57 = scmp.eq.s32.totalorder %s56, 0
    %s59 = sadd.s32 %s58, 1
    %s60 = scalar_select %p57, %s58, %s59
    %p63 = pneg %p57
    %p64 = scmp.eq.s32.totalorder %s8, 7
    %p65 = por %p63, %p64
    %p66 = scmp.ne.s32.totalorder %s58, %s61
    %p67 = scmp.eq.s32.totalorder %s8, 0
    %p68 = por %p66, %p67
    %p69 = scmp.ne.s32.totalorder %s58, %s61
    %p70 = scmp.eq.s32.totalorder %s13, 7
    %p71 = por %p69, %p70
    %p72 = scmp.ne.s32.totalorder %s61, %s62
    %p73 = scmp.eq.s32.totalorder %s13, 0
    %p74 = por %p72, %p73
    %p75 = scmp.ne.s32.totalorder %s61, %s62
    %p76 = scmp.eq.s32.totalorder %s14, 7
    %p77 = por %p75, %p76
    %p79 = scmp.ne.s32.totalorder %s62, %s78
    %p80 = scmp.eq.s32.totalorder %s14, 0
    %p81 = por %p79, %p80
    %s82 = ssub.s32 %s15, %s27
    %s83 = ssub.s32 %s16, %s23
    %s84 = sor.u32 %s82, %s83
    %p85 = scmp.eq.s32.totalorder %s84, 0
    %s87 = sadd.s32 %s86, 1
    %s88 = scalar_select %p85, %s86, %s87
    %p91 = pneg %p85
    %p92 = scmp.eq.s32.totalorder %s8, 7
    %p93 = por %p91, %p92
    %p94 = scmp.ne.s32.totalorder %s86, %s89
    %p95 = scmp.eq.s32.totalorder %s8, 0
    %p96 = por %p94, %p95
    %p97 = scmp.ne.s32.totalorder %s86, %s89
    %p98 = scmp.eq.s32.totalorder %s13, 7
    %p99 = por %p97, %p98
    %p100 = scmp.ne.s32.totalorder %s89, %s90
    %p101 = scmp.eq.s32.totalorder %s13, 0
    %p102 = por %p100, %p101
    %p103 = scmp.ne.s32.totalorder %s89, %s90
    %p104 = scmp.eq.s32.totalorder %s14, 7
    %p105 = por %p103, %p104
    %p107 = scmp.ne.s32.totalorder %s90, %s106
    %p108 = scmp.eq.s32.totalorder %s14, 0
    %p109 = por %p107, %p108
    %p110 = scmp.le.s32.totalorder 1, %s8
    %p111 = scmp.lt.s32.totalorder %s8, 9
    %p112 = pnand %p110, %p111
    %p113 = pneg %p112
    // Predicated region
    $region9: #{transformer_decoder_layer.13} parent=5 // pred_check
      _
    $region10: #{transformer_decoder_layer.13} parent=5 // pred_check_branch
      %115 = sbr.rel (%p112) target = $region12
    $region11: #{transformer_decoder_layer.13} parent=5 // pred_region
      %s116 = ssub.s32 %s8, 1
    $region12: #{transformer_decoder_layer.13} parent=5 // pred_fallthru
      _
    %p117 = scmp.lt.s32.totalorder %s8, 8
    // Predicated region
    $region13: #{transformer_decoder_layer.13} parent=5 // pred_check
      %p118 = pneg %p117
    $region14: #{transformer_decoder_layer.13} parent=5 // pred_check_branch
      %120 = sbr.rel (%p118) target = $region16
    $region15: #{transformer_decoder_layer.13} parent=5 // pred_region
      // Predicated region
      $region17: #{transformer_decoder_layer.13} parent=15 // pred_check
        %p121 = pneg %p40
      $region18: #{transformer_decoder_layer.13} parent=15 // pred_check_branch
        %123 = sbr.rel (%p121) target = $region20
      $region19: #{transformer_decoder_layer.13} parent=15 // pred_region
        %p124 = scmp.lt.s32.totalorder %s15, 1
        %s125 = scalar_select %p124, %s15, 1
        %s126 = smul.addr %s125, 4
        %s127 = scalar_lea.vmem %s0, %s126
      $region20: #{transformer_decoder_layer.13} parent=15 // pred_fallthru
        _
      // Predicated region
      $region21: #{transformer_decoder_layer.13} parent=15 // pred_check
        %p128 = pneg %p68
      $region22: #{transformer_decoder_layer.13} parent=15 // pred_check_branch
        %130 = sbr.rel (%p128) target = $region24
      $region23: #{transformer_decoder_layer.13} parent=15 // pred_region
        %p131 = scmp.lt.s32.totalorder %s15, 1
        %s132 = scalar_select %p131, %s15, 1
        %p133 = scmp.lt.s32.totalorder %s16, 3
        %s134 = scalar_select %p133, %s16, 3
        %s135 = smul.addr %s132, 4
        %s136 = sadd.s32 %s134, %s135
        %s137 = smul.addr %s136, 4
        %s138 = scalar_lea.vmem %s1, %s137
      $region24: #{transformer_decoder_layer.13} parent=15 // pred_fallthru
        _
    $region16: #{transformer_decoder_layer.13} parent=5 // pred_fallthru
      _
    %p139 = scmp.le.s32.totalorder 1, %s8
    %p140 = scmp.lt.s32.totalorder %s8, 9
    %p141 = pnand %p139, %p140
    %p142 = pneg %p141
    // Predicated region
    $region25: #{transformer_decoder_layer.13} parent=5 // pred_check
      _
    $region26: #{transformer_decoder_layer.13} parent=5 // pred_check_branch
      %144 = sbr.rel (%p141) target = $region28
    $region27: #{transformer_decoder_layer.13} parent=5 // pred_region
      %s145 = ssub.s32 %s8, 1
      %p146 = scmp.lt.s32.totalorder %s17, 1
      %s147 = scalar_select %p146, %s17, 1
      %s148 = smul.addr %s147, 4
      %s149 = scalar_lea.vmem %s0, %s148
      %p150 = pneg %p46
      %p151 = pneg %p43
      %p152 = scmp.lt.s32.totalorder %s17, 1
      %s153 = scalar_select %p152, %s17, 1
      %p154 = scmp.lt.s32.totalorder %s18, 3
      %s155 = scalar_select %p154, %s18, 3
      %s156 = smul.addr %s153, 4
      %s157 = sadd.s32 %s155, %s156
      %s158 = smul.addr %s157, 4
      %s159 = scalar_lea.vmem %s1, %s158
      %p160 = pneg %p74
      %p161 = pneg %p71
      %p162 = pneg %p102
      %p163 = pneg %p99
      %p164 = scmp.lt.s32.totalorder %s17, 1
      %s165 = scalar_select %p164, %s17, 1
      %p166 = scmp.lt.s32.totalorder %s18, 3
      %s167 = scalar_select %p166, %s18, 3
      %s168 = smul.addr %s165, 4
      %s169 = sadd.s32 %s167, %s168
      %s170 = smul.addr %s169, 8
      %s171 = scalar_lea.vmem %s2, %s170
      %p172 = scmp.lt.s32.totalorder %s17, 1
      %s173 = scalar_select %p172, %s17, 1
      %s174 = smul.addr %s173, 4
      %s175 = scalar_lea.vmem %s0, %s174
      %p176 = scmp.lt.s32.totalorder %s17, 1
      %s177 = scalar_select %p176, %s17, 1
      %p178 = scmp.lt.s32.totalorder %s18, 3
      %s179 = scalar_select %p178, %s18, 3
      %s180 = smul.addr %s177, 4
      %s181 = sadd.s32 %s179, %s180
      %s182 = smul.addr %s181, 4
      %s183 = scalar_lea.vmem %s1, %s182
      %p184 = scmp.lt.s32.totalorder %s17, 1
      %s185 = scalar_select %p184, %s17, 1
      %p186 = scmp.lt.s32.totalorder %s18, 3
      %s187 = scalar_select %p186, %s18, 3
      %s188 = smul.addr %s185, 4
      %s189 = sadd.s32 %s187, %s188
      %s190 = smul.addr %s189, 8
      %s191 = scalar_lea.vmem %s2, %s190
      %v193 = vld [vmem:[%s175] sm:$0xf]
      %v194 = vld [vmem:[%s183] sm:$0x7]
      %vm195 = vcmask 261120
      %v197 = vsel %vm195, %v193, 0
      %v200 = vsel %vm195, %v194, 0
      %202 = vmatprep.subr.bf16.mxu0 0
      %203 = vmatpush1.bf16.xpose.msra.mxu0 0
      %204 = vmatprep.subr.bf16.mxu0 0
      %205 = vmatpush1.bf16.xpose.msra.mxu0 0
      %206 = vmatprep.subr.bf16.mxu0 0
      %207 = vmatpush1.bf16.xpose.msra.mxu0 0
      %208 = vmatprep.subr.bf16.mxu0 0
      %209 = vmatpush1.bf16.xpose.msra.mxu0 0
      %210 = vmatprep.subr.bf16.mxu0 0
      %211 = vmatpush1.bf16.xpose.msra.mxu0 0
      %212 = vmatprep.subr.bf16.mxu0 0
      %213 = vmatpush1.bf16.xpose.msra.mxu0 0
      %214 = vmatprep.subr.bf16.mxu0 0
      %215 = vmatpush1.bf16.xpose.msra.mxu0 0
      %216 = vmatprep.subr.bf16.mxu0 0
      %217 = vmatpush1.bf16.xpose.msra.mxu0 %v200
      %218 = vmatprep.subr.bf16.mxu0 0
      %219 = vmatpush2.bf16.xpose.msra.mxu0 0
      %220 = vmatprep.subr.bf16.mxu0 0
      %221 = vmatpush2.bf16.xpose.msra.mxu0 0
      %222 = vmatprep.subr.bf16.mxu0 0
      %223 = vmatpush2.bf16.xpose.msra.mxu0 0
      %224 = vmatprep.subr.bf16.mxu0 0
      %225 = vmatpush2.bf16.xpose.msra.mxu0 0
      %226 = vmatprep.subr.bf16.mxu0 0
      %227 = vmatpush2.bf16.xpose.msra.mxu0 0
      %228 = vmatprep.subr.bf16.mxu0 0
      %229 = vmatpush2.bf16.xpose.msra.mxu0 0
      %230 = vmatprep.subr.bf16.mxu0 0
      %231 = vmatpush2.bf16.xpose.msra.mxu0 0
      %232 = vmatprep.subr.bf16.mxu0 0
      %233 = vmatpush2.bf16.xpose.msra.mxu0 0
      %234 = vmatprep.mubr.bf16.mxu0 0
      %235 = vmatmul.mubr.bf16.gmra.mxu0 %v197
      %v236 = vpop.f32.mrf.mxu0
      %v237 = vadd.f32 0.0, %v236
      %v238 = vpop.f32.mrf.mxu0
      %v239 = vpop.f32.mrf.mxu0
      %v240 = vpop.f32.mrf.mxu0
      %241 = vdwg.mxu0
      %vm242 = vcmask 39936
      %v243 = vsel %vm242, %v237, -inf
      %244 = vmax.xlane.f32.xlu0 %v243
      %v245 = vpop.xlane.xlu0 %244
      %v246 = vsub.f32 %v237, %v245
      %v247 = vmul.f32 %v246, 1.442695
      %v248 = vpow.pop %v247
      %v249 = vsel %vm242, %v248, 0.0
      %250 = vadd.xlane.f32.xlu0 %v249
      %v251 = vpop.xlane.xlu0 %250
      %v252 = vrcp.pop %v251
      %v253 = vmul.f32 %v248, %v252
      %254 = vst.msk [vmem:[%s191] sm:$0xff] %vm242, %v253
      %p255 = scmp.lt.s32.totalorder %s17, 1
      %s256 = scalar_select %p255, %s17, 1
      %p257 = scmp.lt.s32.totalorder %s18, 3
      %s258 = scalar_select %p257, %s18, 3
      %s259 = smul.addr %s256, 4
      %s260 = sadd.s32 %s258, %s259
      %s261 = smul.addr %s260, 8
      %s262 = scalar_lea.vmem %s2, %s261
      // Predicated region
      $region29: #{transformer_decoder_layer.13} parent=27 // pred_check
        %p263 = pneg %p99
      $region30: #{transformer_decoder_layer.13} parent=27 // pred_check_branch
        %265 = sbr.rel (%p263) target = $region32
      $region31: #{transformer_decoder_layer.13} parent=27 // pred_region
        _
      $region32: #{transformer_decoder_layer.13} parent=27 // pred_fallthru
        _
    $region28: #{transformer_decoder_layer.13} parent=5 // pred_fallthru
      _
    %p266 = scmp.le.s32.totalorder 2, %s8
    // Predicated region
    $region33: #{transformer_decoder_layer.13} parent=5 // pred_check
      %p267 = pneg %p266
    $region34: #{transformer_decoder_layer.13} parent=5 // pred_check_branch
      %269 = sbr.rel (%p267) target = $region36
    $region35: #{transformer_decoder_layer.13} parent=5 // pred_region
      %s270 = ssub.s32 %s8, 2
      // Predicated region
      $region37: #{transformer_decoder_layer.13} parent=35 // pred_check
        %p271 = pneg %p105
      $region38: #{transformer_decoder_layer.13} parent=35 // pred_check_branch
        %273 = sbr.rel (%p271) target = $region40
      $region39: #{transformer_decoder_layer.13} parent=35 // pred_region
        %p274 = scmp.lt.s32.totalorder %s19, 1
        %s275 = scalar_select %p274, %s19, 1
        %p276 = scmp.lt.s32.totalorder %s20, 3
        %s277 = scalar_select %p276, %s20, 3
        %s278 = smul.addr %s275, 4
        %s279 = sadd.s32 %s277, %s278
        %s280 = smul.addr %s279, 8
        %s281 = scalar_lea.vmem %s2, %s280
      $region40: #{transformer_decoder_layer.13} parent=35 // pred_fallthru
        _
    $region36: #{transformer_decoder_layer.13} parent=5 // pred_fallthru
      _
  $region6: #{transformer_decoder_layer.13} parent=0 // loop_footer
    %s12 = sadd.s32 1, %s8
  $region7: #{transformer_decoder_layer.13} parent=0 // loop_footer_branch
    %7 = sbr.rel target = $region3
  $region8: #{transformer_decoder_layer.13} parent=0 // loop_exit
    _

// kernel: transformer_decoder_layer.15
$region0: #{transformer_decoder_layer.15}
  #allocation0 [shape = 'u32[]', space=smem, size = 0x4, offset = 0x4, fixed_abs, tag = 'smem constant byte address 0x4 - core index']
  #allocation1 [shape = 'u32[144,128]{1,0:T(1,128)}', space=vmem, size = 0x12000, scoped, tag = 'internal scratch']
  %s0 = inlined_call_operand.vmem [shape: bf16[2,8,32], index: 0, kind: input, shape index: {}]
  %s1 = inlined_call_operand.vmem [shape: bf16[2,2,3,32], index: 1, kind: input, shape index: {}]
  %s2 = inlined_call_operand.vmem [shape: f32[2,2,8,3], index: 2, kind: output, shape index: {}]
  %s3 = sld [smem:[#allocation0]]
  $region41: #{transformer_decoder_layer.15} parent=0
    _
  %s5 = ssub.s32 1, %s3
  %s6 = scalar_select 0, %s5, %s3
  loop: start=0, step=1, limit=6
  $region2: #{transformer_decoder_layer.15} parent=0 // loop_pre_header
    _
  $region3: #{transformer_decoder_layer.15} parent=0 // loop_header
    %s8 = sphi 0, %s12
    %p9 = scmp.ge.s32.totalorder %s8, 6
    %s15 = sphi 0, %s27
    %s16 = sphi 0, %s23
    %s17 = sphi 0, %s15
    %s18 = sphi 0, %s16
    %s19 = sphi 0, %s17
    %s20 = sphi 0, %s18
    %s30 = sphi 0, %s32
    %s33 = sphi 0, %s30
    %s34 = sphi 0, %s33
    %s50 = sphi 0, %s34
    %s58 = sphi 0, %s60
    %s61 = sphi 0, %s58
    %s62 = sphi 0, %s61
    %s78 = sphi 0, %s62
    %s86 = sphi 0, %s88
    %s89 = sphi 0, %s86
    %s90 = sphi 0, %s89
    %s106 = sphi 0, %s90
  $region4: #{transformer_decoder_layer.15} parent=0 // loop_header_branch
    %11 = sbr.rel (%p9) target = $region8
  $region5: #{transformer_decoder_layer.15} parent=0 // loop_body
    %s13 = ssub.s32 %s8, 1
    %s14 = ssub.s32 %s8, 2
    %s21 = sadd.s32 1, %s16
    %p22 = scmp.ge.s32.totalorder %s21, 2
    %s23 = scalar_select %p22, 0, %s21
    %s24 = sadd.s32 1, %s15
    %s25 = scalar_select %p22, %s24, %s15
    %p26 = scmp.ge.s32.totalorder %s25, 2
    %s27 = scalar_select %p26, 0, %s25
    %s28 = ssub.s32 %s15, %s27
    %p29 = scmp.eq.s32.totalorder %s28, 0
    %s31 = sadd.s32 %s30, 1
    %s32 = scalar_select %p29, %s30, %s31
    %p35 = pneg %p29
    %p36 = scmp.eq.s32.totalorder %s8, 3
    %p37 = por %p35, %p36
    %p38 = scmp.ne.s32.totalorder %s30, %s33
    %p39 = scmp.eq.s32.totalorder %s8, 0
    %p40 = por %p38, %p39
    %p41 = scmp.ne.s32.totalorder %s30, %s33
    %p42 = scmp.eq.s32.totalorder %s13, 3
    %p43 = por %p41, %p42
    %p44 = scmp.ne.s32.totalorder %s33, %s34
    %p45 = scmp.eq.s32.totalorder %s13, 0
    %p46 = por %p44, %p45
    %p47 = scmp.ne.s32.totalorder %s33, %s34
    %p48 = scmp.eq.s32.totalorder %s14, 3
    %p49 = por %p47, %p48
    %p51 = scmp.ne.s32.totalorder %s34, %s50
    %p52 = scmp.eq.s32.totalorder %s14, 0
    %p53 = por %p51, %p52
    %s54 = ssub.s32 %s15, %s27
    %s55 = ssub.s32 %s16, %s23
    %s56 = sor.u32 %s54, %s55
    %p57 = scmp.eq.s32.totalorder %s56, 0
    %s59 = sadd.s32 %s58, 1
    %s60 = scalar_select %p57, %s58, %s59
    %p63 = pneg %p57
    %p64 = scmp.eq.s32.totalorder %s8, 3
    %p65 = por %p63, %p64
    %p66 = scmp.ne.s32.totalorder %s58, %s61
    %p67 = scmp.eq.s32.totalorder %s8, 0
    %p68 = por %p66, %p67
    %p69 = scmp.ne.s32.totalorder %s58, %s61
    %p70 = scmp.eq.s32.totalorder %s13, 3
    %p71 = por %p69, %p70
    %p72 = scmp.ne.s32.totalorder %s61, %s62
    %p73 = scmp.eq.s32.totalorder %s13, 0
    %p74 = por %p72, %p73
    %p75 = scmp.ne.s32.totalorder %s61, %s62
    %p76 = scmp.eq.s32.totalorder %s14, 3
    %p77 = por %p75, %p76
    %p79 = scmp.ne.s32.totalorder %s62, %s78
    %p80 = scmp.eq.s32.totalorder %s14, 0
    %p81 = por %p79, %p80
    %s82 = ssub.s32 %s15, %s27
    %s83 = ssub.s32 %s16, %s23
    %s84 = sor.u32 %s82, %s83
    %p85 = scmp.eq.s32.totalorder %s84, 0
    %s87 = sadd.s32 %s86, 1
    %s88 = scalar_select %p85, %s86, %s87
    %p91 = pneg %p85
    %p92 = scmp.eq.s32.totalorder %s8, 3
    %p93 = por %p91, %p92
    %p94 = scmp.ne.s32.totalorder %s86, %s89
    %p95 = scmp.eq.s32.totalorder %s8, 0
    %p96 = por %p94, %p95
    %p97 = scmp.ne.s32.totalorder %s86, %s89
    %p98 = scmp.eq.s32.totalorder %s13, 3
    %p99 = por %p97, %p98
    %p100 = scmp.ne.s32.totalorder %s89, %s90
    %p101 = scmp.eq.s32.totalorder %s13, 0
    %p102 = por %p100, %p101
    %p103 = scmp.ne.s32.totalorder %s89, %s90
    %p104 = scmp.eq.s32.totalorder %s14, 3
    %p105 = por %p103, %p104
    %p107 = scmp.ne.s32.totalorder %s90, %s106
    %p108 = scmp.eq.s32.totalorder %s14, 0
    %p109 = por %p107, %p108
    %p110 = scmp.le.s32.totalorder 1, %s8
    %p111 = scmp.lt.s32.totalorder %s8, 5
    %p112 = pnand %p110, %p111
    %p113 = pneg %p112
    // Predicated region
    $region9: #{transformer_decoder_layer.15} parent=5 // pred_check
      _
    $region10: #{transformer_decoder_layer.15} parent=5 // pred_check_branch
      %115 = sbr.rel (%p112) target = $region12
    $region11: #{transformer_decoder_layer.15} parent=5 // pred_region
      %s116 = ssub.s32 %s8, 1
    $region12: #{transformer_decoder_layer.15} parent=5 // pred_fallthru
      _
    %p117 = scmp.lt.s32.totalorder %s8, 4
    // Predicated region
    $region13: #{transformer_decoder_layer.15} parent=5 // pred_check
      %p118 = pneg %p117
    $region14: #{transformer_decoder_layer.15} parent=5 // pred_check_branch
      %120 = sbr.rel (%p118) target = $region16
    $region15: #{transformer_decoder_layer.15} parent=5 // pred_region
      // Predicated region
      $region17: #{transformer_decoder_layer.15} parent=15 // pred_check
        %p121 = pneg %p40
      $region18: #{transformer_decoder_layer.15} parent=15 // pred_check_branch
        %123 = sbr.rel (%p121) target = $region20
      $region19: #{transformer_decoder_layer.15} parent=15 // pred_region
        %p124 = scmp.lt.s32.totalorder %s15, 1
        %s125 = scalar_select %p124, %s15, 1
        %s126 = smul.addr %s125, 4
        %s127 = scalar_lea.vmem %s0, %s126
      $region20: #{transformer_decoder_layer.15} parent=15 // pred_fallthru
        _
      // Predicated region
      $region21: #{transformer_decoder_layer.15} parent=15 // pred_check
        %p128 = pneg %p68
      $region22: #{transformer_decoder_layer.15} parent=15 // pred_check_branch
        %130 = sbr.rel (%p128) target = $region24
      $region23: #{transformer_decoder_layer.15} parent=15 // pred_region
        %p131 = scmp.lt.s32.totalorder %s15, 1
        %s132 = scalar_select %p131, %s15, 1
        %p133 = scmp.lt.s32.totalorder %s16, 1
        %s134 = scalar_select %p133, %s16, 1
        %s135 = smul.addr %s132, 2
        %s136 = sadd.s32 %s134, %s135
        %s137 = smul.addr %s136, 2
        %s138 = scalar_lea.vmem %s1, %s137
      $region24: #{transformer_decoder_layer.15} parent=15 // pred_fallthru
        _
    $region16: #{transformer_decoder_layer.15} parent=5 // pred_fallthru
      _
    %p139 = scmp.le.s32.totalorder 1, %s8
    %p140 = scmp.lt.s32.totalorder %s8, 5
    %p141 = pnand %p139, %p140
    %p142 = pneg %p141
    // Predicated region
    $region25: #{transformer_decoder_layer.15} parent=5 // pred_check
      _
    $region26: #{transformer_decoder_layer.15} parent=5 // pred_check_branch
      %144 = sbr.rel (%p141) target = $region28
    $region27: #{transformer_decoder_layer.15} parent=5 // pred_region
      %s145 = ssub.s32 %s8, 1
      %p146 = scmp.lt.s32.totalorder %s17, 1
      %s147 = scalar_select %p146, %s17, 1
      %s148 = smul.addr %s147, 4
      %s149 = scalar_lea.vmem %s0, %s148
      %p150 = pneg %p46
      %p151 = pneg %p43
      %p152 = scmp.lt.s32.totalorder %s17, 1
      %s153 = scalar_select %p152, %s17, 1
      %p154 = scmp.lt.s32.totalorder %s18, 1
      %s155 = scalar_select %p154, %s18, 1
      %s156 = smul.addr %s153, 2
      %s157 = sadd.s32 %s155, %s156
      %s158 = smul.addr %s157, 2
      %s159 = scalar_lea.vmem %s1, %s158
      %p160 = pneg %p74
      %p161 = pneg %p71
      %p162 = pneg %p102
      %p163 = pneg %p99
      %p164 = scmp.lt.s32.totalorder %s17, 1
      %s165 = scalar_select %p164, %s17, 1
      %p166 = scmp.lt.s32.totalorder %s18, 1
      %s167 = scalar_select %p166, %s18, 1
      %s168 = smul.addr %s165, 2
      %s169 = sadd.s32 %s167, %s168
      %s170 = smul.addr %s169, 8
      %s171 = scalar_lea.vmem %s2, %s170
      %p172 = scmp.lt.s32.totalorder %s17, 1
      %s173 = scalar_select %p172, %s17, 1
      %s174 = smul.addr %s173, 4
      %s175 = scalar_lea.vmem %s0, %s174
      %p176 = scmp.lt.s32.totalorder %s17, 1
      %s177 = scalar_select %p176, %s17, 1
      %p178 = scmp.lt.s32.totalorder %s18, 1
      %s179 = scalar_select %p178, %s18, 1
      %s180 = smul.addr %s177, 2
      %s181 = sadd.s32 %s179, %s180
      %s182 = smul.addr %s181, 2
      %s183 = scalar_lea.vmem %s1, %s182
      %p184 = scmp.lt.s32.totalorder %s17, 1
      %s185 = scalar_select %p184, %s17, 1
      %p186 = scmp.lt.s32.totalorder %s18, 1
      %s187 = scalar_select %p186, %s18, 1
      %s188 = smul.addr %s185, 2
      %s189 = sadd.s32 %s187, %s188
      %s190 = smul.addr %s189, 8
      %s191 = scalar_lea.vmem %s2, %s190
      %v193 = vld [vmem:[%s175] sm:$0xf]
      %v194 = vld [vmem:[%s183] sm:$0x3]
      %vm195 = vcmask 261120
      %v197 = vsel %vm195, %v193, 0
      %v200 = vsel %vm195, %v194, 0
      %202 = vmatprep.subr.bf16.mxu0 0
      %203 = vmatpush1.bf16.xpose.msra.mxu0 0
      %204 = vmatprep.subr.bf16.mxu0 0
      %205 = vmatpush1.bf16.xpose.msra.mxu0 0
      %206 = vmatprep.subr.bf16.mxu0 0
      %207 = vmatpush1.bf16.xpose.msra.mxu0 0
      %208 = vmatprep.subr.bf16.mxu0 0
      %209 = vmatpush1.bf16.xpose.msra.mxu0 0
      %210 = vmatprep.subr.bf16.mxu0 0
      %211 = vmatpush1.bf16.xpose.msra.mxu0 0
      %212 = vmatprep.subr.bf16.mxu0 0
      %213 = vmatpush1.bf16.xpose.msra.mxu0 0
      %214 = vmatprep.subr.bf16.mxu0 0
      %215 = vmatpush1.bf16.xpose.msra.mxu0 0
      %216 = vmatprep.subr.bf16.mxu0 0
      %217 = vmatpush1.bf16.xpose.msra.mxu0 %v200
      %218 = vmatprep.subr.bf16.mxu0 0
      %219 = vmatpush2.bf16.xpose.msra.mxu0 0
      %220 = vmatprep.subr.bf16.mxu0 0
      %221 = vmatpush2.bf16.xpose.msra.mxu0 0
      %222 = vmatprep.subr.bf16.mxu0 0
      %223 = vmatpush2.bf16.xpose.msra.mxu0 0
      %224 = vmatprep.subr.bf16.mxu0 0
      %225 = vmatpush2.bf16.xpose.msra.mxu0 0
      %226 = vmatprep.subr.bf16.mxu0 0
      %227 = vmatpush2.bf16.xpose.msra.mxu0 0
      %228 = vmatprep.subr.bf16.mxu0 0
      %229 = vmatpush2.bf16.xpose.msra.mxu0 0
      %230 = vmatprep.subr.bf16.mxu0 0
      %231 = vmatpush2.bf16.xpose.msra.mxu0 0
      %232 = vmatprep.subr.bf16.mxu0 0
      %233 = vmatpush2.bf16.xpose.msra.mxu0 0
      %234 = vmatprep.mubr.bf16.mxu0 0
      %235 = vmatmul.mubr.bf16.gmra.mxu0 %v197
      %v236 = vpop.f32.mrf.mxu0
      %v237 = vadd.f32 0.0, %v236
      %v238 = vpop.f32.mrf.mxu0
      %v239 = vpop.f32.mrf.mxu0
      %v240 = vpop.f32.mrf.mxu0
      %241 = vdwg.mxu0
      %vm242 = vcmask 23552
      %v243 = vsel %vm242, %v237, -inf
      %244 = vmax.xlane.f32.xlu0 %v243
      %v245 = vpop.xlane.xlu0 %244
      %v246 = vsub.f32 %v237, %v245
      %v247 = vmul.f32 %v246, 1.442695
      %v248 = vpow.pop %v247
      %v249 = vsel %vm242, %v248, 0.0
      %250 = vadd.xlane.f32.xlu0 %v249
      %v251 = vpop.xlane.xlu0 %250
      %v252 = vrcp.pop %v251
      %v253 = vmul.f32 %v248, %v252
      %254 = vst.msk [vmem:[%s191] sm:$0xff] %vm242, %v253
      %p255 = scmp.lt.s32.totalorder %s17, 1
      %s256 = scalar_select %p255, %s17, 1
      %p257 = scmp.lt.s32.totalorder %s18, 1
      %s258 = scalar_select %p257, %s18, 1
      %s259 = smul.addr %s256, 2
      %s260 = sadd.s32 %s258, %s259
      %s261 = smul.addr %s260, 8
      %s262 = scalar_lea.vmem %s2, %s261
      // Predicated region
      $region29: #{transformer_decoder_layer.15} parent=27 // pred_check
        %p263 = pneg %p99
      $region30: #{transformer_decoder_layer.15} parent=27 // pred_check_branch
        %265 = sbr.rel (%p263) target = $region32
      $region31: #{transformer_decoder_layer.15} parent=27 // pred_region
        _
      $region32: #{transformer_decoder_layer.15} parent=27 // pred_fallthru
        _
    $region28: #{transformer_decoder_layer.15} parent=5 // pred_fallthru
      _
    %p266 = scmp.le.s32.totalorder 2, %s8
    // Predicated region
    $region33: #{transformer_decoder_layer.15} parent=5 // pred_check
      %p267 = pneg %p266
    $region34: #{transformer_decoder_layer.15} parent=5 // pred_check_branch
      %269 = sbr.rel (%p267) target = $region36
    $region35: #{transformer_decoder_layer.15} parent=5 // pred_region
      %s270 = ssub.s32 %s8, 2
      // Predicated region
      $region37: #{transformer_decoder_layer.15} parent=35 // pred_check
        %p271 = pneg %p105
      $region38: #{transformer_decoder_layer.15} parent=35 // pred_check_branch
        %273 = sbr.rel (%p271) target = $region40
      $region39: #{transformer_decoder_layer.15} parent=35 // pred_region
        %p274 = scmp.lt.s32.totalorder %s19, 1
        %s275 = scalar_select %p274, %s19, 1
        %p276 = scmp.lt.s32.totalorder %s20, 1
        %s277 = scalar_select %p276, %s20, 1
        %s278 = smul.addr %s275, 2
        %s279 = sadd.s32 %s277, %s278
        %s280 = smul.addr %s279, 8
        %s281 = scalar_lea.vmem %s2, %s280
      $region40: #{transformer_decoder_layer.15} parent=35 // pred_fallthru
        _
    $region36: #{transformer_decoder_layer.15} parent=5 // pred_fallthru
      _
  $region6: #{transformer_decoder_layer.15} parent=0 // loop_footer
    %s12 = sadd.s32 1, %s8
  $region7: #{transformer_decoder_layer.15} parent=0 // loop_footer_branch
    %7 = sbr.rel target = $region3
  $region8: #{transformer_decoder_layer.15} parent=0 // loop_exit
    _

// kernel: transformer_decoder_layer.16
$region0: #{transformer_decoder_layer.16}
  #allocation0 [shape = 'u32[]', space=smem, size = 0x4, offset = 0x4, fixed_abs, tag = 'smem constant byte address 0x4 - core index']
  #allocation1 [shape = 'u32[144,128]{1,0:T(1,128)}', space=vmem, size = 0x12000, scoped, tag = 'internal scratch']
  %s0 = inlined_call_operand.vmem [shape: f32[2,8,32], index: 0, kind: input, shape index: {}]
  %s1 = inlined_call_operand.vmem [shape: bf16[2,49,32], index: 1, kind: input, shape index: {}]
  %s2 = inlined_call_operand.vmem [shape: f32[2,8,49], index: 2, kind: input, shape index: {}]
  %s3 = inlined_call_operand.vmem [shape: bf16[32,32], index: 3, kind: input, shape index: {}]
  %s4 = inlined_call_operand.vmem [shape: bf16[32,32], index: 4, kind: input, shape index: {}]
  %s5 = inlined_call_operand.vmem [shape: f32[2,8,32], index: 5, kind: output, shape index: {}]
  %s6 = sld [smem:[#allocation0]]
  $region53: #{transformer_decoder_layer.16} parent=0
    _
  %s8 = ssub.s32 1, %s6
  %s9 = scalar_select 0, %s8, %s6
  loop: start=0, step=1, limit=4
  $region2: #{transformer_decoder_layer.16} parent=0 // loop_pre_header
    _
  $region3: #{transformer_decoder_layer.16} parent=0 // loop_header
    %s11 = sphi 0, %s15
    %p12 = scmp.ge.s32.totalorder %s11, 4
    %s21 = sphi 0, %s23
    %s24 = sphi 0, %s21
    %s25 = sphi 0, %s24
    %s41 = sphi 0, %s25
    %s47 = sphi 0, %s49
    %s50 = sphi 0, %s47
    %s51 = sphi 0, %s50
    %s67 = sphi 0, %s51
    %s73 = sphi 0, %s75
    %s76 = sphi 0, %s73
    %s77 = sphi 0, %s76
    %s93 = sphi 0, %s77
    %s97 = sphi 0, %s97
    %s99 = sphi 0, %s97
    %s100 = sphi 0, %s99
    %s114 = sphi 0, %s100
    %s118 = sphi 0, %s118
    %s120 = sphi 0, %s118
    %s121 = sphi 0, %s120
    %s135 = sphi 0, %s121
    %s141 = sphi 0, %s143
    %s144 = sphi 0, %s141
    %s145 = sphi 0, %s144
    %s161 = sphi 0, %s145
  $region4: #{transformer_decoder_layer.16} parent=0 // loop_header_branch
    %14 = sbr.rel (%p12) target = $region8
  $region5: #{transformer_decoder_layer.16} parent=0 // loop_body
    %s16 = ssub.s32 %s11, 1
    %s17 = ssub.s32 %s11, 2
    %s18 = sadd.s32 %s11, 1
    %s19 = ssub.s32 %s11, %s18
    %p20 = scmp.eq.s32.totalorder %s19, 0
    %s22 = sadd.s32 %s21, 1
    %s23 = scalar_select %p20, %s21, %s22
    %p26 = pneg %p20
    %p27 = scmp.eq.s32.totalorder %s11, 1
    %p28 = por %p26, %p27
    %p29 = scmp.ne.s32.totalorder %s21, %s24
    %p30 = scmp.eq.s32.totalorder %s11, 0
    %p31 = por %p29, %p30
    %p32 = scmp.ne.s32.totalorder %s21, %s24
    %p33 = scmp.eq.s32.totalorder %s16, 1
    %p34 = por %p32, %p33
    %p35 = scmp.ne.s32.totalorder %s24, %s25
    %p36 = scmp.eq.s32.totalorder %s16, 0
    %p37 = por %p35, %p36
    %p38 = scmp.ne.s32.totalorder %s24, %s25
    %p39 = scmp.eq.s32.totalorder %s17, 1
    %p40 = por %p38, %p39
    %p42 = scmp.ne.s32.totalorder %s25, %s41
    %p43 = scmp.eq.s32.totalorder %s17, 0
    %p44 = por %p42, %p43
    %s45 = ssub.s32 %s11, %s18
    %p46 = scmp.eq.s32.totalorder %s45, 0
    %s48 = sadd.s32 %s47, 1
    %s49 = scalar_select %p46, %s47, %s48
    %p52 = pneg %p46
    %p53 = scmp.eq.s32.totalorder %s11, 1
    %p54 = por %p52, %p53
    %p55 = scmp.ne.s32.totalorder %s47, %s50
    %p56 = scmp.eq.s32.totalorder %s11, 0
    %p57 = por %p55, %p56
    %p58 = scmp.ne.s32.totalorder %s47, %s50
    %p59 = scmp.eq.s32.totalorder %s16, 1
    %p60 = por %p58, %p59
    %p61 = scmp.ne.s32.totalorder %s50, %s51
    %p62 = scmp.eq.s32.totalorder %s16, 0
    %p63 = por %p61, %p62
    %p64 = scmp.ne.s32.totalorder %s50, %s51
    %p65 = scmp.eq.s32.totalorder %s17, 1
    %p66 = por %p64, %p65
    %p68 = scmp.ne.s32.totalorder %s51, %s67
    %p69 = scmp.eq.s32.totalorder %s17, 0
    %p70 = por %p68, %p69
    %s71 = ssub.s32 %s11, %s18
    %p72 = scmp.eq.s32.totalorder %s71, 0
    %s74 = sadd.s32 %s73, 1
    %s75 = scalar_select %p72, %s73, %s74
    %p78 = pneg %p72
    %p79 = scmp.eq.s32.totalorder %s11, 1
    %p80 = por %p78, %p79
    %p81 = scmp.ne.s32.totalorder %s73, %s76
    %p82 = scmp.eq.s32.totalorder %s11, 0
    %p83 = por %p81, %p82
    %p84 = scmp.ne.s32.totalorder %s73, %s76
    %p85 = scmp.eq.s32.totalorder %s16, 1
    %p86 = por %p84, %p85
    %p87 = scmp.ne.s32.totalorder %s76, %s77
    %p88 = scmp.eq.s32.totalorder %s16, 0
    %p89 = por %p87, %p88
    %p90 = scmp.ne.s32.totalorder %s76, %s77
    %p91 = scmp.eq.s32.totalorder %s17, 1
    %p92 = por %p90, %p91
    %p94 = scmp.ne.s32.totalorder %s77, %s93
    %p95 = scmp.eq.s32.totalorder %s17, 0
    %p96 = por %p94, %p95
    %s98 = sadd.s32 %s97, 1
    %p101 = scmp.eq.s32.totalorder %s11, 1
    %p102 = scmp.ne.s32.totalorder %s97, %s99
    %p103 = scmp.eq.s32.totalorder %s11, 0
    %p104 = por %p102, %p103
    %p105 = scmp.ne.s32.totalorder %s97, %s99
    %p106 = scmp.eq.s32.totalorder %s16, 1
    %p107 = por %p105, %p106
    %p108 = scmp.ne.s32.totalorder %s99, %s100
    %p109 = scmp.eq.s32.totalorder %s16, 0
    %p110 = por %p108, %p109
    %p111 = scmp.ne.s32.totalorder %s99, %s100
    %p112 = scmp.eq.s32.totalorder %s17, 1
    %p113 = por %p111, %p112
    %p115 = scmp.ne.s32.totalorder %s100, %s114
    %p116 = scmp.eq.s32.totalorder %s17, 0
    %p117 = por %p115, %p116
    %s119 = sadd.s32 %s118, 1
    %p122 = scmp.eq.s32.totalorder %s11, 1
    %p123 = scmp.ne.s32.totalorder %s118, %s120
    %p124 = scmp.eq.s32.totalorder %s11, 0
    %p125 = por %p123, %p124
    %p126 = scmp.ne.s32.totalorder %s118, %s120
    %p127 = scmp.eq.s32.totalorder %s16, 1
    %p128 = por %p126, %p127
    %p129 = scmp.ne.s32.totalorder %s120, %s121
    %p130 = scmp.eq.s32.totalorder %s16, 0
    %p131 = por %p129, %p130
    %p132 = scmp.ne.s32.totalorder %s120, %s121
    %p133 = scmp.eq.s32.totalorder %s17, 1
    %p134 = por %p132, %p133
    %p136 = scmp.ne.s32.totalorder %s121, %s135
    %p137 = scmp.eq.s32.totalorder %s17, 0
    %p138 = por %p136, %p137
    %s139 = ssub.s32 %s11, %s18
    %p140 = scmp.eq.s32.totalorder %s139, 0
    %s142 = sadd.s32 %s141, 1
    %s143 = scalar_select %p140, %s141, %s142
    %p146 = pneg %p140
    %p147 = scmp.eq.s32.totalorder %s11, 1
    %p148 = por %p146, %p147
    %p149 = scmp.ne.s32.totalorder %s141, %s144
    %p150 = scmp.eq.s32.totalorder %s11, 0
    %p151 = por %p149, %p150
    %p152 = scmp.ne.s32.totalorder %s141, %s144
    %p153 = scmp.eq.s32.totalorder %s16, 1
    %p154 = por %p152, %p153
    %p155 = scmp.ne.s32.totalorder %s144, %s145
    %p156 = scmp.eq.s32.totalorder %s16, 0
    %p157 = por %p155, %p156
    %p158 = scmp.ne.s32.totalorder %s144, %s145
    %p159 = scmp.eq.s32.totalorder %s17, 1
    %p160 = por %p158, %p159
    %p162 = scmp.ne.s32.totalorder %s145, %s161
    %p163 = scmp.eq.s32.totalorder %s17, 0
    %p164 = por %p162, %p163
    %p165 = scmp.le.s32.totalorder 1, %s11
    %p166 = scmp.lt.s32.totalorder %s11, 3
    %p167 = pnand %p165, %p166
    %p168 = pneg %p167
    // Predicated region
    $region9: #{transformer_decoder_layer.16} parent=5 // pred_check
      _
    $region10: #{transformer_decoder_layer.16} parent=5 // pred_check_branch
      %170 = sbr.rel (%p167) target = $region12
    $region11: #{transformer_decoder_layer.16} parent=5 // pred_region
      %s171 = ssub.s32 %s11, 1
      // Predicated region
      $region13: #{transformer_decoder_layer.16} parent=11 // pred_check
        %p172 = pneg %p110
      $region14: #{transformer_decoder_layer.16} parent=11 // pred_check_branch
        %174 = sbr.rel (%p172) target = $region16
      $region15: #{transformer_decoder_layer.16} parent=11 // pred_region
        _
      $region16: #{transformer_decoder_layer.16} parent=11 // pred_fallthru
        _
      // Predicated region
      $region17: #{transformer_decoder_layer.16} parent=11 // pred_check
        %p175 = pneg %p131
      $region18: #{transformer_decoder_layer.16} parent=11 // pred_check_branch
        %177 = sbr.rel (%p175) target = $region20
      $region19: #{transformer_decoder_layer.16} parent=11 // pred_region
        _
      $region20: #{transformer_decoder_layer.16} parent=11 // pred_fallthru
        _
    $region12: #{transformer_decoder_layer.16} parent=5 // pred_fallthru
      _
    %p178 = scmp.lt.s32.totalorder %s11, 2
    // Predicated region
    $region21: #{transformer_decoder_layer.16} parent=5 // pred_check
      %p179 = pneg %p178
    $region22: #{transformer_decoder_layer.16} parent=5 // pred_check_branch
      %181 = sbr.rel (%p179) target = $region24
    $region23: #{transformer_decoder_layer.16} parent=5 // pred_region
      // Predicated region
      $region25: #{transformer_decoder_layer.16} parent=23 // pred_check
        %p182 = pneg %p31
      $region26: #{transformer_decoder_layer.16} parent=23 // pred_check_branch
        %184 = sbr.rel (%p182) target = $region28
      $region27: #{transformer_decoder_layer.16} parent=23 // pred_region
        %p185 = scmp.lt.s32.totalorder %s11, 1
        %s186 = scalar_select %p185, %s11, 1
        %s187 = smul.addr %s186, 8
        %s188 = scalar_lea.vmem %s0, %s187
      $region28: #{transformer_decoder_layer.16} parent=23 // pred_fallthru
        _
      // Predicated region
      $region29: #{transformer_decoder_layer.16} parent=23 // pred_check
        %p189 = pneg %p57
      $region30: #{transformer_decoder_layer.16} parent=23 // pred_check_branch
        %191 = sbr.rel (%p189) target = $region32
      $region31: #{transformer_decoder_layer.16} parent=23 // pred_region
        %p192 = scmp.lt.s32.totalorder %s11, 1
        %s193 = scalar_select %p192, %s11, 1
        %s194 = smul.addr %s193, 7
        %s195 = smul.addr %s194, 4
        %s196 = scalar_lea.vmem %s1, %s195
      $region32: #{transformer_decoder_layer.16} parent=23 // pred_fallthru
        _
      // Predicated region
      $region33: #{transformer_decoder_layer.16} parent=23 // pred_check
        %p197 = pneg %p83
      $region34: #{transformer_decoder_layer.16} parent=23 // pred_check_branch
        %199 = sbr.rel (%p197) target = $region36
      $region35: #{transformer_decoder_layer.16} parent=23 // pred_region
        %p200 = scmp.lt.s32.totalorder %s11, 1
        %s201 = scalar_select %p200, %s11, 1
        %s202 = smul.addr %s201, 8
        %s203 = scalar_lea.vmem %s2, %s202
      $region36: #{transformer_decoder_layer.16} parent=23 // pred_fallthru
        _
    $region24: #{transformer_decoder_layer.16} parent=5 // pred_fallthru
      _
    %p204 = scmp.le.s32.totalorder 1, %s11
    %p205 = scmp.lt.s32.totalorder %s11, 3
    %p206 = pnand %p204, %p205
    %p207 = pneg %p206
    // Predicated region
    $region37: #{transformer_decoder_layer.16} parent=5 // pred_check
      _
    $region38: #{transformer_decoder_layer.16} parent=5 // pred_check_branch
      %209 = sbr.rel (%p206) target = $region40
    $region39: #{transformer_decoder_layer.16} parent=5 // pred_region
      %s210 = ssub.s32 %s11, 1
      %p211 = scmp.lt.s32.totalorder %s16, 1
      %s212 = scalar_select %p211, %s16, 1
      %s213 = smul.addr %s212, 8
      %s214 = scalar_lea.vmem %s0, %s213
      %p215 = pneg %p37
      %p216 = pneg %p34
      %p217 = scmp.lt.s32.totalorder %s16, 1
      %s218 = scalar_select %p217, %s16, 1
      %s219 = smul.addr %s218, 7
      %s220 = smul.addr %s219, 4
      %s221 = scalar_lea.vmem %s1, %s220
      %p222 = pneg %p63
      %p223 = pneg %p60
      %p224 = scmp.lt.s32.totalorder %s16, 1
      %s225 = scalar_select %p224, %s16, 1
      %s226 = smul.addr %s225, 8
      %s227 = scalar_lea.vmem %s2, %s226
      %p228 = pneg %p89
      %p229 = pneg %p86
      %p230 = pneg %p110
      %p231 = pneg %p107
      %p232 = pneg %p131
      %p233 = pneg %p128
      %p234 = pneg %p157
      %p235 = pneg %p154
      %p236 = scmp.lt.s32.totalorder %s16, 1
      %s237 = scalar_select %p236, %s16, 1
      %s238 = smul.addr %s237, 8
      %s239 = scalar_lea.vmem %s5, %s238
      %p240 = scmp.lt.s32.totalorder %s16, 1
      %s241 = scalar_select %p240, %s16, 1
      %s242 = smul.addr %s241, 8
      %s243 = scalar_lea.vmem %s0, %s242
      %p244 = scmp.lt.s32.totalorder %s16, 1
      %s245 = scalar_select %p244, %s16, 1
      %s246 = smul.addr %s245, 7
      %s247 = smul.addr %s246, 4
      %s248 = scalar_lea.vmem %s1, %s247
      %p249 = scmp.lt.s32.totalorder %s16, 1
      %s250 = scalar_select %p249, %s16, 1
      %s251 = smul.addr %s250, 8
      %s252 = scalar_lea.vmem %s2, %s251
      %p253 = scmp.lt.s32.totalorder %s16, 1
      %s254 = scalar_select %p253, %s16, 1
      %s255 = smul.addr %s254, 8
      %s256 = scalar_lea.vmem %s5, %s255
      %v258 = vld [vmem:[%s252] sm:$0xff]
      %v259 = vpack.c.bf16 %v258, %v258
      %v260 = vld [vmem:[%s248] sm:$0xf]
      %v261 = vld [vmem:[%s248 + $0x4] sm:$0xf]
      %v262 = vld [vmem:[%s248 + $0x8] sm:$0xf]
      %v263 = vld [vmem:[%s248 + $0xc] sm:$0xf]
      %v264 = vld [vmem:[%s248 + $0x10] sm:$0xf]
      %v265 = vld [vmem:[%s248 + $0x14] sm:$0xf]
      %v266 = vld [vmem:[%s248 + $0x18] sm:$0x1]
      %v274 = vunpack.c.l.b16 %v260
      %v275 = vunpack.c.l.b16 %v261
      %v276 = vunpack.c.l.b16 %v262
      %v277 = vunpack.c.l.b16 %v263
      %v278 = vunpack.c.l.b16 %v264
      %v279 = vunpack.c.l.b16 %v265
      %v280 = vunpack.c.l.b16 %v266
      %v281 = vpack.c.b16 %v275, %v274
      %v282 = vpack.c.b16 %v277, %v276
      %v283 = vpack.c.b16 %v279, %v278
      %v284 = vpack.c.b16 %v280, %v280
      %vm288 = vcmask 400384
      %v290 = vsel %vm288, %v259, 0
      %vm292 = vcmask 1040384
      %v293 = vsel 0, 4294967295, 65535
      %v294 = vsel %vm292, %v293, 0
      %v296 = vand.u32 %v284, %v294
      %298 = vmatprep.subr.bf16.mxu0 0
      %299 = vmatpush1.bf16.msra.mxu0 0
      %300 = vmatprep.subr.bf16.mxu0 0
      %301 = vmatpush1.bf16.msra.mxu0 0
      %302 = vmatprep.subr.bf16.mxu0 0
      %303 = vmatpush1.bf16.msra.mxu0 0
      %304 = vmatprep.subr.bf16.mxu0 0
      %305 = vmatpush1.bf16.msra.mxu0 0
      %306 = vmatprep.subr.bf16.mxu0 0
      %307 = vmatpush1.bf16.msra.mxu0 %v296
      %308 = vmatprep.subr.bf16.mxu0 0
      %309 = vmatpush1.bf16.msra.mxu0 %v283
      %310 = vmatprep.subr.bf16.mxu0 0
      %311 = vmatpush1.bf16.msra.mxu0 %v282
      %312 = vmatprep.subr.bf16.mxu0 0
      %313 = vmatpush1.bf16.msra.mxu0 %v281
      %314 = vmatprep.subr.bf16.mxu0 0
      %315 = vmatpush2.bf16.msra.mxu0 0
      %316 = vmatprep.subr.bf16.mxu0 0
      %317 = vmatpush2.bf16.msra.mxu0 0
      %318 = vmatprep.subr.bf16.mxu0 0
      %319 = vmatpush2.bf16.msra.mxu0 0
      %320 = vmatprep.subr.bf16.mxu0 0
      %321 = vmatpush2.bf16.msra.mxu0 0
      %322 = vmatprep.subr.bf16.mxu0 0
      %323 = vmatpush2.bf16.msra.mxu0 0
      %324 = vmatprep.subr.bf16.mxu0 0
      %325 = vmatpush2.bf16.msra.mxu0 0
      %326 = vmatprep.subr.bf16.mxu0 0
      %327 = vmatpush2.bf16.msra.mxu0 0
      %328 = vmatprep.subr.bf16.mxu0 0
      %329 = vmatpush2.bf16.msra.mxu0 0
      %330 = vmatprep.mubr.bf16.mxu0 0
      %331 = vmatmul.mubr.bf16.gmra.mxu0 %v290
      %v332 = vpop.f32.mrf.mxu0
      %v333 = vadd.f32 0.0, %v332
      %v334 = vpop.f32.mrf.mxu0
      %v335 = vpop.f32.mrf.mxu0
      %v336 = vpop.f32.mrf.mxu0
      %337 = vdwg.mxu0
      %v338 = vpack.c.bf16 %v333, %v333
      %v339 = vld [vmem:[%s3] sm:$0xf]
      %v340 = vld [vmem:[%s3 + $0x4] sm:$0xf]
      %v341 = vld [vmem:[%s3 + $0x8] sm:$0xf]
      %v342 = vld [vmem:[%s3 + $0xc] sm:$0xf]
      %v343 = vld [vmem:[%s243] sm:$0xff]
      %v344 = vpack.c.bf16 %v343, %v343
      %v345 = vld [vmem:[%s4] sm:$0xf]
      %v346 = vld [vmem:[%s4 + $0x4] sm:$0xf]
      %v347 = vld [vmem:[%s4 + $0x8] sm:$0xf]
      %v348 = vld [vmem:[%s4 + $0xc] sm:$0xf]
      %v353 = vunpack.c.l.b16 %v345
      %v354 = vunpack.c.l.b16 %v346
      %v355 = vunpack.c.l.b16 %v347
      %v356 = vunpack.c.l.b16 %v348
      %v357 = vpack.c.b16 %v354, %v353
      %v358 = vpack.c.b16 %v356, %v355
      %vm361 = vcmask 261120
      %v363 = vsel %vm361, %v344, 0
      %365 = vmatprep.subr.bf16.mxu0 0
      %366 = vmatpush1.bf16.msra.mxu0 0
      %367 = vmatprep.subr.bf16.mxu0 0
      %368 = vmatpush1.bf16.msra.mxu0 0
      %369 = vmatprep.subr.bf16.mxu0 0
      %370 = vmatpush1.bf16.msra.mxu0 0
      %371 = vmatprep.subr.bf16.mxu0 0
      %372 = vmatpush1.bf16.msra.mxu0 0
      %373 = vmatprep.subr.bf16.mxu0 0
      %374 = vmatpush1.bf16.msra.mxu0 0
      %375 = vmatprep.subr.bf16.mxu0 0
      %376 = vmatpush1.bf16.msra.mxu0 0
      %377 = vmatprep.subr.bf16.mxu0 0
      %378 = vmatpush1.bf16.msra.mxu0 %v358
      %379 = vmatprep.subr.bf16.mxu0 0
      %380 = vmatpush1.bf16.msra.mxu0 %v357
      %381 = vmatprep.subr.bf16.mxu0 0
      %382 = vmatpush2.bf16.msra.mxu0 0
      %383 = vmatprep.subr.bf16.mxu0 0
      %384 = vmatpush2.bf16.msra.mxu0 0
      %385 = vmatprep.subr.bf16.mxu0 0
      %386 = vmatpush2.bf16.msra.mxu0 0
      %387 = vmatprep.subr.bf16.mxu0 0
      %388 = vmatpush2.bf16.msra.mxu0 0
      %389 = vmatprep.subr.bf16.mxu0 0
      %390 = vmatpush2.bf16.msra.mxu0 0
      %391 = vmatprep.subr.bf16.mxu0 0
      %392 = vmatpush2.bf16.msra.mxu0 0
      %393 = vmatprep.subr.bf16.mxu0 0
      %394 = vmatpush2.bf16.msra.mxu0 0
      %395 = vmatprep.subr.bf16.mxu0 0
      %396 = vmatpush2.bf16.msra.mxu0 0
      %397 = vmatprep.mubr.bf16.mxu0 0
      %398 = vmatmul.mubr.bf16.gmra.mxu0 %v363
      %v399 = vpop.f32.mrf.mxu0
      %v400 = vadd.f32 0.0, %v399
      %v401 = vpop.f32.mrf.mxu0
      %v402 = vpop.f32.mrf.mxu0
      %v403 = vpop.f32.mrf.mxu0
      %404 = vdwg.mxu0
      %v409 = vunpack.c.l.b16 %v339
      %v410 = vunpack.c.l.b16 %v340
      %v411 = vunpack.c.l.b16 %v341
      %v412 = vunpack.c.l.b16 %v342
      %v413 = vpack.c.b16 %v410, %v409
      %v414 = vpack.c.b16 %v412, %v411
      %v418 = vsel %vm361, %v338, 0
      %420 = vmatprep.subr.bf16.mxu0 0
      %421 = vmatpush1.bf16.msra.mxu0 0
      %422 = vmatprep.subr.bf16.mxu0 0
      %423 = vmatpush1.bf16.msra.mxu0 0
      %424 = vmatprep.subr.bf16.mxu0 0
      %425 = vmatpush1.bf16.msra.mxu0 0
      %426 = vmatprep.subr.bf16.mxu0 0
      %427 = vmatpush1.bf16.msra.mxu0 0
      %428 = vmatprep.subr.bf16.mxu0 0
      %429 = vmatpush1.bf16.msra.mxu0 0
      %430 = vmatprep.subr.bf16.mxu0 0
      %431 = vmatpush1.bf16.msra.mxu0 0
      %432 = vmatprep.subr.bf16.mxu0 0
      %433 = vmatpush1.bf16.msra.mxu0 %v414
      %434 = vmatprep.subr.bf16.mxu0 0
      %435 = vmatpush1.bf16.msra.mxu0 %v413
      %436 = vmatprep.subr.bf16.mxu0 0
      %437 = vmatpush2.bf16.msra.mxu0 0
      %438 = vmatprep.subr.bf16.mxu0 0
      %439 = vmatpush2.bf16.msra.mxu0 0
      %440 = vmatprep.subr.bf16.mxu0 0
      %441 = vmatpush2.bf16.msra.mxu0 0
      %442 = vmatprep.subr.bf16.mxu0 0
      %443 = vmatpush2.bf16.msra.mxu0 0
      %444 = vmatprep.subr.bf16.mxu0 0
      %445 = vmatpush2.bf16.msra.mxu0 0
      %446 = vmatprep.subr.bf16.mxu0 0
      %447 = vmatpush2.bf16.msra.mxu0 0
      %448 = vmatprep.subr.bf16.mxu0 0
      %449 = vmatpush2.bf16.msra.mxu0 0
      %450 = vmatprep.subr.bf16.mxu0 0
      %451 = vmatpush2.bf16.msra.mxu0 0
      %452 = vmatprep.mubr.bf16.mxu0 0
      %453 = vmatmul.mubr.bf16.gmra.mxu0 %v418
      %v454 = vpop.f32.mrf.mxu0
      %v455 = vadd.f32 %v400, %v454
      %v456 = vpop.f32.mrf.mxu0
      %v457 = vpop.f32.mrf.mxu0
      %v458 = vpop.f32.mrf.mxu0
      %459 = vdwg.mxu0
      %v460 = vtanh.pop %v455
      %461 = vst.msk [vmem:[%s256] sm:$0xff] %vm361, %v460
      %p462 = scmp.lt.s32.totalorder %s16, 1
      %s463 = scalar_select %p462, %s16, 1
      %s464 = smul.addr %s463, 8
      %s465 = scalar_lea.vmem %s5, %s464
      // Predicated region
      $region41: #{transformer_decoder_layer.16} parent=39 // pred_check
        %p466 = pneg %p154
      $region42: #{transformer_decoder_layer.16} parent=39 // pred_check_branch
        %468 = sbr.rel (%p466) target = $region44
      $region43: #{transformer_decoder_layer.16} parent=39 // pred_region
        _
      $region44: #{transformer_decoder_layer.16} parent=39 // pred_fallthru
        _
    $region40: #{transformer_decoder_layer.16} parent=5 // pred_fallthru
      _
    %p469 = scmp.le.s32.totalorder 2, %s11
    // Predicated region
    $region45: #{transformer_decoder_layer.16} parent=5 // pred_check
      %p470 = pneg %p469
    $region46: #{transformer_decoder_layer.16} parent=5 // pred_check_branch
      %472 = sbr.rel (%p470) target = $region48
    $region47: #{transformer_decoder_layer.16} parent=5 // pred_region
      %s473 = ssub.s32 %s11, 2
      // Predicated region
      $region49: #{transformer_decoder_layer.16} parent=47 // pred_check
        %p474 = pneg %p160
      $region50: #{transformer_decoder_layer.16} parent=47 // pred_check_branch
        %476 = sbr.rel (%p474) target = $region52
      $region51: #{transformer_decoder_layer.16} parent=47 // pred_region
        %p477 = scmp.lt.s32.totalorder %s17, 1
        %s478 = scalar_select %p477, %s17, 1
        %s479 = smul.addr %s478, 8
        %s480 = scalar_lea.vmem %s5, %s479
      $region52: #{transformer_decoder_layer.16} parent=47 // pred_fallthru
        _
    $region48: #{transformer_decoder_layer.16} parent=5 // pred_fallthru
      _
  $region6: #{transformer_decoder_layer.16} parent=0 // loop_footer
    %s15 = sadd.s32 1, %s11
  $region7: #{transformer_decoder_layer.16} parent=0 // loop_footer_branch
    %10 = sbr.rel target = $region3
  $region8: #{transformer_decoder_layer.16} parent=0 // loop_exit
    _

// kernel: transformer_decoder_layer.17
$region0: #{transformer_decoder_layer.17}
  #allocation0 [shape = 'u32[]', space=smem, size = 0x4, offset = 0x4, fixed_abs, tag = 'smem constant byte address 0x4 - core index']
  #allocation1 [shape = 'u32[144,128]{1,0:T(1,128)}', space=vmem, size = 0x12000, scoped, tag = 'internal scratch']
  %s0 = inlined_call_operand.vmem [shape: f32[16,32], index: 0, kind: input, shape index: {}]
  %s1 = inlined_call_operand.vmem [shape: f32[16,32], index: 1, kind: input, shape index: {}]
  %s2 = inlined_call_operand.vmem [shape: f32[1,32], index: 2, kind: input, shape index: {}]
  %s3 = inlined_call_operand.vmem [shape: f32[1,32], index: 3, kind: input, shape index: {}]
  %s4 = inlined_call_operand.vmem [shape: bf16[32,64], index: 4, kind: input, shape index: {}]
  %s5 = inlined_call_operand.vmem [shape: f32[1,64], index: 5, kind: input, shape index: {}]
  %s6 = inlined_call_operand.vmem [shape: bf16[64,32], index: 6, kind: input, shape index: {}]
  %s7 = inlined_call_operand.vmem [shape: f32[1,32], index: 7, kind: input, shape index: {}]
  %s8 = inlined_call_operand.hbm [shape: f32[16,32], index: 8, kind: output, shape index: {}]
  %s9 = sld [smem:[#allocation0]]
  $region42: #{transformer_decoder_layer.17} parent=0
    _
  %s11 = ssub.s32 1, %s9
  %s12 = scalar_select 0, %s11, %s9
  $region1: #{transformer_decoder_layer.17} parent=0
    #allocation2 [shape = 'u8[8192]{0}', space=vmem, size = 0x2000, scoped, tag = 'output window, operand 0, single buffered']
    #allocation3 [shape = 's32[1]{0}', space=sflag, size = 0x4, scoped, tag = 'scoped memory for transformer_decoder_layer.17']
    %13 = vsyncpa [#allocation3], 0
    // Predicated region
    $region2: #{transformer_decoder_layer.17} parent=1 // pred_check
      _
    $region3: #{transformer_decoder_layer.17} parent=1 // pred_check_branch
      %15 = sbr.rel (0) target = $region5
    $region4: #{transformer_decoder_layer.17} parent=1 // pred_region
      _
    $region5: #{transformer_decoder_layer.17} parent=1 // pred_fallthru
      _
    // Predicated region
    $region6: #{transformer_decoder_layer.17} parent=1 // pred_check
      _
    $region7: #{transformer_decoder_layer.17} parent=1 // pred_check_branch
      %17 = sbr.rel (0) target = $region9
    $region8: #{transformer_decoder_layer.17} parent=1 // pred_region
      _
    $region9: #{transformer_decoder_layer.17} parent=1 // pred_fallthru
      _
    // Predicated region
    $region10: #{transformer_decoder_layer.17} parent=1 // pred_check
      _
    $region11: #{transformer_decoder_layer.17} parent=1 // pred_check_branch
      %19 = sbr.rel (0) target = $region13
    $region12: #{transformer_decoder_layer.17} parent=1 // pred_region
      _
    $region13: #{transformer_decoder_layer.17} parent=1 // pred_fallthru
      _
    // Predicated region
    $region14: #{transformer_decoder_layer.17} parent=1 // pred_check
      _
    $region15: #{transformer_decoder_layer.17} parent=1 // pred_check_branch
      %21 = sbr.rel (0) target = $region17
    $region16: #{transformer_decoder_layer.17} parent=1 // pred_region
      _
    $region17: #{transformer_decoder_layer.17} parent=1 // pred_fallthru
      _
    // Predicated region
    $region18: #{transformer_decoder_layer.17} parent=1 // pred_check
      _
    $region19: #{transformer_decoder_layer.17} parent=1 // pred_check_branch
      %23 = sbr.rel (0) target = $region21
    $region20: #{transformer_decoder_layer.17} parent=1 // pred_region
      _
    $region21: #{transformer_decoder_layer.17} parent=1 // pred_fallthru
      _
    // Predicated region
    $region22: #{transformer_decoder_layer.17} parent=1 // pred_check
      _
    $region23: #{transformer_decoder_layer.17} parent=1 // pred_check_branch
      %25 = sbr.rel (0) target = $region25
    $region24: #{transformer_decoder_layer.17} parent=1 // pred_region
      _
    $region25: #{transformer_decoder_layer.17} parent=1 // pred_fallthru
      _
    // Predicated region
    $region26: #{transformer_decoder_layer.17} parent=1 // pred_check
      _
    $region27: #{transformer_decoder_layer.17} parent=1 // pred_check_branch
      %27 = sbr.rel (0) target = $region29
    $region28: #{transformer_decoder_layer.17} parent=1 // pred_region
      _
    $region29: #{transformer_decoder_layer.17} parent=1 // pred_fallthru
      _
    // Predicated region
    $region30: #{transformer_decoder_layer.17} parent=1 // pred_check
      _
    $region31: #{transformer_decoder_layer.17} parent=1 // pred_check_branch
      %29 = sbr.rel (0) target = $region33
    $region32: #{transformer_decoder_layer.17} parent=1 // pred_region
      _
    $region33: #{transformer_decoder_layer.17} parent=1 // pred_fallthru
      _
    %v31 = vld [vmem:[%s0] sm:$0xff]
    %v32 = vld [vmem:[%s0 + $0x8] sm:$0xff]
    %v33 = vld [vmem:[%s1] sm:$0xff]
    %v34 = vld [vmem:[%s1 + $0x8] sm:$0xff]
    %v35 = vadd.f32 %v31, %v33
    %v36 = vadd.f32 %v32, %v34
    %vm37 = vcmask 261120
    %v38 = vsel %vm37, %v35, 0.0
    %39 = vadd.xlane.f32.xlu0 %v38
    %v40 = vpop.xlane.xlu0 %39
    %v41 = vsel %vm37, %v36, 0.0
    %42 = vadd.xlane.f32.xlu0 %v41
    %v43 = vpop.xlane.xlu0 %42
    %v44 = vrcp.pop 32.0
    %v45 = vmul.f32 %v40, %v44
    %v46 = vmul.f32 %v43, %v44
    %v47 = vsub.f32 %v35, %v45
    %v48 = vsub.f32 %v36, %v46
    %v49 = vmul.f32 %v47, %v47
    %v50 = vmul.f32 %v48, %v48
    %v51 = vsel %vm37, %v49, 0.0
    %52 = vadd.xlane.f32.xlu0 %v51
    %v53 = vpop.xlane.xlu0 %52
    %v54 = vsel %vm37, %v50, 0.0
    %55 = vadd.xlane.f32.xlu0 %v54
    %v56 = vpop.xlane.xlu0 %55
    %v57 = vmul.f32 %v53, %v44
    %v58 = vmul.f32 %v56, %v44
    %v59 = vadd.f32 %v57, 1e-06
    %v60 = vadd.f32 %v58, 1e-06
    %v61 = vrsqrt.pop %v59
    %v62 = vrsqrt.pop %v60
    %v63 = vmul.f32 %v47, %v61
    %v64 = vmul.f32 %v48, %v62
    %v65 = vld [vmem:[%s2] sm:$0x1]
    %v67 = vlaneseq
    %v68 = vshrl.u32 %v67, 7
    %v69 = vsub.s32 0, %v68
    %v70 = vrot.slane %v65, %v69
    %v72 = vmul.f32 %v63, %v70
    %v73 = vmul.f32 %v64, %v70
    %v74 = vld [vmem:[%s3] sm:$0x1]
    %v76 = vlaneseq
    %v77 = vshrl.u32 %v76, 7
    %v78 = vsub.s32 0, %v77
    %v79 = vrot.slane %v74, %v78
    %v81 = vadd.f32 %v72, %v79
    %v82 = vadd.f32 %v73, %v79
    %v83 = vpack.c.bf16 %v82, %v81
    %v84 = vld [vmem:[%s4] sm:$0xf]
    %v85 = vld [vmem:[%s4 + $0x4] sm:$0xf]
    %v86 = vld [vmem:[%s4 + $0x8] sm:$0xf]
    %v87 = vld [vmem:[%s4 + $0xc] sm:$0xf]
    %v88 = vld [vmem:[%s5] sm:$0x1]
    %v90 = vlaneseq
    %v91 = vshrl.u32 %v90, 7
    %v92 = vsub.s32 0, %v91
    %v93 = vrot.slane %v88, %v92
    %v99 = vunpack.c.l.b16 %v84
    %v100 = vunpack.c.l.b16 %v85
    %v101 = vunpack.c.l.b16 %v86
    %v102 = vunpack.c.l.b16 %v87
    %v103 = vpack.c.b16 %v100, %v99
    %v104 = vpack.c.b16 %v102, %v101
    %v108 = vsel %vm37, %v83, 0
    %110 = vmatprep.subr.bf16.mxu0 0
    %111 = vmatpush1.bf16.msra.mxu0 0
    %112 = vmatprep.subr.bf16.mxu0 0
    %113 = vmatpush1.bf16.msra.mxu0 0
    %114 = vmatprep.subr.bf16.mxu0 0
    %115 = vmatpush1.bf16.msra.mxu0 0
    %116 = vmatprep.subr.bf16.mxu0 0
    %117 = vmatpush1.bf16.msra.mxu0 0
    %118 = vmatprep.subr.bf16.mxu0 0
    %119 = vmatpush1.bf16.msra.mxu0 0
    %120 = vmatprep.subr.bf16.mxu0 0
    %121 = vmatpush1.bf16.msra.mxu0 0
    %122 = vmatprep.subr.bf16.mxu0 0
    %123 = vmatpush1.bf16.msra.mxu0 %v104
    %124 = vmatprep.subr.bf16.mxu0 0
    %125 = vmatpush1.bf16.msra.mxu0 %v103
    %126 = vmatprep.subr.bf16.mxu0 0
    %127 = vmatpush2.bf16.msra.mxu0 0
    %128 = vmatprep.subr.bf16.mxu0 0
    %129 = vmatpush2.bf16.msra.mxu0 0
    %130 = vmatprep.subr.bf16.mxu0 0
    %131 = vmatpush2.bf16.msra.mxu0 0
    %132 = vmatprep.subr.bf16.mxu0 0
    %133 = vmatpush2.bf16.msra.mxu0 0
    %134 = vmatprep.subr.bf16.mxu0 0
    %135 = vmatpush2.bf16.msra.mxu0 0
    %136 = vmatprep.subr.bf16.mxu0 0
    %137 = vmatpush2.bf16.msra.mxu0 0
    %138 = vmatprep.subr.bf16.mxu0 0
    %139 = vmatpush2.bf16.msra.mxu0 0
    %140 = vmatprep.subr.bf16.mxu0 0
    %141 = vmatpush2.bf16.msra.mxu0 0
    %142 = vmatprep.mubr.bf16.mxu0 0
    %143 = vmatmul.mubr.bf16.gmra.mxu0 %v108
    %v144 = vpop.f32.mrf.mxu0
    %v145 = vadd.f32 %v93, %v144
    %v146 = vpop.f32.mrf.mxu0
    %v147 = vpop.f32.mrf.mxu0
    %v148 = vadd.f32 %v93, %v147
    %v149 = vpop.f32.mrf.mxu0
    %150 = vdwg.mxu0
    %v151 = vmax.f32 %v145, 0.0
    %v152 = vmax.f32 %v148, 0.0
    %v153 = vpack.c.bf16 %v152, %v151
    %v154 = vld [vmem:[%s6] sm:$0xf]
    %v155 = vld [vmem:[%s6 + $0x4] sm:$0xf]
    %v156 = vld [vmem:[%s6 + $0x8] sm:$0xf]
    %v157 = vld [vmem:[%s6 + $0xc] sm:$0xf]
    %v158 = vld [vmem:[%s6 + $0x10] sm:$0xf]
    %v159 = vld [vmem:[%s6 + $0x14] sm:$0xf]
    %v160 = vld [vmem:[%s6 + $0x18] sm:$0xf]
    %v161 = vld [vmem:[%s6 + $0x1c] sm:$0xf]
    %v162 = vld [vmem:[%s7] sm:$0x1]
    %v164 = vlaneseq
    %v165 = vshrl.u32 %v164, 7
    %v166 = vsub.s32 0, %v165
    %v167 = vrot.slane %v162, %v166
    %v177 = vunpack.c.l.b16 %v154
    %v178 = vunpack.c.l.b16 %v155
    %v179 = vunpack.c.l.b16 %v156
    %v180 = vunpack.c.l.b16 %v157
    %v181 = vunpack.c.l.b16 %v158
    %v182 = vunpack.c.l.b16 %v159
    %v183 = vunpack.c.l.b16 %v160
    %v184 = vunpack.c.l.b16 %v161
    %v185 = vpack.c.b16 %v178, %v177
    %v186 = vpack.c.b16 %v180, %v179
    %v187 = vpack.c.b16 %v182, %v181
    %v188 = vpack.c.b16 %v184, %v183
    %vm193 = vcmask 523264
    %v195 = vsel %vm193, %v153, 0
    %197 = vmatprep.subr.bf16.mxu0 0
    %198 = vmatpush1.bf16.msra.mxu0 0
    %199 = vmatprep.subr.bf16.mxu0 0
    %200 = vmatpush1.bf16.msra.mxu0 0
    %201 = vmatprep.subr.bf16.mxu0 0
    %202 = vmatpush1.bf16.msra.mxu0 0
    %203 = vmatprep.subr.bf16.mxu0 0
    %204 = vmatpush1.bf16.msra.mxu0 0
    %205 = vmatprep.subr.bf16.mxu0 0
    %206 = vmatpush1.bf16.msra.mxu0 %v188
    %207 = vmatprep.subr.bf16.mxu0 0
    %208 = vmatpush1.bf16.msra.mxu0 %v187
    %209 = vmatprep.subr.bf16.mxu0 0
    %210 = vmatpush1.bf16.msra.mxu0 %v186
    %211 = vmatprep.subr.bf16.mxu0 0
    %212 = vmatpush1.bf16.msra.mxu0 %v185
    %213 = vmatprep.subr.bf16.mxu0 0
    %214 = vmatpush2.bf16.msra.mxu0 0
    %215 = vmatprep.subr.bf16.mxu0 0
    %216 = vmatpush2.bf16.msra.mxu0 0
    %217 = vmatprep.subr.bf16.mxu0 0
    %218 = vmatpush2.bf16.msra.mxu0 0
    %219 = vmatprep.subr.bf16.mxu0 0
    %220 = vmatpush2.bf16.msra.mxu0 0
    %221 = vmatprep.subr.bf16.mxu0 0
    %222 = vmatpush2.bf16.msra.mxu0 0
    %223 = vmatprep.subr.bf16.mxu0 0
    %224 = vmatpush2.bf16.msra.mxu0 0
    %225 = vmatprep.subr.bf16.mxu0 0
    %226 = vmatpush2.bf16.msra.mxu0 0
    %227 = vmatprep.subr.bf16.mxu0 0
    %228 = vmatpush2.bf16.msra.mxu0 0
    %229 = vmatprep.mubr.bf16.mxu0 0
    %230 = vmatmul.mubr.bf16.gmra.mxu0 %v195
    %v231 = vpop.f32.mrf.mxu0
    %v232 = vadd.f32 %v167, %v231
    %v233 = vpop.f32.mrf.mxu0
    %v234 = vpop.f32.mrf.mxu0
    %v235 = vadd.f32 %v167, %v234
    %v236 = vpop.f32.mrf.mxu0
    %237 = vdwg.mxu0
    %v238 = vadd.f32 %v232, %v35
    %v239 = vadd.f32 %v235, %v36
    %240 = vst.msk [vmem:[#allocation2] sm:$0xff] %vm37, %v238
    %241 = vst.msk [vmem:[#allocation2 + $0x8] sm:$0xff] %vm37, %v239
    // Predicated region
    $region34: #{transformer_decoder_layer.17} parent=1 // pred_check
      _
    $region35: #{transformer_decoder_layer.17} parent=1 // pred_check_branch
      %243 = sbr.rel (0) target = $region37
    $region36: #{transformer_decoder_layer.17} parent=1 // pred_region
      %s245 = ssub.s32 256, 256
      %246 = vsyncadd [#allocation3], %s245
      %s247 = sshll.u32 [#allocation2], 4
      %s248 = int_to_ptr.vmem [resolvable:$true] %s247
      %253 = dma.vmem_to_hbm [thread:$0]  %s248, 256, %s8, [#allocation3], 128, 128, 8
    $region37: #{transformer_decoder_layer.17} parent=1 // pred_fallthru
      _
    // Predicated region
    $region38: #{transformer_decoder_layer.17} parent=1 // pred_check
      _
    $region39: #{transformer_decoder_layer.17} parent=1 // pred_check_branch
      %255 = sbr.rel (0) target = $region41
    $region40: #{transformer_decoder_layer.17} parent=1 // pred_region
      %256 = dma.done [#allocation3], 256
    $region41: #{transformer_decoder_layer.17} parent=1 // pred_fallthru
      _
    %257 = vsyncpa [#allocation3], 1

</llo_original>
